<compile_context>
chip_gen: v7x
topology: tpu7x:2x2x1
jax: 0.10.0
libtpu: 0.0.40
codegen_flags: <defaults>
</compile_context>

<pallas_src>
import functools

import jax
import jax.numpy as jnp
from jax.experimental import pallas as pl
from jax.experimental.pallas import tpu as pltpu


LANE = 128          # channel padding target (vreg lane width / MXU N)
TM_MAX = 512        # row-tile target; small L collapses to one tile per batch

_COMPILER_PARAMS = pltpu.CompilerParams(
    dimension_semantics=("parallel", "parallel"),
    vmem_limit_bytes=32 * 1024 * 1024,   # safe on v5e/v6e (128 MiB) and v7x (64 MiB)
)

_VMEM_SPEC = pl.BlockSpec(memory_space=pltpu.MemorySpace.VMEM)


def _round_up(x, m):
    return (x + m - 1) // m * m


# ----------------------------------------------------------------------------
# Pallas kernels
# ----------------------------------------------------------------------------
def _conv_bn_kernel(x_ref, w_ref, scale_ref, bias_ref, o_ref, *, K, stride, tm, relu):
    """Conv1d (as K shifted MXU dots) + folded-BN affine + optional ReLU.

    x_ref   : (stride, 1, need, C)  VMEM-resident phase slabs of the padded input
    w_ref   : (K, C, C)             resident weights, tap-major
    scale/bias : (1, C) f32         resident folded-BN affine
    o_ref   : (1, tm, C)            one bf16 output row tile
    """
    m = pl.program_id(1)
    row0 = pl.multiple_of(m * tm, tm)            # tile-aligned dynamic offset
    cout = o_ref.shape[-1]
    maxoff = (K - 1) // stride
    acc = jnp.zeros((tm, cout), jnp.float32)
    for p in range(stride):
        win = x_ref[p, 0, pl.ds(row0, tm + maxoff), :]      # aligned contiguous load
        for k in range(p, K, stride):                       # taps living in phase p
            off = k // stride
            acc = acc + jnp.dot(win[off:off + tm], w_ref[k],
                                preferred_element_type=jnp.float32)
    out = acc * scale_ref[...] + bias_ref[...]
    if relu:
        out = jnp.maximum(out, 0.0)
    o_ref[0] = out.astype(o_ref.dtype)


def _conv_bn_residual_kernel(h_ref, x_ref, w_ref, wsc_ref, scale_ref,
                             sc_scale_ref, bias_ref, o_ref, *, K, tm):
    """conv2+bn2 fused with the 1x1/stride-2 shortcut conv+bn and the final ReLU.

    h_ref  : (1, 1, need_h, C)  zero-padded conv1 output (stride-1 slab)
    x_ref  : (1, 1, need_x, C)  phase-1 of the block input slab == x[:, ::2, :]
    w_ref  : (K, C, C)          conv2 weights;  wsc_ref : (C, C) shortcut weights
    scale/sc_scale/bias : (1, C) f32   (bias = bn2_bias + sc_bn_bias, pre-summed)
    """
    m = pl.program_id(1)
    row0 = pl.multiple_of(m * tm, tm)
    cout = o_ref.shape[-1]
    win = h_ref[0, 0, pl.ds(row0, tm + K - 1), :]
    acc = jnp.zeros((tm, cout), jnp.float32)
    for k in range(K):
        acc = acc + jnp.dot(win[k:k + tm], w_ref[k],
                            preferred_element_type=jnp.float32)
    xs = x_ref[0, 0, pl.ds(row0, tm), :]
    sc = jnp.dot(xs, wsc_ref[...], preferred_element_type=jnp.float32)
    out = acc * scale_ref[...] + sc * sc_scale_ref[...] + bias_ref[...]
    out = jnp.maximum(out, 0.0)
    o_ref[0] = out.astype(o_ref.dtype)


def _maxpool_kernel(x_ref, o_ref, *, tm):
    """MaxPool1d(k=3, s=2, p=1) over the -inf padded phase slabs (single pass)."""
    m = pl.program_id(1)
    row0 = pl.multiple_of(m * tm, tm)
    w0 = x_ref[0, 0, pl.ds(row0, tm + 1), :]
    w1 = x_ref[1, 0, pl.ds(row0, tm), :]
    o_ref[0] = jnp.maximum(jnp.maximum(w0[0:tm], w1), w0[1:tm + 1])


def _gap_linear_kernel(x_ref, w_ref, b_ref, logits_ref, x4_ref):
    """Global average pool over L fused with the final Linear (tiny M, one call)."""
    x = x_ref[...].astype(jnp.float32)           # (B, L, C)
    x4 = jnp.mean(x, axis=1)                     # (B, C)
    logits_ref[...] = jnp.dot(x4, w_ref[...],
                              preferred_element_type=jnp.float32) + b_ref[...]
    x4_ref[...] = x4


# ----------------------------------------------------------------------------
# Glue: phase slabs, weight prep, layer wrappers
# ----------------------------------------------------------------------------
def _phases(xp, stride, need):
    """De-interleave a padded (B, Lp, C) array into `stride` phase slabs of length
    `need` (zero-filled tail) -> (stride, B, need, C).  1x the input bytes."""
    out = []
    for p in range(stride):
        v = xp[:, p::stride, :]
        cur = v.shape[1]
        if cur < need:
            v = jnp.pad(v, ((0, 0), (0, need - cur), (0, 0)))
        elif cur > need:
            v = v[:, :need, :]
        out.append(v)
    return jnp.stack(out, axis=0)


def _prep_conv_weight(w_ock):
    """PyTorch (Cout, Cin, K) -> (K, Cin_pad, Cout_pad) bf16, zero padded to 128."""
    w = jnp.transpose(w_ock, (2, 1, 0))          # (K, Cin, Cout)
    k, cin, cout = w.shape
    w = jnp.pad(w, ((0, 0), (0, LANE - cin), (0, LANE - cout)))
    return w.astype(jnp.bfloat16)


def _prep_vec(v):
    """(C,) f32 -> (1, 128) f32, zero padded (keeps padded channels exactly 0)."""
    v = jnp.pad(v, (0, LANE - v.shape[0]))
    return v.reshape(1, LANE).astype(jnp.float32)


def conv1d_bn(x, w_ock, scale, bias, *, stride, padding, relu, return_phases=False):
    """x: (B, L, 128) bf16 -> (B, L_out, 128) bf16 (valid rows only)."""
    B, L, _ = x.shape
    K = w_ock.shape[2]
    L_out = (L + 2 * padding - K) // stride + 1
    tm = min(TM_MAX, _round_up(L_out, 16))
    m_pad = _round_up(L_out, tm)
    maxoff = (K - 1) // stride
    need = m_pad + maxoff

    xp = jnp.pad(x, ((0, 0), (padding, padding), (0, 0)))
    ph = _phases(xp, stride, need)               # (stride, B, need, 128) bf16
    wm = _prep_conv_weight(w_ock)
    sc = _prep_vec(scale)
    bi = _prep_vec(bias)

    kern = functools.partial(_conv_bn_kernel, K=K, stride=stride, tm=tm, relu=relu)
    y = pl.pallas_call(
        kern,
        out_shape=jax.ShapeDtypeStruct((B, m_pad, LANE), jnp.bfloat16),
        grid=(B, m_pad // tm),
        in_specs=[
            pl.BlockSpec((stride, 1, need, LANE), lambda b, m: (0, b, 0, 0)),
            pl.BlockSpec((K, LANE, LANE), lambda b, m: (0, 0, 0)),
            pl.BlockSpec((1, LANE), lambda b, m: (0, 0)),
            pl.BlockSpec((1, LANE), lambda b, m: (0, 0)),
        ],
        out_specs=pl.BlockSpec((1, tm, LANE), lambda b, m: (b, m, 0)),
        compiler_params=_COMPILER_PARAMS,
    )(ph, wm, sc, bi)
    y = y[:, :L_out, :]
    if return_phases:
        return y, ph
    return y


def maxpool1d_k3s2p1(x):
    B, L, C = x.shape
    L_out = (L + 2 - 3) // 2 + 1
    tm = min(TM_MAX, _round_up(L_out, 16))
    m_pad = _round_up(L_out, tm)
    need = m_pad + 1
    xp = jnp.pad(x, ((0, 0), (1, 1), (0, 0)), constant_values=-jnp.inf)
    ph = _phases(xp, 2, need)
    kern = functools.partial(_maxpool_kernel, tm=tm)
    y = pl.pallas_call(
        kern,
        out_shape=jax.ShapeDtypeStruct((B, m_pad, C), jnp.bfloat16),
        grid=(B, m_pad // tm),
        in_specs=[pl.BlockSpec((2, 1, need, C), lambda b, m: (0, b, 0, 0))],
        out_specs=pl.BlockSpec((1, tm, C), lambda b, m: (b, m, 0)),
        compiler_params=_COMPILER_PARAMS,
    )(ph)
    return y[:, :L_out, :]


def residual_block(x, p, stride=2):
    """conv1->bn1->relu, then {conv2->bn2  +  fused 1x1/stride-2 shortcut->bn} -> relu."""
    assert stride == 2  # all blocks in projResnet use stride=2 (conv shortcut path)
    B = x.shape[0]
    # conv1 (k=3, s=2, p=1); keep its input phase slabs for the fused shortcut
    h, x_ph = conv1d_bn(x, p["conv1_w"], *p["bn1"], stride=stride, padding=1,
                        relu=True, return_phases=True)
    L_out = h.shape[1]
    K = p["conv2_w"].shape[2]                    # 3
    tm = min(TM_MAX, _round_up(L_out, 16))
    m_pad = _round_up(L_out, tm)
    need_h = m_pad + (K - 1)
    hp = jnp.pad(h, ((0, 0), (1, 1), (0, 0)))
    h_ph = _phases(hp, 1, need_h)                # (1, B, need_h, 128)
    need_x = x_ph.shape[2]

    w2 = _prep_conv_weight(p["conv2_w"])
    wsc = _prep_conv_weight(p["sc_w"])[0]        # (128, 128)
    s2 = _prep_vec(p["bn2"][0])
    ssc = _prep_vec(p["sc_bn"][0])
    b_total = _prep_vec(p["bn2"][1]) + _prep_vec(p["sc_bn"][1])

    kern = functools.partial(_conv_bn_residual_kernel, K=K, tm=tm)
    y = pl.pallas_call(
        kern,
        out_shape=jax.ShapeDtypeStruct((B, m_pad, LANE), jnp.bfloat16),
        grid=(B, m_pad // tm),
        in_specs=[
            pl.BlockSpec((1, 1, need_h, LANE), lambda b, m: (0, b, 0, 0)),
            # phase-1 of conv1's zero-padded input slab == x[:, ::2, :] (the shortcut rows)
            pl.BlockSpec((1, 1, need_x, LANE), lambda b, m: (1, b, 0, 0)),
            pl.BlockSpec((K, LANE, LANE), lambda b, m: (0, 0, 0)),
            pl.BlockSpec((LANE, LANE), lambda b, m: (0, 0)),
            pl.BlockSpec((1, LANE), lambda b, m: (0, 0)),
            pl.BlockSpec((1, LANE), lambda b, m: (0, 0)),
            pl.BlockSpec((1, LANE), lambda b, m: (0, 0)),
        ],
        out_specs=pl.BlockSpec((1, tm, LANE), lambda b, m: (b, m, 0)),
        compiler_params=_COMPILER_PARAMS,
    )(h_ph, x_ph, w2, wsc, s2, ssc, b_total)
    return y[:, :L_out, :]


def gap_linear(x, w, b, num_classes, out_channels):
    """Fused global-average-pool + Linear.  x: (B, L, 128) bf16."""
    B, L, C = x.shape
    wm = jnp.pad(w.T, ((0, C - out_channels), (0, LANE - num_classes))).astype(jnp.float32)
    bm = jnp.pad(b, (0, LANE - num_classes)).reshape(1, LANE).astype(jnp.float32)
    logits, x4 = pl.pallas_call(
        _gap_linear_kernel,
        out_shape=(jax.ShapeDtypeStruct((B, LANE), jnp.float32),
                   jax.ShapeDtypeStruct((B, LANE), jnp.float32)),
        in_specs=[_VMEM_SPEC, _VMEM_SPEC, _VMEM_SPEC],
        out_specs=(_VMEM_SPEC, _VMEM_SPEC),
    )(x, wm, bm)
    return logits[:, :num_classes], x4[:, :out_channels]


# ----------------------------------------------------------------------------
# Parameters (deterministic synthetic init) and model
# ----------------------------------------------------------------------------
def _bn_fold(c, eps=1e-5):
    # Fresh-module BN: gamma=1, beta=0, running_mean=0, running_var=1.
    gamma = jnp.ones((c,), jnp.float32)
    beta = jnp.zeros((c,), jnp.float32)
    rm = jnp.zeros((c,), jnp.float32)
    rv = jnp.ones((c,), jnp.float32)
    scale = gamma / jnp.sqrt(rv + eps)
    bias = beta - rm * scale
    return scale, bias


def init_params(key, in_channels, output_channel, num_classes):
    half = output_channel // 2
    keys = iter(jax.random.split(key, 16))

    def w(shape):
        return jax.random.normal(next(keys), shape, jnp.float32) * 0.1

    def res_block(cin, cout):
        return {
            "conv1_w": w((cout, cin, 3)), "bn1": _bn_fold(cout),
            "conv2_w": w((cout, cout, 3)), "bn2": _bn_fold(cout),
            "sc_w": w((cout, cin, 1)), "sc_bn": _bn_fold(cout),
        }

    return {
        "proj_conv_w": w((half, in_channels, 5)),
        "conv1_w": w((half, half, 5)),
        "bn1": _bn_fold(half),
        "rb1": res_block(half, half),
        "rb2": res_block(half, output_channel),
        "rb3": res_block(output_channel, output_channel),
        "linear_w": w((num_classes, output_channel)),
        "linear_b": jnp.zeros((num_classes,), jnp.float32),
    }


def proj_resnet_forward(params, x_ncl):
    # PyTorch NCL -> NLC, channel-pad to 128 lanes, bf16 activations.
    x = jnp.transpose(x_ncl, (0, 2, 1)).astype(jnp.float32)
    cin = x.shape[-1]
    x = jnp.pad(x, ((0, 0), (0, 0), (0, LANE - cin))).astype(jnp.bfloat16)

    half = params["proj_conv_w"].shape[0]
    ones = jnp.ones((half,), jnp.float32)
    zeros = jnp.zeros((half,), jnp.float32)

    out = conv1d_bn(x, params["proj_conv_w"], ones, zeros,
                    stride=1, padding=2, relu=False)
    out = conv1d_bn(out, params["conv1_w"], *params["bn1"],
                    stride=1, padding=2, relu=True)
    out = maxpool1d_k3s2p1(out)
    out = residual_block(out, params["rb1"], stride=2)
    out = residual_block(out, params["rb2"], stride=2)
    out = residual_block(out, params["rb3"], stride=2)

    nc, oc = params["linear_w"].shape
    logits, x4 = gap_linear(out, params["linear_w"], params["linear_b"], nc, oc)
    return logits, x4


if __name__ == "__main__":
    B, C_IN, L = 2, 4, 64
    OUTPUT_CHANNEL, NUM_CLASSES = 32, 10

    key = jax.random.PRNGKey(0)
    k_param, k_x = jax.random.split(key)
    params = init_params(k_param, C_IN, OUTPUT_CHANNEL, NUM_CLASSES)
    x = jax.random.normal(k_x, (B, C_IN, L), jnp.float32)  # PyTorch NCL input

    logits, x4 = jax.jit(proj_resnet_forward)(params, x)
    jax.block_until_ready((logits, x4))

    assert logits.shape == (B, NUM_CLASSES)
    assert x4.shape == (B, OUTPUT_CHANNEL)
    assert bool(jnp.all(jnp.isfinite(logits))) and bool(jnp.all(jnp.isfinite(x4)))
    print("KERNEL_OK")
</pallas_src>

<mosaic_0001>
module attributes {stable_mosaic.version = 11 : i64} {
  func.func @_conv_bn_kernel(%arg0: i32, %arg1: i32, %arg2: memref<1x1x68x128xbf16, #tpu.memory_space<vmem>>, %arg3: memref<5x128x128xbf16, #tpu.memory_space<vmem>>, %arg4: memref<1x128xf32, #tpu.memory_space<vmem>>, %arg5: memref<1x128xf32, #tpu.memory_space<vmem>>, %arg6: memref<1x64x128xbf16, #tpu.memory_space<vmem>>) attributes {dimension_semantics = [#tpu.dimension_semantics<parallel>, #tpu.dimension_semantics<parallel>], iteration_bounds = array<i64: 2, 1>, scalar_prefetch = 0 : i64, scratch_operands = 0 : i64, tpu.core_type = #tpu.core_type<tc>, window_params = [{transform_indices = @transform_0, window_bounds = array<i64: 1, 1, 68, 128>}, {pipeline_mode = #tpu.pipeline_mode<synchronous>, transform_indices = @transform_1, window_bounds = array<i64: 5, 128, 128>}, {pipeline_mode = #tpu.pipeline_mode<synchronous>, transform_indices = @transform_2, window_bounds = array<i64: 1, 128>}, {pipeline_mode = #tpu.pipeline_mode<synchronous>, transform_indices = @transform_3, window_bounds = array<i64: 1, 128>}, {transform_indices = @transform_4, window_bounds = array<i64: 1, 64, 128>}]} {
    %c64_i32 = arith.constant 64 : i32
    %0 = arith.muli %arg1, %c64_i32 : i32
    %1 = tpu.assume_multiple %0, 64 : i32
    %cst = arith.constant 0.000000e+00 : f32
    %2 = vector.broadcast %cst : f32 to vector<64x128xf32>
    %c0 = arith.constant 0 : index
    %c0_0 = arith.constant 0 : index
    %3 = arith.index_cast %1 : i32 to index
    %c0_1 = arith.constant 0 : index
    %4 = vector.load %arg2[%c0, %c0_0, %3, %c0_1] : memref<1x1x68x128xbf16, #tpu.memory_space<vmem>>, vector<1x1x68x128xbf16>
    %5 = vector.shape_cast %4 : vector<1x1x68x128xbf16> to vector<68x128xbf16>
    %6 = vector.extract_strided_slice %5 {offsets = [0, 0], sizes = [64, 128], strides = [1, 1]} : vector<68x128xbf16> to vector<64x128xbf16>
    %c0_2 = arith.constant 0 : index
    %c0_3 = arith.constant 0 : index
    %c0_4 = arith.constant 0 : index
    %7 = vector.load %arg3[%c0_2, %c0_3, %c0_4] : memref<5x128x128xbf16, #tpu.memory_space<vmem>>, vector<1x128x128xbf16>
    %8 = vector.shape_cast %7 : vector<1x128x128xbf16> to vector<128x128xbf16>
    %cst_5 = arith.constant dense<0.000000e+00> : vector<64x128xf32>
    %9 = tpu.matmul %6, %8, %cst_5 {dimension_numbers = #tpu.dot_dimension_numbers<[1], [0], [0], [1], [0, 0, 1, 1], [], []>} : vector<64x128xbf16>, vector<128x128xbf16>, vector<64x128xf32> -> vector<64x128xf32>
    %10 = arith.addf %2, %9 : vector<64x128xf32>
    %11 = vector.extract_strided_slice %5 {offsets = [1, 0], sizes = [64, 128], strides = [1, 1]} : vector<68x128xbf16> to vector<64x128xbf16>
    %c1 = arith.constant 1 : index
    %c0_6 = arith.constant 0 : index
    %c0_7 = arith.constant 0 : index
    %12 = vector.load %arg3[%c1, %c0_6, %c0_7] : memref<5x128x128xbf16, #tpu.memory_space<vmem>>, vector<1x128x128xbf16>
    %13 = vector.shape_cast %12 : vector<1x128x128xbf16> to vector<128x128xbf16>
    %cst_8 = arith.constant dense<0.000000e+00> : vector<64x128xf32>
    %14 = tpu.matmul %11, %13, %cst_8 {dimension_numbers = #tpu.dot_dimension_numbers<[1], [0], [0], [1], [0, 0, 1, 1], [], []>} : vector<64x128xbf16>, vector<128x128xbf16>, vector<64x128xf32> -> vector<64x128xf32>
    %15 = arith.addf %10, %14 : vector<64x128xf32>
    %16 = vector.extract_strided_slice %5 {offsets = [2, 0], sizes = [64, 128], strides = [1, 1]} : vector<68x128xbf16> to vector<64x128xbf16>
    %c2 = arith.constant 2 : index
    %c0_9 = arith.constant 0 : index
    %c0_10 = arith.constant 0 : index
    %17 = vector.load %arg3[%c2, %c0_9, %c0_10] : memref<5x128x128xbf16, #tpu.memory_space<vmem>>, vector<1x128x128xbf16>
    %18 = vector.shape_cast %17 : vector<1x128x128xbf16> to vector<128x128xbf16>
    %cst_11 = arith.constant dense<0.000000e+00> : vector<64x128xf32>
    %19 = tpu.matmul %16, %18, %cst_11 {dimension_numbers = #tpu.dot_dimension_numbers<[1], [0], [0], [1], [0, 0, 1, 1], [], []>} : vector<64x128xbf16>, vector<128x128xbf16>, vector<64x128xf32> -> vector<64x128xf32>
    %20 = arith.addf %15, %19 : vector<64x128xf32>
    %21 = vector.extract_strided_slice %5 {offsets = [3, 0], sizes = [64, 128], strides = [1, 1]} : vector<68x128xbf16> to vector<64x128xbf16>
    %c3 = arith.constant 3 : index
    %c0_12 = arith.constant 0 : index
    %c0_13 = arith.constant 0 : index
    %22 = vector.load %arg3[%c3, %c0_12, %c0_13] : memref<5x128x128xbf16, #tpu.memory_space<vmem>>, vector<1x128x128xbf16>
    %23 = vector.shape_cast %22 : vector<1x128x128xbf16> to vector<128x128xbf16>
    %cst_14 = arith.constant dense<0.000000e+00> : vector<64x128xf32>
    %24 = tpu.matmul %21, %23, %cst_14 {dimension_numbers = #tpu.dot_dimension_numbers<[1], [0], [0], [1], [0, 0, 1, 1], [], []>} : vector<64x128xbf16>, vector<128x128xbf16>, vector<64x128xf32> -> vector<64x128xf32>
    %25 = arith.addf %20, %24 : vector<64x128xf32>
    %26 = vector.extract_strided_slice %5 {offsets = [4, 0], sizes = [64, 128], strides = [1, 1]} : vector<68x128xbf16> to vector<64x128xbf16>
    %c4 = arith.constant 4 : index
    %c0_15 = arith.constant 0 : index
    %c0_16 = arith.constant 0 : index
    %27 = vector.load %arg3[%c4, %c0_15, %c0_16] : memref<5x128x128xbf16, #tpu.memory_space<vmem>>, vector<1x128x128xbf16>
    %28 = vector.shape_cast %27 : vector<1x128x128xbf16> to vector<128x128xbf16>
    %cst_17 = arith.constant dense<0.000000e+00> : vector<64x128xf32>
    %29 = tpu.matmul %26, %28, %cst_17 {dimension_numbers = #tpu.dot_dimension_numbers<[1], [0], [0], [1], [0, 0, 1, 1], [], []>} : vector<64x128xbf16>, vector<128x128xbf16>, vector<64x128xf32> -> vector<64x128xf32>
    %30 = arith.addf %25, %29 : vector<64x128xf32>
    %c0_18 = arith.constant 0 : index
    %c0_19 = arith.constant 0 : index
    %31 = vector.load %arg4[%c0_18, %c0_19] : memref<1x128xf32, #tpu.memory_space<vmem>>, vector<1x128xf32>
    %32 = vector.broadcast %31 : vector<1x128xf32> to vector<64x128xf32>
    %33 = arith.mulf %30, %32 : vector<64x128xf32>
    %c0_20 = arith.constant 0 : index
    %c0_21 = arith.constant 0 : index
    %34 = vector.load %arg5[%c0_20, %c0_21] : memref<1x128xf32, #tpu.memory_space<vmem>>, vector<1x128xf32>
    %35 = vector.broadcast %34 : vector<1x128xf32> to vector<64x128xf32>
    %36 = arith.addf %33, %35 : vector<64x128xf32>
    %37 = arith.truncf %36 : vector<64x128xf32> to vector<64x128xbf16>
    %c0_22 = arith.constant 0 : index
    %c0_23 = arith.constant 0 : index
    %c0_24 = arith.constant 0 : index
    %38 = vector.load %arg6[%c0_22, %c0_23, %c0_24] : memref<1x64x128xbf16, #tpu.memory_space<vmem>>, vector<1x64x128xbf16>
    %39 = vector.shape_cast %38 : vector<1x64x128xbf16> to vector<64x128xbf16>
    %40 = vector.shape_cast %37 : vector<64x128xbf16> to vector<1x64x128xbf16>
    tpu.vector_store %arg6[%c0_22, %c0_23, %c0_24], %40 {strides = array<i32>} : memref<1x64x128xbf16, #tpu.memory_space<vmem>>, vector<1x64x128xbf16>,
    return
  }
  func.func @transform_0(%arg0: i32, %arg1: i32) -> (i32, i32, i32, i32) {
    %c0_i32 = arith.constant 0 : i32
    %c0_i32_0 = arith.constant 0 : i32
    %c0_i32_1 = arith.constant 0 : i32
    %c0_i32_2 = arith.constant 0 : i32
    return %c0_i32, %arg0, %c0_i32_0, %c0_i32_1 : i32, i32, i32, i32
  }
  func.func @transform_1(%arg0: i32, %arg1: i32) -> (i32, i32, i32) {
    %c0_i32 = arith.constant 0 : i32
    %c0_i32_0 = arith.constant 0 : i32
    %c0_i32_1 = arith.constant 0 : i32
    %c0_i32_2 = arith.constant 0 : i32
    return %c0_i32, %c0_i32_0, %c0_i32_1 : i32, i32, i32
  }
  func.func @transform_2(%arg0: i32, %arg1: i32) -> (i32, i32) {
    %c0_i32 = arith.constant 0 : i32
    %c0_i32_0 = arith.constant 0 : i32
    %c0_i32_1 = arith.constant 0 : i32
    return %c0_i32, %c0_i32_0 : i32, i32
  }
  func.func @transform_3(%arg0: i32, %arg1: i32) -> (i32, i32) {
    %c0_i32 = arith.constant 0 : i32
    %c0_i32_0 = arith.constant 0 : i32
    %c0_i32_1 = arith.constant 0 : i32
    return %c0_i32, %c0_i32_0 : i32, i32
  }
  func.func @transform_4(%arg0: i32, %arg1: i32) -> (i32, i32, i32) {
    %c0_i32 = arith.constant 0 : i32
    %c0_i32_0 = arith.constant 0 : i32
    return %arg0, %arg1, %c0_i32 : i32, i32, i32
  }
}

module attributes {stable_mosaic.version = 11 : i64} {
  func.func @_conv_bn_kernel(%arg0: i32, %arg1: i32, %arg2: memref<1x1x68x128xbf16, #tpu.memory_space<vmem>>, %arg3: memref<5x128x128xbf16, #tpu.memory_space<vmem>>, %arg4: memref<1x128xf32, #tpu.memory_space<vmem>>, %arg5: memref<1x128xf32, #tpu.memory_space<vmem>>, %arg6: memref<1x64x128xbf16, #tpu.memory_space<vmem>>) attributes {dimension_semantics = [#tpu.dimension_semantics<parallel>, #tpu.dimension_semantics<parallel>], iteration_bounds = array<i64: 2, 1>, scalar_prefetch = 0 : i64, scratch_operands = 0 : i64, tpu.core_type = #tpu.core_type<tc>, window_params = [{transform_indices = @transform_0, window_bounds = array<i64: 1, 1, 68, 128>}, {pipeline_mode = #tpu.pipeline_mode<synchronous>, transform_indices = @transform_1, window_bounds = array<i64: 5, 128, 128>}, {pipeline_mode = #tpu.pipeline_mode<synchronous>, transform_indices = @transform_2, window_bounds = array<i64: 1, 128>}, {pipeline_mode = #tpu.pipeline_mode<synchronous>, transform_indices = @transform_3, window_bounds = array<i64: 1, 128>}, {transform_indices = @transform_4, window_bounds = array<i64: 1, 64, 128>}]} {
    %c64_i32 = arith.constant 64 : i32
    %0 = arith.muli %arg1, %c64_i32 : i32
    %1 = tpu.assume_multiple %0, 64 : i32
    %cst = arith.constant 0.000000e+00 : f32
    %2 = vector.broadcast %cst : f32 to vector<64x128xf32>
    %c0 = arith.constant 0 : index
    %c0_0 = arith.constant 0 : index
    %3 = arith.index_cast %1 : i32 to index
    %c0_1 = arith.constant 0 : index
    %4 = vector.load %arg2[%c0, %c0_0, %3, %c0_1] : memref<1x1x68x128xbf16, #tpu.memory_space<vmem>>, vector<1x1x68x128xbf16>
    %5 = vector.shape_cast %4 : vector<1x1x68x128xbf16> to vector<68x128xbf16>
    %6 = vector.extract_strided_slice %5 {offsets = [0, 0], sizes = [64, 128], strides = [1, 1]} : vector<68x128xbf16> to vector<64x128xbf16>
    %c0_2 = arith.constant 0 : index
    %c0_3 = arith.constant 0 : index
    %c0_4 = arith.constant 0 : index
    %7 = vector.load %arg3[%c0_2, %c0_3, %c0_4] : memref<5x128x128xbf16, #tpu.memory_space<vmem>>, vector<1x128x128xbf16>
    %8 = vector.shape_cast %7 : vector<1x128x128xbf16> to vector<128x128xbf16>
    %cst_5 = arith.constant dense<0.000000e+00> : vector<64x128xf32>
    %9 = tpu.matmul %6, %8, %cst_5 {dimension_numbers = #tpu.dot_dimension_numbers<[1], [0], [0], [1], [0, 0, 1, 1], [], []>} : vector<64x128xbf16>, vector<128x128xbf16>, vector<64x128xf32> -> vector<64x128xf32>
    %10 = arith.addf %2, %9 : vector<64x128xf32>
    %11 = vector.extract_strided_slice %5 {offsets = [1, 0], sizes = [64, 128], strides = [1, 1]} : vector<68x128xbf16> to vector<64x128xbf16>
    %c1 = arith.constant 1 : index
    %c0_6 = arith.constant 0 : index
    %c0_7 = arith.constant 0 : index
    %12 = vector.load %arg3[%c1, %c0_6, %c0_7] : memref<5x128x128xbf16, #tpu.memory_space<vmem>>, vector<1x128x128xbf16>
    %13 = vector.shape_cast %12 : vector<1x128x128xbf16> to vector<128x128xbf16>
    %cst_8 = arith.constant dense<0.000000e+00> : vector<64x128xf32>
    %14 = tpu.matmul %11, %13, %cst_8 {dimension_numbers = #tpu.dot_dimension_numbers<[1], [0], [0], [1], [0, 0, 1, 1], [], []>} : vector<64x128xbf16>, vector<128x128xbf16>, vector<64x128xf32> -> vector<64x128xf32>
    %15 = arith.addf %10, %14 : vector<64x128xf32>
    %16 = vector.extract_strided_slice %5 {offsets = [2, 0], sizes = [64, 128], strides = [1, 1]} : vector<68x128xbf16> to vector<64x128xbf16>
    %c2 = arith.constant 2 : index
    %c0_9 = arith.constant 0 : index
    %c0_10 = arith.constant 0 : index
    %17 = vector.load %arg3[%c2, %c0_9, %c0_10] : memref<5x128x128xbf16, #tpu.memory_space<vmem>>, vector<1x128x128xbf16>
    %18 = vector.shape_cast %17 : vector<1x128x128xbf16> to vector<128x128xbf16>
    %cst_11 = arith.constant dense<0.000000e+00> : vector<64x128xf32>
    %19 = tpu.matmul %16, %18, %cst_11 {dimension_numbers = #tpu.dot_dimension_numbers<[1], [0], [0], [1], [0, 0, 1, 1], [], []>} : vector<64x128xbf16>, vector<128x128xbf16>, vector<64x128xf32> -> vector<64x128xf32>
    %20 = arith.addf %15, %19 : vector<64x128xf32>
    %21 = vector.extract_strided_slice %5 {offsets = [3, 0], sizes = [64, 128], strides = [1, 1]} : vector<68x128xbf16> to vector<64x128xbf16>
    %c3 = arith.constant 3 : index
    %c0_12 = arith.constant 0 : index
    %c0_13 = arith.constant 0 : index
    %22 = vector.load %arg3[%c3, %c0_12, %c0_13] : memref<5x128x128xbf16, #tpu.memory_space<vmem>>, vector<1x128x128xbf16>
    %23 = vector.shape_cast %22 : vector<1x128x128xbf16> to vector<128x128xbf16>
    %cst_14 = arith.constant dense<0.000000e+00> : vector<64x128xf32>
    %24 = tpu.matmul %21, %23, %cst_14 {dimension_numbers = #tpu.dot_dimension_numbers<[1], [0], [0], [1], [0, 0, 1, 1], [], []>} : vector<64x128xbf16>, vector<128x128xbf16>, vector<64x128xf32> -> vector<64x128xf32>
    %25 = arith.addf %20, %24 : vector<64x128xf32>
    %26 = vector.extract_strided_slice %5 {offsets = [4, 0], sizes = [64, 128], strides = [1, 1]} : vector<68x128xbf16> to vector<64x128xbf16>
    %c4 = arith.constant 4 : index
    %c0_15 = arith.constant 0 : index
    %c0_16 = arith.constant 0 : index
    %27 = vector.load %arg3[%c4, %c0_15, %c0_16] : memref<5x128x128xbf16, #tpu.memory_space<vmem>>, vector<1x128x128xbf16>
    %28 = vector.shape_cast %27 : vector<1x128x128xbf16> to vector<128x128xbf16>
    %cst_17 = arith.constant dense<0.000000e+00> : vector<64x128xf32>
    %29 = tpu.matmul %26, %28, %cst_17 {dimension_numbers = #tpu.dot_dimension_numbers<[1], [0], [0], [1], [0, 0, 1, 1], [], []>} : vector<64x128xbf16>, vector<128x128xbf16>, vector<64x128xf32> -> vector<64x128xf32>
    %30 = arith.addf %25, %29 : vector<64x128xf32>
    %c0_18 = arith.constant 0 : index
    %c0_19 = arith.constant 0 : index
    %31 = vector.load %arg4[%c0_18, %c0_19] : memref<1x128xf32, #tpu.memory_space<vmem>>, vector<1x128xf32>
    %32 = vector.broadcast %31 : vector<1x128xf32> to vector<64x128xf32>
    %33 = arith.mulf %30, %32 : vector<64x128xf32>
    %c0_20 = arith.constant 0 : index
    %c0_21 = arith.constant 0 : index
    %34 = vector.load %arg5[%c0_20, %c0_21] : memref<1x128xf32, #tpu.memory_space<vmem>>, vector<1x128xf32>
    %35 = vector.broadcast %34 : vector<1x128xf32> to vector<64x128xf32>
    %36 = arith.addf %33, %35 : vector<64x128xf32>
    %cst_22 = arith.constant 0.000000e+00 : f32
    %37 = vector.broadcast %cst_22 : f32 to vector<64x128xf32>
    %38 = arith.maximumf %36, %37 : vector<64x128xf32>
    %39 = arith.truncf %38 : vector<64x128xf32> to vector<64x128xbf16>
    %c0_23 = arith.constant 0 : index
    %c0_24 = arith.constant 0 : index
    %c0_25 = arith.constant 0 : index
    %40 = vector.load %arg6[%c0_23, %c0_24, %c0_25] : memref<1x64x128xbf16, #tpu.memory_space<vmem>>, vector<1x64x128xbf16>
    %41 = vector.shape_cast %40 : vector<1x64x128xbf16> to vector<64x128xbf16>
    %42 = vector.shape_cast %39 : vector<64x128xbf16> to vector<1x64x128xbf16>
    tpu.vector_store %arg6[%c0_23, %c0_24, %c0_25], %42 {strides = array<i32>} : memref<1x64x128xbf16, #tpu.memory_space<vmem>>, vector<1x64x128xbf16>,
    return
  }
  func.func @transform_0(%arg0: i32, %arg1: i32) -> (i32, i32, i32, i32) {
    %c0_i32 = arith.constant 0 : i32
    %c0_i32_0 = arith.constant 0 : i32
    %c0_i32_1 = arith.constant 0 : i32
    %c0_i32_2 = arith.constant 0 : i32
    return %c0_i32, %arg0, %c0_i32_0, %c0_i32_1 : i32, i32, i32, i32
  }
  func.func @transform_1(%arg0: i32, %arg1: i32) -> (i32, i32, i32) {
    %c0_i32 = arith.constant 0 : i32
    %c0_i32_0 = arith.constant 0 : i32
    %c0_i32_1 = arith.constant 0 : i32
    %c0_i32_2 = arith.constant 0 : i32
    return %c0_i32, %c0_i32_0, %c0_i32_1 : i32, i32, i32
  }
  func.func @transform_2(%arg0: i32, %arg1: i32) -> (i32, i32) {
    %c0_i32 = arith.constant 0 : i32
    %c0_i32_0 = arith.constant 0 : i32
    %c0_i32_1 = arith.constant 0 : i32
    return %c0_i32, %c0_i32_0 : i32, i32
  }
  func.func @transform_3(%arg0: i32, %arg1: i32) -> (i32, i32) {
    %c0_i32 = arith.constant 0 : i32
    %c0_i32_0 = arith.constant 0 : i32
    %c0_i32_1 = arith.constant 0 : i32
    return %c0_i32, %c0_i32_0 : i32, i32
  }
  func.func @transform_4(%arg0: i32, %arg1: i32) -> (i32, i32, i32) {
    %c0_i32 = arith.constant 0 : i32
    %c0_i32_0 = arith.constant 0 : i32
    return %arg0, %arg1, %c0_i32 : i32, i32, i32
  }
}

module attributes {stable_mosaic.version = 11 : i64} {
  func.func @_maxpool_kernel(%arg0: i32, %arg1: i32, %arg2: memref<2x1x33x128xbf16, #tpu.memory_space<vmem>>, %arg3: memref<1x32x128xbf16, #tpu.memory_space<vmem>>) attributes {dimension_semantics = [#tpu.dimension_semantics<parallel>, #tpu.dimension_semantics<parallel>], iteration_bounds = array<i64: 2, 1>, scalar_prefetch = 0 : i64, scratch_operands = 0 : i64, tpu.core_type = #tpu.core_type<tc>, window_params = [{transform_indices = @transform_0, window_bounds = array<i64: 2, 1, 33, 128>}, {transform_indices = @transform_1, window_bounds = array<i64: 1, 32, 128>}]} {
    %c32_i32 = arith.constant 32 : i32
    %0 = arith.muli %arg1, %c32_i32 : i32
    %1 = tpu.assume_multiple %0, 32 : i32
    %c0 = arith.constant 0 : index
    %c0_0 = arith.constant 0 : index
    %2 = arith.index_cast %1 : i32 to index
    %c0_1 = arith.constant 0 : index
    %3 = vector.load %arg2[%c0, %c0_0, %2, %c0_1] : memref<2x1x33x128xbf16, #tpu.memory_space<vmem>>, vector<1x1x33x128xbf16>
    %4 = vector.shape_cast %3 : vector<1x1x33x128xbf16> to vector<33x128xbf16>
    %c1 = arith.constant 1 : index
    %c0_2 = arith.constant 0 : index
    %5 = arith.index_cast %1 : i32 to index
    %c0_3 = arith.constant 0 : index
    %6 = vector.load %arg2[%c1, %c0_2, %5, %c0_3] : memref<2x1x33x128xbf16, #tpu.memory_space<vmem>>, vector<1x1x32x128xbf16>
    %7 = vector.shape_cast %6 : vector<1x1x32x128xbf16> to vector<32x128xbf16>
    %8 = vector.extract_strided_slice %4 {offsets = [0, 0], sizes = [32, 128], strides = [1, 1]} : vector<33x128xbf16> to vector<32x128xbf16>
    %9 = arith.maximumf %8, %7 : vector<32x128xbf16>
    %10 = vector.extract_strided_slice %4 {offsets = [1, 0], sizes = [32, 128], strides = [1, 1]} : vector<33x128xbf16> to vector<32x128xbf16>
    %11 = arith.maximumf %9, %10 : vector<32x128xbf16>
    %c0_4 = arith.constant 0 : index
    %c0_5 = arith.constant 0 : index
    %c0_6 = arith.constant 0 : index
    %12 = vector.load %arg3[%c0_4, %c0_5, %c0_6] : memref<1x32x128xbf16, #tpu.memory_space<vmem>>, vector<1x32x128xbf16>
    %13 = vector.shape_cast %12 : vector<1x32x128xbf16> to vector<32x128xbf16>
    %14 = vector.shape_cast %11 : vector<32x128xbf16> to vector<1x32x128xbf16>
    tpu.vector_store %arg3[%c0_4, %c0_5, %c0_6], %14 {strides = array<i32>} : memref<1x32x128xbf16, #tpu.memory_space<vmem>>, vector<1x32x128xbf16>,
    return
  }
  func.func @transform_0(%arg0: i32, %arg1: i32) -> (i32, i32, i32, i32) {
    %c0_i32 = arith.constant 0 : i32
    %c0_i32_0 = arith.constant 0 : i32
    %c0_i32_1 = arith.constant 0 : i32
    %c0_i32_2 = arith.constant 0 : i32
    return %c0_i32, %arg0, %c0_i32_0, %c0_i32_1 : i32, i32, i32, i32
  }
  func.func @transform_1(%arg0: i32, %arg1: i32) -> (i32, i32, i32) {
    %c0_i32 = arith.constant 0 : i32
    %c0_i32_0 = arith.constant 0 : i32
    return %arg0, %arg1, %c0_i32 : i32, i32, i32
  }
}

module attributes {stable_mosaic.version = 11 : i64} {
  func.func @_conv_bn_kernel(%arg0: i32, %arg1: i32, %arg2: memref<2x1x17x128xbf16, #tpu.memory_space<vmem>>, %arg3: memref<3x128x128xbf16, #tpu.memory_space<vmem>>, %arg4: memref<1x128xf32, #tpu.memory_space<vmem>>, %arg5: memref<1x128xf32, #tpu.memory_space<vmem>>, %arg6: memref<1x16x128xbf16, #tpu.memory_space<vmem>>) attributes {dimension_semantics = [#tpu.dimension_semantics<parallel>, #tpu.dimension_semantics<parallel>], iteration_bounds = array<i64: 2, 1>, scalar_prefetch = 0 : i64, scratch_operands = 0 : i64, tpu.core_type = #tpu.core_type<tc>, window_params = [{transform_indices = @transform_0, window_bounds = array<i64: 2, 1, 17, 128>}, {pipeline_mode = #tpu.pipeline_mode<synchronous>, transform_indices = @transform_1, window_bounds = array<i64: 3, 128, 128>}, {pipeline_mode = #tpu.pipeline_mode<synchronous>, transform_indices = @transform_2, window_bounds = array<i64: 1, 128>}, {pipeline_mode = #tpu.pipeline_mode<synchronous>, transform_indices = @transform_3, window_bounds = array<i64: 1, 128>}, {transform_indices = @transform_4, window_bounds = array<i64: 1, 16, 128>}]} {
    %c16_i32 = arith.constant 16 : i32
    %0 = arith.muli %arg1, %c16_i32 : i32
    %1 = tpu.assume_multiple %0, 16 : i32
    %cst = arith.constant 0.000000e+00 : f32
    %2 = vector.broadcast %cst : f32 to vector<16x128xf32>
    %c0 = arith.constant 0 : index
    %c0_0 = arith.constant 0 : index
    %3 = arith.index_cast %1 : i32 to index
    %c0_1 = arith.constant 0 : index
    %4 = vector.load %arg2[%c0, %c0_0, %3, %c0_1] : memref<2x1x17x128xbf16, #tpu.memory_space<vmem>>, vector<1x1x17x128xbf16>
    %5 = vector.shape_cast %4 : vector<1x1x17x128xbf16> to vector<17x128xbf16>
    %6 = vector.extract_strided_slice %5 {offsets = [0, 0], sizes = [16, 128], strides = [1, 1]} : vector<17x128xbf16> to vector<16x128xbf16>
    %c0_2 = arith.constant 0 : index
    %c0_3 = arith.constant 0 : index
    %c0_4 = arith.constant 0 : index
    %7 = vector.load %arg3[%c0_2, %c0_3, %c0_4] : memref<3x128x128xbf16, #tpu.memory_space<vmem>>, vector<1x128x128xbf16>
    %8 = vector.shape_cast %7 : vector<1x128x128xbf16> to vector<128x128xbf16>
    %cst_5 = arith.constant dense<0.000000e+00> : vector<16x128xf32>
    %9 = tpu.matmul %6, %8, %cst_5 {dimension_numbers = #tpu.dot_dimension_numbers<[1], [0], [0], [1], [0, 0, 1, 1], [], []>} : vector<16x128xbf16>, vector<128x128xbf16>, vector<16x128xf32> -> vector<16x128xf32>
    %10 = arith.addf %2, %9 : vector<16x128xf32>
    %11 = vector.extract_strided_slice %5 {offsets = [1, 0], sizes = [16, 128], strides = [1, 1]} : vector<17x128xbf16> to vector<16x128xbf16>
    %c2 = arith.constant 2 : index
    %c0_6 = arith.constant 0 : index
    %c0_7 = arith.constant 0 : index
    %12 = vector.load %arg3[%c2, %c0_6, %c0_7] : memref<3x128x128xbf16, #tpu.memory_space<vmem>>, vector<1x128x128xbf16>
    %13 = vector.shape_cast %12 : vector<1x128x128xbf16> to vector<128x128xbf16>
    %cst_8 = arith.constant dense<0.000000e+00> : vector<16x128xf32>
    %14 = tpu.matmul %11, %13, %cst_8 {dimension_numbers = #tpu.dot_dimension_numbers<[1], [0], [0], [1], [0, 0, 1, 1], [], []>} : vector<16x128xbf16>, vector<128x128xbf16>, vector<16x128xf32> -> vector<16x128xf32>
    %15 = arith.addf %10, %14 : vector<16x128xf32>
    %c1 = arith.constant 1 : index
    %c0_9 = arith.constant 0 : index
    %16 = arith.index_cast %1 : i32 to index
    %c0_10 = arith.constant 0 : index
    %17 = vector.load %arg2[%c1, %c0_9, %16, %c0_10] : memref<2x1x17x128xbf16, #tpu.memory_space<vmem>>, vector<1x1x17x128xbf16>
    %18 = vector.shape_cast %17 : vector<1x1x17x128xbf16> to vector<17x128xbf16>
    %19 = vector.extract_strided_slice %18 {offsets = [0, 0], sizes = [16, 128], strides = [1, 1]} : vector<17x128xbf16> to vector<16x128xbf16>
    %c1_11 = arith.constant 1 : index
    %c0_12 = arith.constant 0 : index
    %c0_13 = arith.constant 0 : index
    %20 = vector.load %arg3[%c1_11, %c0_12, %c0_13] : memref<3x128x128xbf16, #tpu.memory_space<vmem>>, vector<1x128x128xbf16>
    %21 = vector.shape_cast %20 : vector<1x128x128xbf16> to vector<128x128xbf16>
    %cst_14 = arith.constant dense<0.000000e+00> : vector<16x128xf32>
    %22 = tpu.matmul %19, %21, %cst_14 {dimension_numbers = #tpu.dot_dimension_numbers<[1], [0], [0], [1], [0, 0, 1, 1], [], []>} : vector<16x128xbf16>, vector<128x128xbf16>, vector<16x128xf32> -> vector<16x128xf32>
    %23 = arith.addf %15, %22 : vector<16x128xf32>
    %c0_15 = arith.constant 0 : index
    %c0_16 = arith.constant 0 : index
    %24 = vector.load %arg4[%c0_15, %c0_16] : memref<1x128xf32, #tpu.memory_space<vmem>>, vector<1x128xf32>
    %25 = vector.broadcast %24 : vector<1x128xf32> to vector<16x128xf32>
    %26 = arith.mulf %23, %25 : vector<16x128xf32>
    %c0_17 = arith.constant 0 : index
    %c0_18 = arith.constant 0 : index
    %27 = vector.load %arg5[%c0_17, %c0_18] : memref<1x128xf32, #tpu.memory_space<vmem>>, vector<1x128xf32>
    %28 = vector.broadcast %27 : vector<1x128xf32> to vector<16x128xf32>
    %29 = arith.addf %26, %28 : vector<16x128xf32>
    %cst_19 = arith.constant 0.000000e+00 : f32
    %30 = vector.broadcast %cst_19 : f32 to vector<16x128xf32>
    %31 = arith.maximumf %29, %30 : vector<16x128xf32>
    %32 = arith.truncf %31 : vector<16x128xf32> to vector<16x128xbf16>
    %c0_20 = arith.constant 0 : index
    %c0_21 = arith.constant 0 : index
    %c0_22 = arith.constant 0 : index
    %33 = vector.load %arg6[%c0_20, %c0_21, %c0_22] : memref<1x16x128xbf16, #tpu.memory_space<vmem>>, vector<1x16x128xbf16>
    %34 = vector.shape_cast %33 : vector<1x16x128xbf16> to vector<16x128xbf16>
    %35 = vector.shape_cast %32 : vector<16x128xbf16> to vector<1x16x128xbf16>
    tpu.vector_store %arg6[%c0_20, %c0_21, %c0_22], %35 {strides = array<i32>} : memref<1x16x128xbf16, #tpu.memory_space<vmem>>, vector<1x16x128xbf16>,
    return
  }
  func.func @transform_0(%arg0: i32, %arg1: i32) -> (i32, i32, i32, i32) {
    %c0_i32 = arith.constant 0 : i32
    %c0_i32_0 = arith.constant 0 : i32
    %c0_i32_1 = arith.constant 0 : i32
    %c0_i32_2 = arith.constant 0 : i32
    return %c0_i32, %arg0, %c0_i32_0, %c0_i32_1 : i32, i32, i32, i32
  }
  func.func @transform_1(%arg0: i32, %arg1: i32) -> (i32, i32, i32) {
    %c0_i32 = arith.constant 0 : i32
    %c0_i32_0 = arith.constant 0 : i32
    %c0_i32_1 = arith.constant 0 : i32
    %c0_i32_2 = arith.constant 0 : i32
    return %c0_i32, %c0_i32_0, %c0_i32_1 : i32, i32, i32
  }
  func.func @transform_2(%arg0: i32, %arg1: i32) -> (i32, i32) {
    %c0_i32 = arith.constant 0 : i32
    %c0_i32_0 = arith.constant 0 : i32
    %c0_i32_1 = arith.constant 0 : i32
    return %c0_i32, %c0_i32_0 : i32, i32
  }
  func.func @transform_3(%arg0: i32, %arg1: i32) -> (i32, i32) {
    %c0_i32 = arith.constant 0 : i32
    %c0_i32_0 = arith.constant 0 : i32
    %c0_i32_1 = arith.constant 0 : i32
    return %c0_i32, %c0_i32_0 : i32, i32
  }
  func.func @transform_4(%arg0: i32, %arg1: i32) -> (i32, i32, i32) {
    %c0_i32 = arith.constant 0 : i32
    %c0_i32_0 = arith.constant 0 : i32
    return %arg0, %arg1, %c0_i32 : i32, i32, i32
  }
}

module attributes {stable_mosaic.version = 11 : i64} {
  func.func @_conv_bn_residual_kernel(%arg0: i32, %arg1: i32, %arg2: memref<1x1x18x128xbf16, #tpu.memory_space<vmem>>, %arg3: memref<1x1x17x128xbf16, #tpu.memory_space<vmem>>, %arg4: memref<3x128x128xbf16, #tpu.memory_space<vmem>>, %arg5: memref<128x128xbf16, #tpu.memory_space<vmem>>, %arg6: memref<1x128xf32, #tpu.memory_space<vmem>>, %arg7: memref<1x128xf32, #tpu.memory_space<vmem>>, %arg8: memref<1x128xf32, #tpu.memory_space<vmem>>, %arg9: memref<1x16x128xbf16, #tpu.memory_space<vmem>>) attributes {dimension_semantics = [#tpu.dimension_semantics<parallel>, #tpu.dimension_semantics<parallel>], iteration_bounds = array<i64: 2, 1>, scalar_prefetch = 0 : i64, scratch_operands = 0 : i64, tpu.core_type = #tpu.core_type<tc>, window_params = [{transform_indices = @transform_0, window_bounds = array<i64: 1, 1, 18, 128>}, {transform_indices = @transform_1, window_bounds = array<i64: 1, 1, 17, 128>}, {pipeline_mode = #tpu.pipeline_mode<synchronous>, transform_indices = @transform_2, window_bounds = array<i64: 3, 128, 128>}, {pipeline_mode = #tpu.pipeline_mode<synchronous>, transform_indices = @transform_3, window_bounds = array<i64: 128, 128>}, {pipeline_mode = #tpu.pipeline_mode<synchronous>, transform_indices = @transform_4, window_bounds = array<i64: 1, 128>}, {pipeline_mode = #tpu.pipeline_mode<synchronous>, transform_indices = @transform_5, window_bounds = array<i64: 1, 128>}, {pipeline_mode = #tpu.pipeline_mode<synchronous>, transform_indices = @transform_6, window_bounds = array<i64: 1, 128>}, {transform_indices = @transform_7, window_bounds = array<i64: 1, 16, 128>}]} {
    %c16_i32 = arith.constant 16 : i32
    %0 = arith.muli %arg1, %c16_i32 : i32
    %1 = tpu.assume_multiple %0, 16 : i32
    %c0 = arith.constant 0 : index
    %c0_0 = arith.constant 0 : index
    %2 = arith.index_cast %1 : i32 to index
    %c0_1 = arith.constant 0 : index
    %3 = vector.load %arg2[%c0, %c0_0, %2, %c0_1] : memref<1x1x18x128xbf16, #tpu.memory_space<vmem>>, vector<1x1x18x128xbf16>
    %4 = vector.shape_cast %3 : vector<1x1x18x128xbf16> to vector<18x128xbf16>
    %cst = arith.constant 0.000000e+00 : f32
    %5 = vector.broadcast %cst : f32 to vector<16x128xf32>
    %6 = vector.extract_strided_slice %4 {offsets = [0, 0], sizes = [16, 128], strides = [1, 1]} : vector<18x128xbf16> to vector<16x128xbf16>
    %c0_2 = arith.constant 0 : index
    %c0_3 = arith.constant 0 : index
    %c0_4 = arith.constant 0 : index
    %7 = vector.load %arg4[%c0_2, %c0_3, %c0_4] : memref<3x128x128xbf16, #tpu.memory_space<vmem>>, vector<1x128x128xbf16>
    %8 = vector.shape_cast %7 : vector<1x128x128xbf16> to vector<128x128xbf16>
    %cst_5 = arith.constant dense<0.000000e+00> : vector<16x128xf32>
    %9 = tpu.matmul %6, %8, %cst_5 {dimension_numbers = #tpu.dot_dimension_numbers<[1], [0], [0], [1], [0, 0, 1, 1], [], []>} : vector<16x128xbf16>, vector<128x128xbf16>, vector<16x128xf32> -> vector<16x128xf32>
    %10 = arith.addf %5, %9 : vector<16x128xf32>
    %11 = vector.extract_strided_slice %4 {offsets = [1, 0], sizes = [16, 128], strides = [1, 1]} : vector<18x128xbf16> to vector<16x128xbf16>
    %c1 = arith.constant 1 : index
    %c0_6 = arith.constant 0 : index
    %c0_7 = arith.constant 0 : index
    %12 = vector.load %arg4[%c1, %c0_6, %c0_7] : memref<3x128x128xbf16, #tpu.memory_space<vmem>>, vector<1x128x128xbf16>
    %13 = vector.shape_cast %12 : vector<1x128x128xbf16> to vector<128x128xbf16>
    %cst_8 = arith.constant dense<0.000000e+00> : vector<16x128xf32>
    %14 = tpu.matmul %11, %13, %cst_8 {dimension_numbers = #tpu.dot_dimension_numbers<[1], [0], [0], [1], [0, 0, 1, 1], [], []>} : vector<16x128xbf16>, vector<128x128xbf16>, vector<16x128xf32> -> vector<16x128xf32>
    %15 = arith.addf %10, %14 : vector<16x128xf32>
    %16 = vector.extract_strided_slice %4 {offsets = [2, 0], sizes = [16, 128], strides = [1, 1]} : vector<18x128xbf16> to vector<16x128xbf16>
    %c2 = arith.constant 2 : index
    %c0_9 = arith.constant 0 : index
    %c0_10 = arith.constant 0 : index
    %17 = vector.load %arg4[%c2, %c0_9, %c0_10] : memref<3x128x128xbf16, #tpu.memory_space<vmem>>, vector<1x128x128xbf16>
    %18 = vector.shape_cast %17 : vector<1x128x128xbf16> to vector<128x128xbf16>
    %cst_11 = arith.constant dense<0.000000e+00> : vector<16x128xf32>
    %19 = tpu.matmul %16, %18, %cst_11 {dimension_numbers = #tpu.dot_dimension_numbers<[1], [0], [0], [1], [0, 0, 1, 1], [], []>} : vector<16x128xbf16>, vector<128x128xbf16>, vector<16x128xf32> -> vector<16x128xf32>
    %20 = arith.addf %15, %19 : vector<16x128xf32>
    %c0_12 = arith.constant 0 : index
    %c0_13 = arith.constant 0 : index
    %21 = arith.index_cast %1 : i32 to index
    %c0_14 = arith.constant 0 : index
    %22 = vector.load %arg3[%c0_12, %c0_13, %21, %c0_14] : memref<1x1x17x128xbf16, #tpu.memory_space<vmem>>, vector<1x1x16x128xbf16>
    %23 = vector.shape_cast %22 : vector<1x1x16x128xbf16> to vector<16x128xbf16>
    %c0_15 = arith.constant 0 : index
    %c0_16 = arith.constant 0 : index
    %24 = vector.load %arg5[%c0_15, %c0_16] : memref<128x128xbf16, #tpu.memory_space<vmem>>, vector<128x128xbf16>
    %cst_17 = arith.constant dense<0.000000e+00> : vector<16x128xf32>
    %25 = tpu.matmul %23, %24, %cst_17 {dimension_numbers = #tpu.dot_dimension_numbers<[1], [0], [0], [1], [0, 0, 1, 1], [], []>} : vector<16x128xbf16>, vector<128x128xbf16>, vector<16x128xf32> -> vector<16x128xf32>
    %c0_18 = arith.constant 0 : index
    %c0_19 = arith.constant 0 : index
    %26 = vector.load %arg6[%c0_18, %c0_19] : memref<1x128xf32, #tpu.memory_space<vmem>>, vector<1x128xf32>
    %27 = vector.broadcast %26 : vector<1x128xf32> to vector<16x128xf32>
    %28 = arith.mulf %20, %27 : vector<16x128xf32>
    %c0_20 = arith.constant 0 : index
    %c0_21 = arith.constant 0 : index
    %29 = vector.load %arg7[%c0_20, %c0_21] : memref<1x128xf32, #tpu.memory_space<vmem>>, vector<1x128xf32>
    %30 = vector.broadcast %29 : vector<1x128xf32> to vector<16x128xf32>
    %31 = arith.mulf %25, %30 : vector<16x128xf32>
    %32 = arith.addf %28, %31 : vector<16x128xf32>
    %c0_22 = arith.constant 0 : index
    %c0_23 = arith.constant 0 : index
    %33 = vector.load %arg8[%c0_22, %c0_23] : memref<1x128xf32, #tpu.memory_space<vmem>>, vector<1x128xf32>
    %34 = vector.broadcast %33 : vector<1x128xf32> to vector<16x128xf32>
    %35 = arith.addf %32, %34 : vector<16x128xf32>
    %cst_24 = arith.constant 0.000000e+00 : f32
    %36 = vector.broadcast %cst_24 : f32 to vector<16x128xf32>
    %37 = arith.maximumf %35, %36 : vector<16x128xf32>
    %38 = arith.truncf %37 : vector<16x128xf32> to vector<16x128xbf16>
    %c0_25 = arith.constant 0 : index
    %c0_26 = arith.constant 0 : index
    %c0_27 = arith.constant 0 : index
    %39 = vector.load %arg9[%c0_25, %c0_26, %c0_27] : memref<1x16x128xbf16, #tpu.memory_space<vmem>>, vector<1x16x128xbf16>
    %40 = vector.shape_cast %39 : vector<1x16x128xbf16> to vector<16x128xbf16>
    %41 = vector.shape_cast %38 : vector<16x128xbf16> to vector<1x16x128xbf16>
    tpu.vector_store %arg9[%c0_25, %c0_26, %c0_27], %41 {strides = array<i32>} : memref<1x16x128xbf16, #tpu.memory_space<vmem>>, vector<1x16x128xbf16>,
    return
  }
  func.func @transform_0(%arg0: i32, %arg1: i32) -> (i32, i32, i32, i32) {
    %c0_i32 = arith.constant 0 : i32
    %c0_i32_0 = arith.constant 0 : i32
    %c0_i32_1 = arith.constant 0 : i32
    %c0_i32_2 = arith.constant 0 : i32
    return %c0_i32, %arg0, %c0_i32_0, %c0_i32_1 : i32, i32, i32, i32
  }
  func.func @transform_1(%arg0: i32, %arg1: i32) -> (i32, i32, i32, i32) {
    %c1_i32 = arith.constant 1 : i32
    %c0_i32 = arith.constant 0 : i32
    %c0_i32_0 = arith.constant 0 : i32
    %c0_i32_1 = arith.constant 0 : i32
    return %c1_i32, %arg0, %c0_i32, %c0_i32_0 : i32, i32, i32, i32
  }
  func.func @transform_2(%arg0: i32, %arg1: i32) -> (i32, i32, i32) {
    %c0_i32 = arith.constant 0 : i32
    %c0_i32_0 = arith.constant 0 : i32
    %c0_i32_1 = arith.constant 0 : i32
    %c0_i32_2 = arith.constant 0 : i32
    return %c0_i32, %c0_i32_0, %c0_i32_1 : i32, i32, i32
  }
  func.func @transform_3(%arg0: i32, %arg1: i32) -> (i32, i32) {
    %c0_i32 = arith.constant 0 : i32
    %c0_i32_0 = arith.constant 0 : i32
    %c0_i32_1 = arith.constant 0 : i32
    return %c0_i32, %c0_i32_0 : i32, i32
  }
  func.func @transform_4(%arg0: i32, %arg1: i32) -> (i32, i32) {
    %c0_i32 = arith.constant 0 : i32
    %c0_i32_0 = arith.constant 0 : i32
    %c0_i32_1 = arith.constant 0 : i32
    return %c0_i32, %c0_i32_0 : i32, i32
  }
  func.func @transform_5(%arg0: i32, %arg1: i32) -> (i32, i32) {
    %c0_i32 = arith.constant 0 : i32
    %c0_i32_0 = arith.constant 0 : i32
    %c0_i32_1 = arith.constant 0 : i32
    return %c0_i32, %c0_i32_0 : i32, i32
  }
  func.func @transform_6(%arg0: i32, %arg1: i32) -> (i32, i32) {
    %c0_i32 = arith.constant 0 : i32
    %c0_i32_0 = arith.constant 0 : i32
    %c0_i32_1 = arith.constant 0 : i32
    return %c0_i32, %c0_i32_0 : i32, i32
  }
  func.func @transform_7(%arg0: i32, %arg1: i32) -> (i32, i32, i32) {
    %c0_i32 = arith.constant 0 : i32
    %c0_i32_0 = arith.constant 0 : i32
    return %arg0, %arg1, %c0_i32 : i32, i32, i32
  }
}

module attributes {stable_mosaic.version = 11 : i64} {
  func.func @_gap_linear_kernel(%arg0: memref<2x4x128xbf16, #tpu.memory_space<vmem>>, %arg1: memref<128x128xf32, #tpu.memory_space<vmem>>, %arg2: memref<1x128xf32, #tpu.memory_space<vmem>>, %arg3: memref<2x128xf32, #tpu.memory_space<vmem>>, %arg4: memref<2x128xf32, #tpu.memory_space<vmem>>) attributes {dimension_semantics = [], scalar_prefetch = 0 : i64, scratch_operands = 0 : i64, tpu.core_type = #tpu.core_type<tc>} {
    %c0 = arith.constant 0 : index
    %c0_0 = arith.constant 0 : index
    %c0_1 = arith.constant 0 : index
    %0 = vector.load %arg0[%c0, %c0_0, %c0_1] : memref<2x4x128xbf16, #tpu.memory_space<vmem>>, vector<2x4x128xbf16>
    %1 = arith.extf %0 : vector<2x4x128xbf16> to vector<2x4x128xf32>
    %cst = arith.constant dense<0.000000e+00> : vector<2x128xf32>
    %2 = vector.multi_reduction <add>, %1, %cst [1] : vector<2x4x128xf32> to vector<2x128xf32>
    %cst_2 = arith.constant 4.000000e+00 : f32
    %3 = vector.broadcast %cst_2 : f32 to vector<2x128xf32>
    %4 = arith.divf %2, %3 : vector<2x128xf32>
    %c0_3 = arith.constant 0 : index
    %c0_4 = arith.constant 0 : index
    %5 = vector.load %arg1[%c0_3, %c0_4] : memref<128x128xf32, #tpu.memory_space<vmem>>, vector<128x128xf32>
    %cst_5 = arith.constant dense<0.000000e+00> : vector<2x128xf32>
    %6 = tpu.matmul %4, %5, %cst_5 {dimension_numbers = #tpu.dot_dimension_numbers<[1], [0], [0], [1], [0, 0, 1, 1], [], []>} : vector<2x128xf32>, vector<128x128xf32>, vector<2x128xf32> -> vector<2x128xf32>
    %c0_6 = arith.constant 0 : index
    %c0_7 = arith.constant 0 : index
    %7 = vector.load %arg2[%c0_6, %c0_7] : memref<1x128xf32, #tpu.memory_space<vmem>>, vector<1x128xf32>
    %8 = vector.broadcast %7 : vector<1x128xf32> to vector<2x128xf32>
    %9 = arith.addf %6, %8 : vector<2x128xf32>
    %c0_8 = arith.constant 0 : index
    %c0_9 = arith.constant 0 : index
    %10 = vector.load %arg3[%c0_8, %c0_9] : memref<2x128xf32, #tpu.memory_space<vmem>>, vector<2x128xf32>
    tpu.vector_store %arg3[%c0_8, %c0_9], %9 {strides = array<i32>} : memref<2x128xf32, #tpu.memory_space<vmem>>, vector<2x128xf32>,
    %c0_10 = arith.constant 0 : index
    %c0_11 = arith.constant 0 : index
    %11 = vector.load %arg4[%c0_10, %c0_11] : memref<2x128xf32, #tpu.memory_space<vmem>>, vector<2x128xf32>
    tpu.vector_store %arg4[%c0_10, %c0_11], %4 {strides = array<i32>} : memref<2x128xf32, #tpu.memory_space<vmem>>, vector<2x128xf32>,
    return
  }
}

</mosaic_0001>

<llo_original>
// kernel: proj_resnet_forward.12
$region0: #{proj_resnet_forward.12}
  #allocation0 [shape = 'u32[]', space=smem, size = 0x4, offset = 0x4, fixed_abs, tag = 'smem constant byte address 0x4 - core index']
  #allocation1 [shape = 'u32[144,128]{1,0:T(1,128)}', space=vmem, size = 0x12000, scoped, tag = 'internal scratch']
  %s0 = inlined_call_operand.vmem [shape: bf16[2,2,33,128], index: 0, kind: input, shape index: {}]
  %s1 = inlined_call_operand.vmem [shape: bf16[2,32,128], index: 1, kind: output, shape index: {}]
  %s2 = sld [smem:[#allocation0]]
  $region78: #{proj_resnet_forward.12} parent=0
    _
  %s4 = ssub.s32 1, %s2
  %s5 = scalar_select 0, %s4, %s2
  $region1: #{proj_resnet_forward.12} parent=0
    #allocation2 [shape = 'u8[40960]{0}', space=vmem, size = 0xa000, scoped, tag = 'input window, operand 0']
    loop: start=0, step=1, limit=4
    $region2: #{proj_resnet_forward.12} parent=1 // loop_pre_header
      _
    $region3: #{proj_resnet_forward.12} parent=1 // loop_header
      %s7 = sphi 0, %s11
      %p8 = scmp.ge.s32.totalorder %s7, 4
      %s14 = sphi 0, %s26
      %s15 = sphi 0, %s22
      %s16 = sphi 0, %s14
      %s17 = sphi 0, %s15
      %s18 = sphi 0, %s16
      %s19 = sphi 0, %s17
      %s29 = sphi 0, %s31
      %s32 = sphi 0, %s29
      %s33 = sphi 0, %s32
      %s49 = sphi 0, %s33
      %s57 = sphi 0, %s59
      %s60 = sphi 0, %s57
      %s61 = sphi 0, %s60
      %s77 = sphi 0, %s61
    $region4: #{proj_resnet_forward.12} parent=1 // loop_header_branch
      %10 = sbr.rel (%p8) target = $region8
    $region5: #{proj_resnet_forward.12} parent=1 // loop_body
      %s12 = ssub.s32 %s7, 1
      %s13 = ssub.s32 %s7, 2
      %s20 = sadd.s32 1, %s15
      %p21 = scmp.ge.s32.totalorder %s20, 1
      %s22 = scalar_select %p21, 0, %s20
      %s23 = sadd.s32 1, %s14
      %s24 = scalar_select %p21, %s23, %s14
      %p25 = scmp.ge.s32.totalorder %s24, 2
      %s26 = scalar_select %p25, 0, %s24
      %s27 = ssub.s32 %s14, %s26
      %p28 = scmp.eq.s32.totalorder %s27, 0
      %s30 = sadd.s32 %s29, 1
      %s31 = scalar_select %p28, %s29, %s30
      %p34 = pneg %p28
      %p35 = scmp.eq.s32.totalorder %s7, 1
      %p36 = por %p34, %p35
      %p37 = scmp.ne.s32.totalorder %s29, %s32
      %p38 = scmp.eq.s32.totalorder %s7, 0
      %p39 = por %p37, %p38
      %p40 = scmp.ne.s32.totalorder %s29, %s32
      %p41 = scmp.eq.s32.totalorder %s12, 1
      %p42 = por %p40, %p41
      %p43 = scmp.ne.s32.totalorder %s32, %s33
      %p44 = scmp.eq.s32.totalorder %s12, 0
      %p45 = por %p43, %p44
      %p46 = scmp.ne.s32.totalorder %s32, %s33
      %p47 = scmp.eq.s32.totalorder %s13, 1
      %p48 = por %p46, %p47
      %p50 = scmp.ne.s32.totalorder %s33, %s49
      %p51 = scmp.eq.s32.totalorder %s13, 0
      %p52 = por %p50, %p51
      %s53 = ssub.s32 %s14, %s26
      %s54 = ssub.s32 %s15, %s22
      %s55 = sor.u32 %s53, %s54
      %p56 = scmp.eq.s32.totalorder %s55, 0
      %s58 = sadd.s32 %s57, 1
      %s59 = scalar_select %p56, %s57, %s58
      %p62 = pneg %p56
      %p63 = scmp.eq.s32.totalorder %s7, 1
      %p64 = por %p62, %p63
      %p65 = scmp.ne.s32.totalorder %s57, %s60
      %p66 = scmp.eq.s32.totalorder %s7, 0
      %p67 = por %p65, %p66
      %p68 = scmp.ne.s32.totalorder %s57, %s60
      %p69 = scmp.eq.s32.totalorder %s12, 1
      %p70 = por %p68, %p69
      %p71 = scmp.ne.s32.totalorder %s60, %s61
      %p72 = scmp.eq.s32.totalorder %s12, 0
      %p73 = por %p71, %p72
      %p74 = scmp.ne.s32.totalorder %s60, %s61
      %p75 = scmp.eq.s32.totalorder %s13, 1
      %p76 = por %p74, %p75
      %p78 = scmp.ne.s32.totalorder %s61, %s77
      %p79 = scmp.eq.s32.totalorder %s13, 0
      %p80 = por %p78, %p79
      %p81 = scmp.le.s32.totalorder 1, %s7
      %p82 = scmp.lt.s32.totalorder %s7, 3
      %p83 = pnand %p81, %p82
      %p84 = pneg %p83
      // Predicated region
      $region9: #{proj_resnet_forward.12} parent=5 // pred_check
        _
      $region10: #{proj_resnet_forward.12} parent=5 // pred_check_branch
        %86 = sbr.rel (%p83) target = $region12
      $region11: #{proj_resnet_forward.12} parent=5 // pred_region
        %s87 = ssub.s32 %s7, 1
      $region12: #{proj_resnet_forward.12} parent=5 // pred_fallthru
        _
      %p88 = scmp.lt.s32.totalorder %s7, 2
      // Predicated region
      $region13: #{proj_resnet_forward.12} parent=5 // pred_check
        %p89 = pneg %p88
      $region14: #{proj_resnet_forward.12} parent=5 // pred_check_branch
        %91 = sbr.rel (%p89) target = $region16
      $region15: #{proj_resnet_forward.12} parent=5 // pred_region
        // Predicated region
        $region17: #{proj_resnet_forward.12} parent=15 // pred_check
          %p92 = pneg %p39
        $region18: #{proj_resnet_forward.12} parent=15 // pred_check_branch
          %94 = sbr.rel (%p92) target = $region20
        $region19: #{proj_resnet_forward.12} parent=15 // pred_region
          %s95 = sand.u32 %s29, 1
          %s96 = sand.u32 %s29, 1
          %s97 = smul.addr %s96, 40
          %s98 = scalar_lea.vmem [#allocation2], %s97
          %s99 = smul.addr %s14, 5
          %s100 = smul.addr %s99, 4
          %s101 = scalar_lea.vmem %s0, %s100
          // Predicated region
          $region21: #{proj_resnet_forward.12} parent=19 // pred_check
            _
          $region22: #{proj_resnet_forward.12} parent=19 // pred_check_branch
            %103 = sbr.rel (0) target = $region24
          $region23: #{proj_resnet_forward.12} parent=19 // pred_region
            // Predicated region
            $region25: #{proj_resnet_forward.12} parent=23 // pred_check
              _
            $region26: #{proj_resnet_forward.12} parent=23 // pred_check_branch
              %105 = sbr.rel target = $region28
            $region27: #{proj_resnet_forward.12} parent=23 // pred_region
              // Predicated region
              $region40: #{proj_resnet_forward.12} parent=27 // pred_check
                _
              $region41: #{proj_resnet_forward.12} parent=27 // pred_check_branch
                %138 = sbr.rel (0) target = $region43
              $region42: #{proj_resnet_forward.12} parent=27 // pred_region
                loop: start=0, step=1, limit=1
                $region44: #{proj_resnet_forward.12} parent=42 // loop_pre_header
                  _
                $region45: #{proj_resnet_forward.12} parent=42 // loop_header
                  %s140 = sphi 0, %s144
                  %p141 = scmp.ge.s32.totalorder %s140, 1
                  %s145 = sphi %s101, %s101
                  %s146 = sphi %s98, %s98
                $region46: #{proj_resnet_forward.12} parent=42 // loop_header_branch
                  %143 = sbr.rel (%p141) target = $region50
                $region47: #{proj_resnet_forward.12} parent=42 // loop_body
                  _
                $region48: #{proj_resnet_forward.12} parent=42 // loop_footer
                  %s144 = sadd.s32 1, %s140
                $region49: #{proj_resnet_forward.12} parent=42 // loop_footer_branch
                  %139 = sbr.rel target = $region45
                $region50: #{proj_resnet_forward.12} parent=42 // loop_exit
                  _
                loop: start=0, step=1, limit=1
                $region51: #{proj_resnet_forward.12} parent=42 // loop_pre_header
                  _
                $region52: #{proj_resnet_forward.12} parent=42 // loop_header
                  %s149 = sphi 0, %s153
                  %p150 = scmp.ge.s32.totalorder %s149, 1
                  %s154 = sphi %s101, %s101
                  %s155 = sphi %s98, %s98
                $region53: #{proj_resnet_forward.12} parent=42 // loop_header_branch
                  %152 = sbr.rel (%p150) target = $region57
                $region54: #{proj_resnet_forward.12} parent=42 // loop_body
                  %v156 = vld [vmem:[%s154] sm:$0xf]
                  %157 = vst [vmem:[%s155] sm:$0xf] %v156
                  %v158 = vld [vmem:[%s154 + $0x4] sm:$0xf]
                  %159 = vst [vmem:[%s155 + $0x4] sm:$0xf] %v158
                  %v160 = vld [vmem:[%s154 + $0x8] sm:$0xf]
                  %161 = vst [vmem:[%s155 + $0x8] sm:$0xf] %v160
                  %v162 = vld [vmem:[%s154 + $0xc] sm:$0xf]
                  %163 = vst [vmem:[%s155 + $0xc] sm:$0xf] %v162
                  %v164 = vld [vmem:[%s154 + $0x10] sm:$0xf]
                  %165 = vst [vmem:[%s155 + $0x10] sm:$0xf] %v164
                  %v166 = vld [vmem:[%s154 + $0x28] sm:$0xf]
                  %167 = vst [vmem:[%s155 + $0x14] sm:$0xf] %v166
                  %v168 = vld [vmem:[%s154 + $0x2c] sm:$0xf]
                  %169 = vst [vmem:[%s155 + $0x18] sm:$0xf] %v168
                  %v170 = vld [vmem:[%s154 + $0x30] sm:$0xf]
                  %171 = vst [vmem:[%s155 + $0x1c] sm:$0xf] %v170
                  %v172 = vld [vmem:[%s154 + $0x34] sm:$0xf]
                  %173 = vst [vmem:[%s155 + $0x20] sm:$0xf] %v172
                  %v174 = vld [vmem:[%s154 + $0x38] sm:$0xf]
                  %175 = vst [vmem:[%s155 + $0x24] sm:$0xf] %v174
                $region55: #{proj_resnet_forward.12} parent=42 // loop_footer
                  %s153 = sadd.s32 1, %s149
                $region56: #{proj_resnet_forward.12} parent=42 // loop_footer_branch
                  %148 = sbr.rel target = $region52
                $region57: #{proj_resnet_forward.12} parent=42 // loop_exit
                  _
              $region43: #{proj_resnet_forward.12} parent=27 // pred_fallthru
                _
            $region28: #{proj_resnet_forward.12} parent=23 // pred_fallthru
              _
            // Predicated region
            $region29: #{proj_resnet_forward.12} parent=23 // pred_check
              _
            $region30: #{proj_resnet_forward.12} parent=23 // pred_check_branch
              %107 = sbr.rel (0) target = $region32
            $region31: #{proj_resnet_forward.12} parent=23 // pred_region
              loop: start=0, step=1, limit=1
              $region33: #{proj_resnet_forward.12} parent=31 // loop_pre_header
                _
              $region34: #{proj_resnet_forward.12} parent=31 // loop_header
                %s110 = sphi 0, %s114
                %p111 = scmp.ge.s32.totalorder %s110, 1
                %s115 = sphi %s101, %s101
                %s116 = sphi %s98, %s98
              $region35: #{proj_resnet_forward.12} parent=31 // loop_header_branch
                %113 = sbr.rel (%p111) target = $region39
              $region36: #{proj_resnet_forward.12} parent=31 // loop_body
                %v117 = vld [vmem:[%s115] sm:$0xf]
                %118 = vst [vmem:[%s116] sm:$0xf] %v117
                %v119 = vld [vmem:[%s115 + $0x4] sm:$0xf]
                %120 = vst [vmem:[%s116 + $0x4] sm:$0xf] %v119
                %v121 = vld [vmem:[%s115 + $0x8] sm:$0xf]
                %122 = vst [vmem:[%s116 + $0x8] sm:$0xf] %v121
                %v123 = vld [vmem:[%s115 + $0xc] sm:$0xf]
                %124 = vst [vmem:[%s116 + $0xc] sm:$0xf] %v123
                %v125 = vld [vmem:[%s115 + $0x10] sm:$0xf]
                %126 = vst [vmem:[%s116 + $0x10] sm:$0xf] %v125
                %v127 = vld [vmem:[%s115 + $0x28] sm:$0xf]
                %128 = vst [vmem:[%s116 + $0x14] sm:$0xf] %v127
                %v129 = vld [vmem:[%s115 + $0x2c] sm:$0xf]
                %130 = vst [vmem:[%s116 + $0x18] sm:$0xf] %v129
                %v131 = vld [vmem:[%s115 + $0x30] sm:$0xf]
                %132 = vst [vmem:[%s116 + $0x1c] sm:$0xf] %v131
                %v133 = vld [vmem:[%s115 + $0x34] sm:$0xf]
                %134 = vst [vmem:[%s116 + $0x20] sm:$0xf] %v133
                %v135 = vld [vmem:[%s115 + $0x38] sm:$0xf]
                %136 = vst [vmem:[%s116 + $0x24] sm:$0xf] %v135
              $region37: #{proj_resnet_forward.12} parent=31 // loop_footer
                %s114 = sadd.s32 1, %s110
              $region38: #{proj_resnet_forward.12} parent=31 // loop_footer_branch
                %109 = sbr.rel target = $region34
              $region39: #{proj_resnet_forward.12} parent=31 // loop_exit
                _
            $region32: #{proj_resnet_forward.12} parent=23 // pred_fallthru
              _
          $region24: #{proj_resnet_forward.12} parent=19 // pred_fallthru
            _
          %176 = vnop
        $region20: #{proj_resnet_forward.12} parent=15 // pred_fallthru
          _
      $region16: #{proj_resnet_forward.12} parent=5 // pred_fallthru
        _
      %p177 = scmp.le.s32.totalorder 1, %s7
      %p178 = scmp.lt.s32.totalorder %s7, 3
      %p179 = pnand %p177, %p178
      %p180 = pneg %p179
      // Predicated region
      $region58: #{proj_resnet_forward.12} parent=5 // pred_check
        _
      $region59: #{proj_resnet_forward.12} parent=5 // pred_check_branch
        %182 = sbr.rel (%p179) target = $region61
      $region60: #{proj_resnet_forward.12} parent=5 // pred_region
        %s183 = ssub.s32 %s7, 1
        %s184 = sand.u32 %s32, 1
        %s185 = sand.u32 %s32, 1
        %s186 = smul.addr %s185, 40
        %s187 = scalar_lea.vmem [#allocation2], %s186
        // Predicated region
        $region62: #{proj_resnet_forward.12} parent=60 // pred_check
          %p188 = pneg %p45
        $region63: #{proj_resnet_forward.12} parent=60 // pred_check_branch
          %190 = sbr.rel (%p188) target = $region65
        $region64: #{proj_resnet_forward.12} parent=60 // pred_region
          _
        $region65: #{proj_resnet_forward.12} parent=60 // pred_fallthru
          _
        %s191 = sand.u32 %s32, 1
        %s192 = sand.u32 %s32, 1
        %s193 = smul.addr %s192, 40
        %s194 = scalar_lea.vmem [#allocation2], %s193
        %p195 = pneg %p45
        %p196 = pneg %p42
        %p197 = pneg %p73
        %p198 = pneg %p70
        %s199 = smul.u32 4, %s17
        %p200 = scmp.lt.s32.totalorder %s16, 1
        %s201 = scalar_select %p200, %s16, 1
        %p202 = scmp.lt.s32.totalorder %s199, 3
        %s203 = scalar_select %p202, %s199, 3
        %s204 = smul.addr %s201, 4
        %s205 = sadd.s32 %s203, %s204
        %s206 = smul.addr %s205, 4
        %s207 = scalar_lea.vmem %s1, %s206
        %s208 = smul.u32 4, %s17
        %p209 = scmp.lt.s32.totalorder %s16, 1
        %s210 = scalar_select %p209, %s16, 1
        %p211 = scmp.lt.s32.totalorder %s208, 3
        %s212 = scalar_select %p211, %s208, 3
        %s213 = smul.addr %s210, 4
        %s214 = sadd.s32 %s212, %s213
        %s215 = smul.addr %s214, 4
        %s216 = scalar_lea.vmem %s1, %s215
        %s217 = smul.u32 4, %s17
        %s218 = smul.u32 %s17, 32
        %s219 = sshra.s32 %s218, 3
        %s220 = sand.u32 %s218, 7
        %s221 = smul.addr %s219, 4
        %s222 = scalar_lea.vmem %s187, %s221 [#allocation2]
        %v223 = vld [vmem:[%s222] sm:$0xf]
        %v224 = vld [vmem:[%s222 + $0x4] sm:$0xf]
        %v225 = vld [vmem:[%s222 + $0x8] sm:$0xf]
        %v226 = vld [vmem:[%s222 + $0xc] sm:$0xf]
        %v227 = vld [vmem:[%s222 + $0x10] sm:$0x1]
        %s228 = sadd.s32 %s219, 5
        %s229 = smul.addr %s228, 4
        %s230 = scalar_lea.vmem %s187, %s229 [#allocation2]
        %v231 = vld [vmem:[%s230] sm:$0xf]
        %v232 = vld [vmem:[%s230 + $0x4] sm:$0xf]
        %v233 = vld [vmem:[%s230 + $0x8] sm:$0xf]
        %v234 = vld [vmem:[%s230 + $0xc] sm:$0xf]
        %v235 = vmax.bf16 %v223, %v231
        %v236 = vmax.bf16 %v224, %v232
        %v237 = vmax.bf16 %v225, %v233
        %v238 = vmax.bf16 %v226, %v234
        %vm239 = vsmask.f32 3328
        %vm240 = vsmask.f32 7440
        %vm241 = vmor %vm239, %vm240
        %v243 = vshrl.u32 %v223, 16
        %v245 = vrot.slane %v243, 4
        %v246 = vshll.u32 %v223, 16
        %v248 = vrot.slane %v246, 5
        %v249 = vor.u32 %v245, %v248
        %v250 = vrot.slane %v249, 4
        %v252 = vshll.u32 %v224, 16
        %v254 = vrot.slane %v252, 5
        %v255 = vsel %vm241, %v250, %v254
        %v256 = vshrl.u32 %v224, 16
        %v258 = vrot.slane %v256, 4
        %v259 = vor.u32 %v258, %v254
        %v260 = vrot.slane %v259, 4
        %v262 = vshll.u32 %v225, 16
        %v264 = vrot.slane %v262, 5
        %v265 = vsel %vm241, %v260, %v264
        %v266 = vshrl.u32 %v225, 16
        %v268 = vrot.slane %v266, 4
        %v269 = vor.u32 %v268, %v264
        %v270 = vrot.slane %v269, 4
        %v272 = vshll.u32 %v226, 16
        %v274 = vrot.slane %v272, 5
        %v275 = vsel %vm241, %v270, %v274
        %v276 = vshrl.u32 %v226, 16
        %v278 = vrot.slane %v276, 4
        %v279 = vor.u32 %v278, %v274
        %v280 = vrot.slane %v279, 4
        %v282 = vshll.u32 %v227, 16
        %v284 = vrot.slane %v282, 5
        %v285 = vsel %vm241, %v280, %v284
        %v290 = vmax.bf16 %v235, %v255
        %v291 = vmax.bf16 %v236, %v265
        %v292 = vmax.bf16 %v237, %v275
        %v293 = vmax.bf16 %v238, %v285
        %294 = vst [vmem:[%s216] sm:$0xf] %v290
        %295 = vst [vmem:[%s216 + $0x4] sm:$0xf] %v291
        %296 = vst [vmem:[%s216 + $0x8] sm:$0xf] %v292
        %297 = vst [vmem:[%s216 + $0xc] sm:$0xf] %v293
        %s298 = smul.u32 4, %s17
        %p299 = scmp.lt.s32.totalorder %s16, 1
        %s300 = scalar_select %p299, %s16, 1
        %p301 = scmp.lt.s32.totalorder %s298, 3
        %s302 = scalar_select %p301, %s298, 3
        %s303 = smul.addr %s300, 4
        %s304 = sadd.s32 %s302, %s303
        %s305 = smul.addr %s304, 4
        %s306 = scalar_lea.vmem %s1, %s305
        // Predicated region
        $region66: #{proj_resnet_forward.12} parent=60 // pred_check
          %p307 = pneg %p70
        $region67: #{proj_resnet_forward.12} parent=60 // pred_check_branch
          %309 = sbr.rel (%p307) target = $region69
        $region68: #{proj_resnet_forward.12} parent=60 // pred_region
          %s310 = smul.u32 4, %s17
        $region69: #{proj_resnet_forward.12} parent=60 // pred_fallthru
          _
      $region61: #{proj_resnet_forward.12} parent=5 // pred_fallthru
        _
      %p311 = scmp.le.s32.totalorder 2, %s7
      // Predicated region
      $region70: #{proj_resnet_forward.12} parent=5 // pred_check
        %p312 = pneg %p311
      $region71: #{proj_resnet_forward.12} parent=5 // pred_check_branch
        %314 = sbr.rel (%p312) target = $region73
      $region72: #{proj_resnet_forward.12} parent=5 // pred_region
        %s315 = ssub.s32 %s7, 2
        // Predicated region
        $region74: #{proj_resnet_forward.12} parent=72 // pred_check
          %p316 = pneg %p76
        $region75: #{proj_resnet_forward.12} parent=72 // pred_check_branch
          %318 = sbr.rel (%p316) target = $region77
        $region76: #{proj_resnet_forward.12} parent=72 // pred_region
          %s319 = smul.u32 4, %s19
          %p320 = scmp.lt.s32.totalorder %s18, 1
          %s321 = scalar_select %p320, %s18, 1
          %p322 = scmp.lt.s32.totalorder %s319, 3
          %s323 = scalar_select %p322, %s319, 3
          %s324 = smul.addr %s321, 4
          %s325 = sadd.s32 %s323, %s324
          %s326 = smul.addr %s325, 4
          %s327 = scalar_lea.vmem %s1, %s326
        $region77: #{proj_resnet_forward.12} parent=72 // pred_fallthru
          _
      $region73: #{proj_resnet_forward.12} parent=5 // pred_fallthru
        _
    $region6: #{proj_resnet_forward.12} parent=1 // loop_footer
      %s11 = sadd.s32 1, %s7
    $region7: #{proj_resnet_forward.12} parent=1 // loop_footer_branch
      %6 = sbr.rel target = $region3
    $region8: #{proj_resnet_forward.12} parent=1 // loop_exit
      _

// kernel: proj_resnet_forward.11
$region0: #{proj_resnet_forward.11}
  #allocation0 [shape = 'u32[]', space=smem, size = 0x4, offset = 0x4, fixed_abs, tag = 'smem constant byte address 0x4 - core index']
  #allocation1 [shape = 'u32[144,128]{1,0:T(1,128)}', space=vmem, size = 0x12000, scoped, tag = 'internal scratch']
  %s0 = inlined_call_operand.vmem [shape: bf16[1,2,68,128], index: 0, kind: input, shape index: {}]
  %s1 = inlined_call_operand.vmem [shape: bf16[5,128,128], index: 1, kind: input, shape index: {}]
  %s2 = inlined_call_operand.vmem [shape: f32[1,128], index: 2, kind: input, shape index: {}]
  %s3 = inlined_call_operand.vmem [shape: f32[1,128], index: 3, kind: input, shape index: {}]
  %s4 = inlined_call_operand.vmem [shape: bf16[2,64,128], index: 4, kind: output, shape index: {}]
  %s5 = sld [smem:[#allocation0]]
  $region49: #{proj_resnet_forward.11} parent=0
    _
  %s7 = ssub.s32 1, %s5
  %s8 = scalar_select 0, %s7, %s5
  loop: start=0, step=1, limit=4
  $region2: #{proj_resnet_forward.11} parent=0 // loop_pre_header
    _
  $region3: #{proj_resnet_forward.11} parent=0 // loop_header
    %s10 = sphi 0, %s14
    %p11 = scmp.ge.s32.totalorder %s10, 4
    %s17 = sphi 0, %s29
    %s18 = sphi 0, %s25
    %s19 = sphi 0, %s17
    %s20 = sphi 0, %s18
    %s21 = sphi 0, %s19
    %s22 = sphi 0, %s20
    %s32 = sphi 0, %s34
    %s35 = sphi 0, %s32
    %s36 = sphi 0, %s35
    %s52 = sphi 0, %s36
    %s56 = sphi 0, %s56
    %s58 = sphi 0, %s56
    %s59 = sphi 0, %s58
    %s73 = sphi 0, %s59
    %s77 = sphi 0, %s77
    %s79 = sphi 0, %s77
    %s80 = sphi 0, %s79
    %s94 = sphi 0, %s80
    %s98 = sphi 0, %s98
    %s100 = sphi 0, %s98
    %s101 = sphi 0, %s100
    %s115 = sphi 0, %s101
    %s123 = sphi 0, %s125
    %s126 = sphi 0, %s123
    %s127 = sphi 0, %s126
    %s143 = sphi 0, %s127
  $region4: #{proj_resnet_forward.11} parent=0 // loop_header_branch
    %13 = sbr.rel (%p11) target = $region8
  $region5: #{proj_resnet_forward.11} parent=0 // loop_body
    %s15 = ssub.s32 %s10, 1
    %s16 = ssub.s32 %s10, 2
    %s23 = sadd.s32 1, %s18
    %p24 = scmp.ge.s32.totalorder %s23, 1
    %s25 = scalar_select %p24, 0, %s23
    %s26 = sadd.s32 1, %s17
    %s27 = scalar_select %p24, %s26, %s17
    %p28 = scmp.ge.s32.totalorder %s27, 2
    %s29 = scalar_select %p28, 0, %s27
    %s30 = ssub.s32 %s17, %s29
    %p31 = scmp.eq.s32.totalorder %s30, 0
    %s33 = sadd.s32 %s32, 1
    %s34 = scalar_select %p31, %s32, %s33
    %p37 = pneg %p31
    %p38 = scmp.eq.s32.totalorder %s10, 1
    %p39 = por %p37, %p38
    %p40 = scmp.ne.s32.totalorder %s32, %s35
    %p41 = scmp.eq.s32.totalorder %s10, 0
    %p42 = por %p40, %p41
    %p43 = scmp.ne.s32.totalorder %s32, %s35
    %p44 = scmp.eq.s32.totalorder %s15, 1
    %p45 = por %p43, %p44
    %p46 = scmp.ne.s32.totalorder %s35, %s36
    %p47 = scmp.eq.s32.totalorder %s15, 0
    %p48 = por %p46, %p47
    %p49 = scmp.ne.s32.totalorder %s35, %s36
    %p50 = scmp.eq.s32.totalorder %s16, 1
    %p51 = por %p49, %p50
    %p53 = scmp.ne.s32.totalorder %s36, %s52
    %p54 = scmp.eq.s32.totalorder %s16, 0
    %p55 = por %p53, %p54
    %s57 = sadd.s32 %s56, 1
    %p60 = scmp.eq.s32.totalorder %s10, 1
    %p61 = scmp.ne.s32.totalorder %s56, %s58
    %p62 = scmp.eq.s32.totalorder %s10, 0
    %p63 = por %p61, %p62
    %p64 = scmp.ne.s32.totalorder %s56, %s58
    %p65 = scmp.eq.s32.totalorder %s15, 1
    %p66 = por %p64, %p65
    %p67 = scmp.ne.s32.totalorder %s58, %s59
    %p68 = scmp.eq.s32.totalorder %s15, 0
    %p69 = por %p67, %p68
    %p70 = scmp.ne.s32.totalorder %s58, %s59
    %p71 = scmp.eq.s32.totalorder %s16, 1
    %p72 = por %p70, %p71
    %p74 = scmp.ne.s32.totalorder %s59, %s73
    %p75 = scmp.eq.s32.totalorder %s16, 0
    %p76 = por %p74, %p75
    %s78 = sadd.s32 %s77, 1
    %p81 = scmp.eq.s32.totalorder %s10, 1
    %p82 = scmp.ne.s32.totalorder %s77, %s79
    %p83 = scmp.eq.s32.totalorder %s10, 0
    %p84 = por %p82, %p83
    %p85 = scmp.ne.s32.totalorder %s77, %s79
    %p86 = scmp.eq.s32.totalorder %s15, 1
    %p87 = por %p85, %p86
    %p88 = scmp.ne.s32.totalorder %s79, %s80
    %p89 = scmp.eq.s32.totalorder %s15, 0
    %p90 = por %p88, %p89
    %p91 = scmp.ne.s32.totalorder %s79, %s80
    %p92 = scmp.eq.s32.totalorder %s16, 1
    %p93 = por %p91, %p92
    %p95 = scmp.ne.s32.totalorder %s80, %s94
    %p96 = scmp.eq.s32.totalorder %s16, 0
    %p97 = por %p95, %p96
    %s99 = sadd.s32 %s98, 1
    %p102 = scmp.eq.s32.totalorder %s10, 1
    %p103 = scmp.ne.s32.totalorder %s98, %s100
    %p104 = scmp.eq.s32.totalorder %s10, 0
    %p105 = por %p103, %p104
    %p106 = scmp.ne.s32.totalorder %s98, %s100
    %p107 = scmp.eq.s32.totalorder %s15, 1
    %p108 = por %p106, %p107
    %p109 = scmp.ne.s32.totalorder %s100, %s101
    %p110 = scmp.eq.s32.totalorder %s15, 0
    %p111 = por %p109, %p110
    %p112 = scmp.ne.s32.totalorder %s100, %s101
    %p113 = scmp.eq.s32.totalorder %s16, 1
    %p114 = por %p112, %p113
    %p116 = scmp.ne.s32.totalorder %s101, %s115
    %p117 = scmp.eq.s32.totalorder %s16, 0
    %p118 = por %p116, %p117
    %s119 = ssub.s32 %s17, %s29
    %s120 = ssub.s32 %s18, %s25
    %s121 = sor.u32 %s119, %s120
    %p122 = scmp.eq.s32.totalorder %s121, 0
    %s124 = sadd.s32 %s123, 1
    %s125 = scalar_select %p122, %s123, %s124
    %p128 = pneg %p122
    %p129 = scmp.eq.s32.totalorder %s10, 1
    %p130 = por %p128, %p129
    %p131 = scmp.ne.s32.totalorder %s123, %s126
    %p132 = scmp.eq.s32.totalorder %s10, 0
    %p133 = por %p131, %p132
    %p134 = scmp.ne.s32.totalorder %s123, %s126
    %p135 = scmp.eq.s32.totalorder %s15, 1
    %p136 = por %p134, %p135
    %p137 = scmp.ne.s32.totalorder %s126, %s127
    %p138 = scmp.eq.s32.totalorder %s15, 0
    %p139 = por %p137, %p138
    %p140 = scmp.ne.s32.totalorder %s126, %s127
    %p141 = scmp.eq.s32.totalorder %s16, 1
    %p142 = por %p140, %p141
    %p144 = scmp.ne.s32.totalorder %s127, %s143
    %p145 = scmp.eq.s32.totalorder %s16, 0
    %p146 = por %p144, %p145
    %p147 = scmp.le.s32.totalorder 1, %s10
    %p148 = scmp.lt.s32.totalorder %s10, 3
    %p149 = pnand %p147, %p148
    %p150 = pneg %p149
    // Predicated region
    $region9: #{proj_resnet_forward.11} parent=5 // pred_check
      _
    $region10: #{proj_resnet_forward.11} parent=5 // pred_check_branch
      %152 = sbr.rel (%p149) target = $region12
    $region11: #{proj_resnet_forward.11} parent=5 // pred_region
      %s153 = ssub.s32 %s10, 1
      // Predicated region
      $region13: #{proj_resnet_forward.11} parent=11 // pred_check
        %p154 = pneg %p69
      $region14: #{proj_resnet_forward.11} parent=11 // pred_check_branch
        %156 = sbr.rel (%p154) target = $region16
      $region15: #{proj_resnet_forward.11} parent=11 // pred_region
        _
      $region16: #{proj_resnet_forward.11} parent=11 // pred_fallthru
        _
      // Predicated region
      $region17: #{proj_resnet_forward.11} parent=11 // pred_check
        %p157 = pneg %p90
      $region18: #{proj_resnet_forward.11} parent=11 // pred_check_branch
        %159 = sbr.rel (%p157) target = $region20
      $region19: #{proj_resnet_forward.11} parent=11 // pred_region
        _
      $region20: #{proj_resnet_forward.11} parent=11 // pred_fallthru
        _
      // Predicated region
      $region21: #{proj_resnet_forward.11} parent=11 // pred_check
        %p160 = pneg %p111
      $region22: #{proj_resnet_forward.11} parent=11 // pred_check_branch
        %162 = sbr.rel (%p160) target = $region24
      $region23: #{proj_resnet_forward.11} parent=11 // pred_region
        _
      $region24: #{proj_resnet_forward.11} parent=11 // pred_fallthru
        _
    $region12: #{proj_resnet_forward.11} parent=5 // pred_fallthru
      _
    %p163 = scmp.lt.s32.totalorder %s10, 2
    // Predicated region
    $region25: #{proj_resnet_forward.11} parent=5 // pred_check
      %p164 = pneg %p163
    $region26: #{proj_resnet_forward.11} parent=5 // pred_check_branch
      %166 = sbr.rel (%p164) target = $region28
    $region27: #{proj_resnet_forward.11} parent=5 // pred_region
      // Predicated region
      $region29: #{proj_resnet_forward.11} parent=27 // pred_check
        %p167 = pneg %p42
      $region30: #{proj_resnet_forward.11} parent=27 // pred_check_branch
        %169 = sbr.rel (%p167) target = $region32
      $region31: #{proj_resnet_forward.11} parent=27 // pred_region
        %p170 = scmp.lt.s32.totalorder %s17, 1
        %s171 = scalar_select %p170, %s17, 1
        %s172 = smul.addr %s171, 9
        %s173 = smul.addr %s172, 4
        %s174 = scalar_lea.vmem %s0, %s173
      $region32: #{proj_resnet_forward.11} parent=27 // pred_fallthru
        _
    $region28: #{proj_resnet_forward.11} parent=5 // pred_fallthru
      _
    %p175 = scmp.le.s32.totalorder 1, %s10
    %p176 = scmp.lt.s32.totalorder %s10, 3
    %p177 = pnand %p175, %p176
    %p178 = pneg %p177
    // Predicated region
    $region33: #{proj_resnet_forward.11} parent=5 // pred_check
      _
    $region34: #{proj_resnet_forward.11} parent=5 // pred_check_branch
      %180 = sbr.rel (%p177) target = $region36
    $region35: #{proj_resnet_forward.11} parent=5 // pred_region
      %s181 = ssub.s32 %s10, 1
      %p182 = scmp.lt.s32.totalorder %s19, 1
      %s183 = scalar_select %p182, %s19, 1
      %s184 = smul.addr %s183, 9
      %s185 = smul.addr %s184, 4
      %s186 = scalar_lea.vmem %s0, %s185
      %p187 = pneg %p48
      %p188 = pneg %p45
      %p189 = pneg %p69
      %p190 = pneg %p66
      %p191 = pneg %p90
      %p192 = pneg %p87
      %p193 = pneg %p111
      %p194 = pneg %p108
      %p195 = pneg %p139
      %p196 = pneg %p136
      %s197 = smul.u32 8, %s20
      %p198 = scmp.lt.s32.totalorder %s19, 1
      %s199 = scalar_select %p198, %s19, 1
      %p200 = scmp.lt.s32.totalorder %s197, 7
      %s201 = scalar_select %p200, %s197, 7
      %s202 = smul.addr %s199, 8
      %s203 = sadd.s32 %s201, %s202
      %s204 = smul.addr %s203, 4
      %s205 = scalar_lea.vmem %s4, %s204
      %p206 = scmp.lt.s32.totalorder %s19, 1
      %s207 = scalar_select %p206, %s19, 1
      %s208 = smul.addr %s207, 9
      %s209 = smul.addr %s208, 4
      %s210 = scalar_lea.vmem %s0, %s209
      %s211 = smul.u32 8, %s20
      %p212 = scmp.lt.s32.totalorder %s19, 1
      %s213 = scalar_select %p212, %s19, 1
      %p214 = scmp.lt.s32.totalorder %s211, 7
      %s215 = scalar_select %p214, %s211, 7
      %s216 = smul.addr %s213, 8
      %s217 = sadd.s32 %s215, %s216
      %s218 = smul.addr %s217, 4
      %s219 = scalar_lea.vmem %s4, %s218
      %s220 = smul.u32 8, %s20
      %s222 = smul.u32 %s20, 64
      %s223 = sshra.s32 %s222, 3
      %s224 = sand.u32 %s222, 7
      %s225 = smul.addr %s223, 4
      %s226 = scalar_lea.vmem %s210, %s225
      %v227 = vld [vmem:[%s226] sm:$0xf]
      %v228 = vld [vmem:[%s226 + $0x4] sm:$0xf]
      %v229 = vld [vmem:[%s226 + $0x8] sm:$0xf]
      %v230 = vld [vmem:[%s226 + $0xc] sm:$0xf]
      %v231 = vld [vmem:[%s226 + $0x10] sm:$0xf]
      %v232 = vld [vmem:[%s226 + $0x14] sm:$0xf]
      %v233 = vld [vmem:[%s226 + $0x18] sm:$0xf]
      %v234 = vld [vmem:[%s226 + $0x1c] sm:$0xf]
      %v235 = vld [vmem:[%s226 + $0x20] sm:$0x3]
      %v236 = vld [vmem:[%s1] sm:$0xf]
      %v237 = vld [vmem:[%s1 + $0x4] sm:$0xf]
      %v238 = vld [vmem:[%s1 + $0x8] sm:$0xf]
      %v239 = vld [vmem:[%s1 + $0xc] sm:$0xf]
      %v240 = vld [vmem:[%s1 + $0x10] sm:$0xf]
      %v241 = vld [vmem:[%s1 + $0x14] sm:$0xf]
      %v242 = vld [vmem:[%s1 + $0x18] sm:$0xf]
      %v243 = vld [vmem:[%s1 + $0x1c] sm:$0xf]
      %v244 = vld [vmem:[%s1 + $0x20] sm:$0xf]
      %v245 = vld [vmem:[%s1 + $0x24] sm:$0xf]
      %v246 = vld [vmem:[%s1 + $0x28] sm:$0xf]
      %v247 = vld [vmem:[%s1 + $0x2c] sm:$0xf]
      %v248 = vld [vmem:[%s1 + $0x30] sm:$0xf]
      %v249 = vld [vmem:[%s1 + $0x34] sm:$0xf]
      %v250 = vld [vmem:[%s1 + $0x38] sm:$0xf]
      %v251 = vld [vmem:[%s1 + $0x3c] sm:$0xf]
      %s252 = scalar_lea.vmem %s1, 64
      %v253 = vld [vmem:[%s252] sm:$0xf]
      %v254 = vld [vmem:[%s252 + $0x4] sm:$0xf]
      %v255 = vld [vmem:[%s252 + $0x8] sm:$0xf]
      %v256 = vld [vmem:[%s252 + $0xc] sm:$0xf]
      %v257 = vld [vmem:[%s252 + $0x10] sm:$0xf]
      %v258 = vld [vmem:[%s252 + $0x14] sm:$0xf]
      %v259 = vld [vmem:[%s252 + $0x18] sm:$0xf]
      %v260 = vld [vmem:[%s252 + $0x1c] sm:$0xf]
      %v261 = vld [vmem:[%s252 + $0x20] sm:$0xf]
      %v262 = vld [vmem:[%s252 + $0x24] sm:$0xf]
      %v263 = vld [vmem:[%s252 + $0x28] sm:$0xf]
      %v264 = vld [vmem:[%s252 + $0x2c] sm:$0xf]
      %v265 = vld [vmem:[%s252 + $0x30] sm:$0xf]
      %v266 = vld [vmem:[%s252 + $0x34] sm:$0xf]
      %v267 = vld [vmem:[%s252 + $0x38] sm:$0xf]
      %v268 = vld [vmem:[%s252 + $0x3c] sm:$0xf]
      %v278 = vunpack.c.l.b16 %v227
      %v279 = vunpack.c.l.b16 %v228
      %v280 = vunpack.c.l.b16 %v229
      %v281 = vunpack.c.l.b16 %v230
      %v282 = vunpack.c.l.b16 %v231
      %v283 = vunpack.c.l.b16 %v232
      %v284 = vunpack.c.l.b16 %v233
      %v285 = vunpack.c.l.b16 %v234
      %v286 = vunpack.c.l.b16 %v235
      %v287 = vpack.c.b16 %v279, %v278
      %v288 = vpack.c.b16 %v281, %v280
      %v289 = vpack.c.b16 %v283, %v282
      %v290 = vpack.c.b16 %v285, %v284
      %v291 = vpack.c.b16 %v286, %v286
      %vm292 = vsmask.f32 7424
      %v294 = vshrl.u32 %v287, 16
      %v296 = vshll.u32 %v287, 16
      %v298 = vrot.slane %v296, 1
      %v299 = vor.u32 %v294, %v298
      %v301 = vshll.u32 %v288, 16
      %v303 = vrot.slane %v301, 1
      %v304 = vsel %vm292, %v299, %v303
      %v305 = vshrl.u32 %v288, 16
      %v307 = vor.u32 %v305, %v303
      %v309 = vshll.u32 %v289, 16
      %v311 = vrot.slane %v309, 1
      %v312 = vsel %vm292, %v307, %v311
      %v313 = vshrl.u32 %v289, 16
      %v315 = vor.u32 %v313, %v311
      %v317 = vshll.u32 %v290, 16
      %v319 = vrot.slane %v317, 1
      %v320 = vsel %vm292, %v315, %v319
      %v321 = vshrl.u32 %v290, 16
      %v323 = vor.u32 %v321, %v319
      %v325 = vshll.u32 %v291, 16
      %v327 = vrot.slane %v325, 1
      %v328 = vsel %vm292, %v323, %v327
      %v349 = vunpack.c.l.b16 %v253
      %v350 = vunpack.c.l.b16 %v254
      %v351 = vunpack.c.l.b16 %v255
      %v352 = vunpack.c.l.b16 %v256
      %v353 = vunpack.c.l.b16 %v257
      %v354 = vunpack.c.l.b16 %v258
      %v355 = vunpack.c.l.b16 %v259
      %v356 = vunpack.c.l.b16 %v260
      %v357 = vunpack.c.l.b16 %v261
      %v358 = vunpack.c.l.b16 %v262
      %v359 = vunpack.c.l.b16 %v263
      %v360 = vunpack.c.l.b16 %v264
      %v361 = vunpack.c.l.b16 %v265
      %v362 = vunpack.c.l.b16 %v266
      %v363 = vunpack.c.l.b16 %v267
      %v364 = vunpack.c.l.b16 %v268
      %v365 = vpack.c.b16 %v350, %v349
      %v366 = vpack.c.b16 %v352, %v351
      %v367 = vpack.c.b16 %v354, %v353
      %v368 = vpack.c.b16 %v356, %v355
      %v369 = vpack.c.b16 %v358, %v357
      %v370 = vpack.c.b16 %v360, %v359
      %v371 = vpack.c.b16 %v362, %v361
      %v372 = vpack.c.b16 %v364, %v363
      %381 = vmatprep.subr.bf16.mxu0 0
      %382 = vmatpush1.bf16.msra.mxu0 %v365
      %383 = vmatprep.subr.bf16.mxu0 0
      %384 = vmatpush1.bf16.msra.mxu0 %v366
      %385 = vmatprep.subr.bf16.mxu0 0
      %386 = vmatpush1.bf16.msra.mxu0 %v367
      %387 = vmatprep.subr.bf16.mxu0 0
      %388 = vmatpush1.bf16.msra.mxu0 %v368
      %389 = vmatprep.subr.bf16.mxu0 0
      %390 = vmatpush1.bf16.msra.mxu0 %v369
      %391 = vmatprep.subr.bf16.mxu0 0
      %392 = vmatpush1.bf16.msra.mxu0 %v370
      %393 = vmatprep.subr.bf16.mxu0 0
      %394 = vmatpush1.bf16.msra.mxu0 %v371
      %395 = vmatprep.subr.bf16.mxu0 0
      %396 = vmatpush1.bf16.msra.mxu0 %v372
      %397 = vmatprep.subr.bf16.mxu0 0
      %398 = vmatpush1.bf16.msra.mxu0 0
      %399 = vmatprep.subr.bf16.mxu0 0
      %400 = vmatpush1.bf16.msra.mxu0 0
      %401 = vmatprep.subr.bf16.mxu0 0
      %402 = vmatpush1.bf16.msra.mxu0 0
      %403 = vmatprep.subr.bf16.mxu0 0
      %404 = vmatpush1.bf16.msra.mxu0 0
      %405 = vmatprep.subr.bf16.mxu0 0
      %406 = vmatpush1.bf16.msra.mxu0 0
      %407 = vmatprep.subr.bf16.mxu0 0
      %408 = vmatpush1.bf16.msra.mxu0 0
      %409 = vmatprep.subr.bf16.mxu0 0
      %410 = vmatpush1.bf16.msra.mxu0 0
      %411 = vmatprep.subr.bf16.mxu0 0
      %412 = vmatpush1.bf16.msra.mxu0 0
      %413 = vmatprep.mubr.bf16.mxu0 0
      %414 = vmatmul.mubr.bf16.gmra.mrb[0].mxu0 %v304
      %v415 = vpop.f32.mrb[0].mxu0
      %v416 = vadd.f32 0.0, %v415
      %v417 = vpop.f32.mrb[0].mxu0
      %v418 = vpop.f32.mrb[0].mxu0
      %v419 = vadd.f32 0.0, %v418
      %v420 = vpop.f32.mrb[0].mxu0
      %421 = vmatprep.mubr.bf16.mxu0 0
      %422 = vmatmul.mubr.bf16.gmra.mrb[0].mxu0 %v312
      %v423 = vpop.f32.mrb[0].mxu0
      %v424 = vadd.f32 0.0, %v423
      %v425 = vpop.f32.mrb[0].mxu0
      %v426 = vpop.f32.mrb[0].mxu0
      %v427 = vadd.f32 0.0, %v426
      %v428 = vpop.f32.mrb[0].mxu0
      %429 = vmatprep.mubr.bf16.mxu0 0
      %430 = vmatmul.mubr.bf16.gmra.mrb[0].mxu0 %v320
      %v431 = vpop.f32.mrb[0].mxu0
      %v432 = vadd.f32 0.0, %v431
      %v433 = vpop.f32.mrb[0].mxu0
      %v434 = vpop.f32.mrb[0].mxu0
      %v435 = vadd.f32 0.0, %v434
      %v436 = vpop.f32.mrb[0].mxu0
      %437 = vmatprep.mubr.bf16.mxu0 0
      %438 = vmatmul.mubr.bf16.gmra.mrb[0].mxu0 %v328
      %v439 = vpop.f32.mrb[0].mxu0
      %v440 = vadd.f32 0.0, %v439
      %v441 = vpop.f32.mrb[0].mxu0
      %v442 = vpop.f32.mrb[0].mxu0
      %v443 = vadd.f32 0.0, %v442
      %v444 = vpop.f32.mrb[0].mxu0
      %445 = vdwg.mxu0
      %v466 = vunpack.c.l.b16 %v236
      %v467 = vunpack.c.l.b16 %v237
      %v468 = vunpack.c.l.b16 %v238
      %v469 = vunpack.c.l.b16 %v239
      %v470 = vunpack.c.l.b16 %v240
      %v471 = vunpack.c.l.b16 %v241
      %v472 = vunpack.c.l.b16 %v242
      %v473 = vunpack.c.l.b16 %v243
      %v474 = vunpack.c.l.b16 %v244
      %v475 = vunpack.c.l.b16 %v245
      %v476 = vunpack.c.l.b16 %v246
      %v477 = vunpack.c.l.b16 %v247
      %v478 = vunpack.c.l.b16 %v248
      %v479 = vunpack.c.l.b16 %v249
      %v480 = vunpack.c.l.b16 %v250
      %v481 = vunpack.c.l.b16 %v251
      %v482 = vpack.c.b16 %v467, %v466
      %v483 = vpack.c.b16 %v469, %v468
      %v484 = vpack.c.b16 %v471, %v470
      %v485 = vpack.c.b16 %v473, %v472
      %v486 = vpack.c.b16 %v475, %v474
      %v487 = vpack.c.b16 %v477, %v476
      %v488 = vpack.c.b16 %v479, %v478
      %v489 = vpack.c.b16 %v481, %v480
      %498 = vmatprep.subr.bf16.mxu0 0
      %499 = vmatpush1.bf16.msra.mxu0 %v482
      %500 = vmatprep.subr.bf16.mxu0 0
      %501 = vmatpush1.bf16.msra.mxu0 %v483
      %502 = vmatprep.subr.bf16.mxu0 0
      %503 = vmatpush1.bf16.msra.mxu0 %v484
      %504 = vmatprep.subr.bf16.mxu0 0
      %505 = vmatpush1.bf16.msra.mxu0 %v485
      %506 = vmatprep.subr.bf16.mxu0 0
      %507 = vmatpush1.bf16.msra.mxu0 %v486
      %508 = vmatprep.subr.bf16.mxu0 0
      %509 = vmatpush1.bf16.msra.mxu0 %v487
      %510 = vmatprep.subr.bf16.mxu0 0
      %511 = vmatpush1.bf16.msra.mxu0 %v488
      %512 = vmatprep.subr.bf16.mxu0 0
      %513 = vmatpush1.bf16.msra.mxu0 %v489
      %514 = vmatprep.subr.bf16.mxu0 0
      %515 = vmatpush1.bf16.msra.mxu0 0
      %516 = vmatprep.subr.bf16.mxu0 0
      %517 = vmatpush1.bf16.msra.mxu0 0
      %518 = vmatprep.subr.bf16.mxu0 0
      %519 = vmatpush1.bf16.msra.mxu0 0
      %520 = vmatprep.subr.bf16.mxu0 0
      %521 = vmatpush1.bf16.msra.mxu0 0
      %522 = vmatprep.subr.bf16.mxu0 0
      %523 = vmatpush1.bf16.msra.mxu0 0
      %524 = vmatprep.subr.bf16.mxu0 0
      %525 = vmatpush1.bf16.msra.mxu0 0
      %526 = vmatprep.subr.bf16.mxu0 0
      %527 = vmatpush1.bf16.msra.mxu0 0
      %528 = vmatprep.subr.bf16.mxu0 0
      %529 = vmatpush1.bf16.msra.mxu0 0
      %530 = vmatprep.mubr.bf16.mxu0 0
      %531 = vmatmul.mubr.bf16.gmra.mrb[0].mxu0 %v287
      %v532 = vpop.f32.mrb[0].mxu0
      %v533 = vadd.f32 %v416, %v532
      %v534 = vpop.f32.mrb[0].mxu0
      %v535 = vpop.f32.mrb[0].mxu0
      %v536 = vadd.f32 %v419, %v535
      %v537 = vpop.f32.mrb[0].mxu0
      %538 = vmatprep.mubr.bf16.mxu0 0
      %539 = vmatmul.mubr.bf16.gmra.mrb[0].mxu0 %v288
      %v540 = vpop.f32.mrb[0].mxu0
      %v541 = vadd.f32 %v424, %v540
      %v542 = vpop.f32.mrb[0].mxu0
      %v543 = vpop.f32.mrb[0].mxu0
      %v544 = vadd.f32 %v427, %v543
      %v545 = vpop.f32.mrb[0].mxu0
      %546 = vmatprep.mubr.bf16.mxu0 0
      %547 = vmatmul.mubr.bf16.gmra.mrb[0].mxu0 %v289
      %v548 = vpop.f32.mrb[0].mxu0
      %v549 = vadd.f32 %v432, %v548
      %v550 = vpop.f32.mrb[0].mxu0
      %v551 = vpop.f32.mrb[0].mxu0
      %v552 = vadd.f32 %v435, %v551
      %v553 = vpop.f32.mrb[0].mxu0
      %554 = vmatprep.mubr.bf16.mxu0 0
      %555 = vmatmul.mubr.bf16.gmra.mrb[0].mxu0 %v290
      %v556 = vpop.f32.mrb[0].mxu0
      %v557 = vadd.f32 %v440, %v556
      %v558 = vpop.f32.mrb[0].mxu0
      %v559 = vpop.f32.mrb[0].mxu0
      %v560 = vadd.f32 %v443, %v559
      %v561 = vpop.f32.mrb[0].mxu0
      %562 = vdwg.mxu0
      %s563 = scalar_lea.vmem %s1, 128
      %v564 = vld [vmem:[%s563] sm:$0xf]
      %v565 = vld [vmem:[%s563 + $0x4] sm:$0xf]
      %v566 = vld [vmem:[%s563 + $0x8] sm:$0xf]
      %v567 = vld [vmem:[%s563 + $0xc] sm:$0xf]
      %v568 = vld [vmem:[%s563 + $0x10] sm:$0xf]
      %v569 = vld [vmem:[%s563 + $0x14] sm:$0xf]
      %v570 = vld [vmem:[%s563 + $0x18] sm:$0xf]
      %v571 = vld [vmem:[%s563 + $0x1c] sm:$0xf]
      %v572 = vld [vmem:[%s563 + $0x20] sm:$0xf]
      %v573 = vld [vmem:[%s563 + $0x24] sm:$0xf]
      %v574 = vld [vmem:[%s563 + $0x28] sm:$0xf]
      %v575 = vld [vmem:[%s563 + $0x2c] sm:$0xf]
      %v576 = vld [vmem:[%s563 + $0x30] sm:$0xf]
      %v577 = vld [vmem:[%s563 + $0x34] sm:$0xf]
      %v578 = vld [vmem:[%s563 + $0x38] sm:$0xf]
      %v579 = vld [vmem:[%s563 + $0x3c] sm:$0xf]
      %vm580 = vcmask 1046528
      %v581 = vrot.slane %v287, 1
      %v582 = vrot.slane %v288, 1
      %v583 = vsel %vm580, %v581, %v582
      %v584 = vrot.slane %v289, 1
      %v585 = vsel %vm580, %v582, %v584
      %v586 = vrot.slane %v290, 1
      %v587 = vsel %vm580, %v584, %v586
      %v588 = vrot.slane %v291, 1
      %v589 = vsel %vm580, %v586, %v588
      %v610 = vunpack.c.l.b16 %v564
      %v611 = vunpack.c.l.b16 %v565
      %v612 = vunpack.c.l.b16 %v566
      %v613 = vunpack.c.l.b16 %v567
      %v614 = vunpack.c.l.b16 %v568
      %v615 = vunpack.c.l.b16 %v569
      %v616 = vunpack.c.l.b16 %v570
      %v617 = vunpack.c.l.b16 %v571
      %v618 = vunpack.c.l.b16 %v572
      %v619 = vunpack.c.l.b16 %v573
      %v620 = vunpack.c.l.b16 %v574
      %v621 = vunpack.c.l.b16 %v575
      %v622 = vunpack.c.l.b16 %v576
      %v623 = vunpack.c.l.b16 %v577
      %v624 = vunpack.c.l.b16 %v578
      %v625 = vunpack.c.l.b16 %v579
      %v626 = vpack.c.b16 %v611, %v610
      %v627 = vpack.c.b16 %v613, %v612
      %v628 = vpack.c.b16 %v615, %v614
      %v629 = vpack.c.b16 %v617, %v616
      %v630 = vpack.c.b16 %v619, %v618
      %v631 = vpack.c.b16 %v621, %v620
      %v632 = vpack.c.b16 %v623, %v622
      %v633 = vpack.c.b16 %v625, %v624
      %642 = vmatprep.subr.bf16.mxu0 0
      %643 = vmatpush1.bf16.msra.mxu0 %v626
      %644 = vmatprep.subr.bf16.mxu0 0
      %645 = vmatpush1.bf16.msra.mxu0 %v627
      %646 = vmatprep.subr.bf16.mxu0 0
      %647 = vmatpush1.bf16.msra.mxu0 %v628
      %648 = vmatprep.subr.bf16.mxu0 0
      %649 = vmatpush1.bf16.msra.mxu0 %v629
      %650 = vmatprep.subr.bf16.mxu0 0
      %651 = vmatpush1.bf16.msra.mxu0 %v630
      %652 = vmatprep.subr.bf16.mxu0 0
      %653 = vmatpush1.bf16.msra.mxu0 %v631
      %654 = vmatprep.subr.bf16.mxu0 0
      %655 = vmatpush1.bf16.msra.mxu0 %v632
      %656 = vmatprep.subr.bf16.mxu0 0
      %657 = vmatpush1.bf16.msra.mxu0 %v633
      %658 = vmatprep.subr.bf16.mxu0 0
      %659 = vmatpush1.bf16.msra.mxu0 0
      %660 = vmatprep.subr.bf16.mxu0 0
      %661 = vmatpush1.bf16.msra.mxu0 0
      %662 = vmatprep.subr.bf16.mxu0 0
      %663 = vmatpush1.bf16.msra.mxu0 0
      %664 = vmatprep.subr.bf16.mxu0 0
      %665 = vmatpush1.bf16.msra.mxu0 0
      %666 = vmatprep.subr.bf16.mxu0 0
      %667 = vmatpush1.bf16.msra.mxu0 0
      %668 = vmatprep.subr.bf16.mxu0 0
      %669 = vmatpush1.bf16.msra.mxu0 0
      %670 = vmatprep.subr.bf16.mxu0 0
      %671 = vmatpush1.bf16.msra.mxu0 0
      %672 = vmatprep.subr.bf16.mxu0 0
      %673 = vmatpush1.bf16.msra.mxu0 0
      %674 = vmatprep.mubr.bf16.mxu0 0
      %675 = vmatmul.mubr.bf16.gmra.mrb[0].mxu0 %v583
      %v676 = vpop.f32.mrb[0].mxu0
      %v677 = vadd.f32 0.0, %v676
      %v678 = vpop.f32.mrb[0].mxu0
      %v679 = vpop.f32.mrb[0].mxu0
      %v680 = vadd.f32 0.0, %v679
      %v681 = vpop.f32.mrb[0].mxu0
      %682 = vmatprep.mubr.bf16.mxu0 0
      %683 = vmatmul.mubr.bf16.gmra.mrb[0].mxu0 %v585
      %v684 = vpop.f32.mrb[0].mxu0
      %v685 = vadd.f32 0.0, %v684
      %v686 = vpop.f32.mrb[0].mxu0
      %v687 = vpop.f32.mrb[0].mxu0
      %v688 = vadd.f32 0.0, %v687
      %v689 = vpop.f32.mrb[0].mxu0
      %690 = vmatprep.mubr.bf16.mxu0 0
      %691 = vmatmul.mubr.bf16.gmra.mrb[0].mxu0 %v587
      %v692 = vpop.f32.mrb[0].mxu0
      %v693 = vadd.f32 0.0, %v692
      %v694 = vpop.f32.mrb[0].mxu0
      %v695 = vpop.f32.mrb[0].mxu0
      %v696 = vadd.f32 0.0, %v695
      %v697 = vpop.f32.mrb[0].mxu0
      %698 = vmatprep.mubr.bf16.mxu0 0
      %699 = vmatmul.mubr.bf16.gmra.mrb[0].mxu0 %v589
      %v700 = vpop.f32.mrb[0].mxu0
      %v701 = vadd.f32 0.0, %v700
      %v702 = vpop.f32.mrb[0].mxu0
      %v703 = vpop.f32.mrb[0].mxu0
      %v704 = vadd.f32 0.0, %v703
      %v705 = vpop.f32.mrb[0].mxu0
      %706 = vdwg.mxu0
      %v707 = vadd.f32 %v533, %v677
      %v708 = vadd.f32 %v536, %v680
      %v709 = vadd.f32 %v541, %v685
      %v710 = vadd.f32 %v544, %v688
      %v711 = vadd.f32 %v549, %v693
      %v712 = vadd.f32 %v552, %v696
      %v713 = vadd.f32 %v557, %v701
      %v714 = vadd.f32 %v560, %v704
      %s715 = scalar_lea.vmem %s1, 192
      %v716 = vld [vmem:[%s715] sm:$0xf]
      %v717 = vld [vmem:[%s715 + $0x4] sm:$0xf]
      %v718 = vld [vmem:[%s715 + $0x8] sm:$0xf]
      %v719 = vld [vmem:[%s715 + $0xc] sm:$0xf]
      %v720 = vld [vmem:[%s715 + $0x10] sm:$0xf]
      %v721 = vld [vmem:[%s715 + $0x14] sm:$0xf]
      %v722 = vld [vmem:[%s715 + $0x18] sm:$0xf]
      %v723 = vld [vmem:[%s715 + $0x1c] sm:$0xf]
      %v724 = vld [vmem:[%s715 + $0x20] sm:$0xf]
      %v725 = vld [vmem:[%s715 + $0x24] sm:$0xf]
      %v726 = vld [vmem:[%s715 + $0x28] sm:$0xf]
      %v727 = vld [vmem:[%s715 + $0x2c] sm:$0xf]
      %v728 = vld [vmem:[%s715 + $0x30] sm:$0xf]
      %v729 = vld [vmem:[%s715 + $0x34] sm:$0xf]
      %v730 = vld [vmem:[%s715 + $0x38] sm:$0xf]
      %v731 = vld [vmem:[%s715 + $0x3c] sm:$0xf]
      %vm732 = vsmask.f32 6400
      %v733 = vrot.slane %v294, 1
      %v734 = vrot.slane %v296, 2
      %v735 = vor.u32 %v733, %v734
      %v736 = vrot.slane %v305, 1
      %v737 = vrot.slane %v301, 2
      %v738 = vor.u32 %v736, %v737
      %v739 = vsel %vm732, %v735, %v738
      %v740 = vrot.slane %v313, 1
      %v741 = vrot.slane %v309, 2
      %v742 = vor.u32 %v740, %v741
      %v743 = vsel %vm732, %v738, %v742
      %v744 = vrot.slane %v321, 1
      %v745 = vrot.slane %v317, 2
      %v746 = vor.u32 %v744, %v745
      %v747 = vsel %vm732, %v742, %v746
      %v748 = vshrl.u32 %v291, 16
      %v750 = vrot.slane %v748, 1
      %v751 = vrot.slane %v325, 2
      %v752 = vor.u32 %v750, %v751
      %v753 = vsel %vm732, %v746, %v752
      %v774 = vunpack.c.l.b16 %v716
      %v775 = vunpack.c.l.b16 %v717
      %v776 = vunpack.c.l.b16 %v718
      %v777 = vunpack.c.l.b16 %v719
      %v778 = vunpack.c.l.b16 %v720
      %v779 = vunpack.c.l.b16 %v721
      %v780 = vunpack.c.l.b16 %v722
      %v781 = vunpack.c.l.b16 %v723
      %v782 = vunpack.c.l.b16 %v724
      %v783 = vunpack.c.l.b16 %v725
      %v784 = vunpack.c.l.b16 %v726
      %v785 = vunpack.c.l.b16 %v727
      %v786 = vunpack.c.l.b16 %v728
      %v787 = vunpack.c.l.b16 %v729
      %v788 = vunpack.c.l.b16 %v730
      %v789 = vunpack.c.l.b16 %v731
      %v790 = vpack.c.b16 %v775, %v774
      %v791 = vpack.c.b16 %v777, %v776
      %v792 = vpack.c.b16 %v779, %v778
      %v793 = vpack.c.b16 %v781, %v780
      %v794 = vpack.c.b16 %v783, %v782
      %v795 = vpack.c.b16 %v785, %v784
      %v796 = vpack.c.b16 %v787, %v786
      %v797 = vpack.c.b16 %v789, %v788
      %806 = vmatprep.subr.bf16.mxu0 0
      %807 = vmatpush1.bf16.msra.mxu0 %v790
      %808 = vmatprep.subr.bf16.mxu0 0
      %809 = vmatpush1.bf16.msra.mxu0 %v791
      %810 = vmatprep.subr.bf16.mxu0 0
      %811 = vmatpush1.bf16.msra.mxu0 %v792
      %812 = vmatprep.subr.bf16.mxu0 0
      %813 = vmatpush1.bf16.msra.mxu0 %v793
      %814 = vmatprep.subr.bf16.mxu0 0
      %815 = vmatpush1.bf16.msra.mxu0 %v794
      %816 = vmatprep.subr.bf16.mxu0 0
      %817 = vmatpush1.bf16.msra.mxu0 %v795
      %818 = vmatprep.subr.bf16.mxu0 0
      %819 = vmatpush1.bf16.msra.mxu0 %v796
      %820 = vmatprep.subr.bf16.mxu0 0
      %821 = vmatpush1.bf16.msra.mxu0 %v797
      %822 = vmatprep.subr.bf16.mxu0 0
      %823 = vmatpush1.bf16.msra.mxu0 0
      %824 = vmatprep.subr.bf16.mxu0 0
      %825 = vmatpush1.bf16.msra.mxu0 0
      %826 = vmatprep.subr.bf16.mxu0 0
      %827 = vmatpush1.bf16.msra.mxu0 0
      %828 = vmatprep.subr.bf16.mxu0 0
      %829 = vmatpush1.bf16.msra.mxu0 0
      %830 = vmatprep.subr.bf16.mxu0 0
      %831 = vmatpush1.bf16.msra.mxu0 0
      %832 = vmatprep.subr.bf16.mxu0 0
      %833 = vmatpush1.bf16.msra.mxu0 0
      %834 = vmatprep.subr.bf16.mxu0 0
      %835 = vmatpush1.bf16.msra.mxu0 0
      %836 = vmatprep.subr.bf16.mxu0 0
      %837 = vmatpush1.bf16.msra.mxu0 0
      %838 = vmatprep.mubr.bf16.mxu0 0
      %839 = vmatmul.mubr.bf16.gmra.mrb[0].mxu0 %v739
      %v840 = vpop.f32.mrb[0].mxu0
      %v841 = vadd.f32 0.0, %v840
      %v842 = vpop.f32.mrb[0].mxu0
      %v843 = vpop.f32.mrb[0].mxu0
      %v844 = vadd.f32 0.0, %v843
      %v845 = vpop.f32.mrb[0].mxu0
      %846 = vmatprep.mubr.bf16.mxu0 0
      %847 = vmatmul.mubr.bf16.gmra.mrb[0].mxu0 %v743
      %v848 = vpop.f32.mrb[0].mxu0
      %v849 = vadd.f32 0.0, %v848
      %v850 = vpop.f32.mrb[0].mxu0
      %v851 = vpop.f32.mrb[0].mxu0
      %v852 = vadd.f32 0.0, %v851
      %v853 = vpop.f32.mrb[0].mxu0
      %854 = vmatprep.mubr.bf16.mxu0 0
      %855 = vmatmul.mubr.bf16.gmra.mrb[0].mxu0 %v747
      %v856 = vpop.f32.mrb[0].mxu0
      %v857 = vadd.f32 0.0, %v856
      %v858 = vpop.f32.mrb[0].mxu0
      %v859 = vpop.f32.mrb[0].mxu0
      %v860 = vadd.f32 0.0, %v859
      %v861 = vpop.f32.mrb[0].mxu0
      %862 = vmatprep.mubr.bf16.mxu0 0
      %863 = vmatmul.mubr.bf16.gmra.mrb[0].mxu0 %v753
      %v864 = vpop.f32.mrb[0].mxu0
      %v865 = vadd.f32 0.0, %v864
      %v866 = vpop.f32.mrb[0].mxu0
      %v867 = vpop.f32.mrb[0].mxu0
      %v868 = vadd.f32 0.0, %v867
      %v869 = vpop.f32.mrb[0].mxu0
      %870 = vdwg.mxu0
      %v871 = vadd.f32 %v707, %v841
      %v872 = vadd.f32 %v708, %v844
      %v873 = vadd.f32 %v709, %v849
      %v874 = vadd.f32 %v710, %v852
      %v875 = vadd.f32 %v711, %v857
      %v876 = vadd.f32 %v712, %v860
      %v877 = vadd.f32 %v713, %v865
      %v878 = vadd.f32 %v714, %v868
      %s879 = scalar_lea.vmem %s1, 256
      %v880 = vld [vmem:[%s879] sm:$0xf]
      %v881 = vld [vmem:[%s879 + $0x4] sm:$0xf]
      %v882 = vld [vmem:[%s879 + $0x8] sm:$0xf]
      %v883 = vld [vmem:[%s879 + $0xc] sm:$0xf]
      %v884 = vld [vmem:[%s879 + $0x10] sm:$0xf]
      %v885 = vld [vmem:[%s879 + $0x14] sm:$0xf]
      %v886 = vld [vmem:[%s879 + $0x18] sm:$0xf]
      %v887 = vld [vmem:[%s879 + $0x1c] sm:$0xf]
      %v888 = vld [vmem:[%s879 + $0x20] sm:$0xf]
      %v889 = vld [vmem:[%s879 + $0x24] sm:$0xf]
      %v890 = vld [vmem:[%s879 + $0x28] sm:$0xf]
      %v891 = vld [vmem:[%s879 + $0x2c] sm:$0xf]
      %v892 = vld [vmem:[%s879 + $0x30] sm:$0xf]
      %v893 = vld [vmem:[%s879 + $0x34] sm:$0xf]
      %v894 = vld [vmem:[%s879 + $0x38] sm:$0xf]
      %v895 = vld [vmem:[%s879 + $0x3c] sm:$0xf]
      %vm896 = vcmask 1045504
      %v897 = vrot.slane %v287, 2
      %v898 = vrot.slane %v288, 2
      %v899 = vsel %vm896, %v897, %v898
      %v900 = vrot.slane %v289, 2
      %v901 = vsel %vm896, %v898, %v900
      %v902 = vrot.slane %v290, 2
      %v903 = vsel %vm896, %v900, %v902
      %v904 = vrot.slane %v291, 2
      %v905 = vsel %vm896, %v902, %v904
      %v926 = vunpack.c.l.b16 %v880
      %v927 = vunpack.c.l.b16 %v881
      %v928 = vunpack.c.l.b16 %v882
      %v929 = vunpack.c.l.b16 %v883
      %v930 = vunpack.c.l.b16 %v884
      %v931 = vunpack.c.l.b16 %v885
      %v932 = vunpack.c.l.b16 %v886
      %v933 = vunpack.c.l.b16 %v887
      %v934 = vunpack.c.l.b16 %v888
      %v935 = vunpack.c.l.b16 %v889
      %v936 = vunpack.c.l.b16 %v890
      %v937 = vunpack.c.l.b16 %v891
      %v938 = vunpack.c.l.b16 %v892
      %v939 = vunpack.c.l.b16 %v893
      %v940 = vunpack.c.l.b16 %v894
      %v941 = vunpack.c.l.b16 %v895
      %v942 = vpack.c.b16 %v927, %v926
      %v943 = vpack.c.b16 %v929, %v928
      %v944 = vpack.c.b16 %v931, %v930
      %v945 = vpack.c.b16 %v933, %v932
      %v946 = vpack.c.b16 %v935, %v934
      %v947 = vpack.c.b16 %v937, %v936
      %v948 = vpack.c.b16 %v939, %v938
      %v949 = vpack.c.b16 %v941, %v940
      %958 = vmatprep.subr.bf16.mxu0 0
      %959 = vmatpush1.bf16.msra.mxu0 %v942
      %960 = vmatprep.subr.bf16.mxu0 0
      %961 = vmatpush1.bf16.msra.mxu0 %v943
      %962 = vmatprep.subr.bf16.mxu0 0
      %963 = vmatpush1.bf16.msra.mxu0 %v944
      %964 = vmatprep.subr.bf16.mxu0 0
      %965 = vmatpush1.bf16.msra.mxu0 %v945
      %966 = vmatprep.subr.bf16.mxu0 0
      %967 = vmatpush1.bf16.msra.mxu0 %v946
      %968 = vmatprep.subr.bf16.mxu0 0
      %969 = vmatpush1.bf16.msra.mxu0 %v947
      %970 = vmatprep.subr.bf16.mxu0 0
      %971 = vmatpush1.bf16.msra.mxu0 %v948
      %972 = vmatprep.subr.bf16.mxu0 0
      %973 = vmatpush1.bf16.msra.mxu0 %v949
      %974 = vmatprep.subr.bf16.mxu0 0
      %975 = vmatpush1.bf16.msra.mxu0 0
      %976 = vmatprep.subr.bf16.mxu0 0
      %977 = vmatpush1.bf16.msra.mxu0 0
      %978 = vmatprep.subr.bf16.mxu0 0
      %979 = vmatpush1.bf16.msra.mxu0 0
      %980 = vmatprep.subr.bf16.mxu0 0
      %981 = vmatpush1.bf16.msra.mxu0 0
      %982 = vmatprep.subr.bf16.mxu0 0
      %983 = vmatpush1.bf16.msra.mxu0 0
      %984 = vmatprep.subr.bf16.mxu0 0
      %985 = vmatpush1.bf16.msra.mxu0 0
      %986 = vmatprep.subr.bf16.mxu0 0
      %987 = vmatpush1.bf16.msra.mxu0 0
      %988 = vmatprep.subr.bf16.mxu0 0
      %989 = vmatpush1.bf16.msra.mxu0 0
      %990 = vmatprep.mubr.bf16.mxu0 0
      %991 = vmatmul.mubr.bf16.gmra.mrb[0].mxu0 %v899
      %v992 = vpop.f32.mrb[0].mxu0
      %v993 = vadd.f32 0.0, %v992
      %v994 = vpop.f32.mrb[0].mxu0
      %v995 = vpop.f32.mrb[0].mxu0
      %v996 = vadd.f32 0.0, %v995
      %v997 = vpop.f32.mrb[0].mxu0
      %998 = vmatprep.mubr.bf16.mxu0 0
      %999 = vmatmul.mubr.bf16.gmra.mrb[0].mxu0 %v901
      %v1000 = vpop.f32.mrb[0].mxu0
      %v1001 = vadd.f32 0.0, %v1000
      %v1002 = vpop.f32.mrb[0].mxu0
      %v1003 = vpop.f32.mrb[0].mxu0
      %v1004 = vadd.f32 0.0, %v1003
      %v1005 = vpop.f32.mrb[0].mxu0
      %1006 = vmatprep.mubr.bf16.mxu0 0
      %1007 = vmatmul.mubr.bf16.gmra.mrb[0].mxu0 %v903
      %v1008 = vpop.f32.mrb[0].mxu0
      %v1009 = vadd.f32 0.0, %v1008
      %v1010 = vpop.f32.mrb[0].mxu0
      %v1011 = vpop.f32.mrb[0].mxu0
      %v1012 = vadd.f32 0.0, %v1011
      %v1013 = vpop.f32.mrb[0].mxu0
      %1014 = vmatprep.mubr.bf16.mxu0 0
      %1015 = vmatmul.mubr.bf16.gmra.mrb[0].mxu0 %v905
      %v1016 = vpop.f32.mrb[0].mxu0
      %v1017 = vadd.f32 0.0, %v1016
      %v1018 = vpop.f32.mrb[0].mxu0
      %v1019 = vpop.f32.mrb[0].mxu0
      %v1020 = vadd.f32 0.0, %v1019
      %v1021 = vpop.f32.mrb[0].mxu0
      %1022 = vdwg.mxu0
      %v1023 = vadd.f32 %v871, %v993
      %v1024 = vadd.f32 %v872, %v996
      %v1025 = vadd.f32 %v873, %v1001
      %v1026 = vadd.f32 %v874, %v1004
      %v1027 = vadd.f32 %v875, %v1009
      %v1028 = vadd.f32 %v876, %v1012
      %v1029 = vadd.f32 %v877, %v1017
      %v1030 = vadd.f32 %v878, %v1020
      %v1031 = vld [vmem:[%s2] sm:$0x1]
      %v1033 = vlaneseq
      %v1034 = vshrl.u32 %v1033, 7
      %v1035 = vsub.s32 0, %v1034
      %v1036 = vrot.slane %v1031, %v1035
      %v1038 = vmul.f32 %v1023, %v1036
      %v1039 = vmul.f32 %v1024, %v1036
      %v1040 = vmul.f32 %v1025, %v1036
      %v1041 = vmul.f32 %v1026, %v1036
      %v1042 = vmul.f32 %v1027, %v1036
      %v1043 = vmul.f32 %v1028, %v1036
      %v1044 = vmul.f32 %v1029, %v1036
      %v1045 = vmul.f32 %v1030, %v1036
      %v1046 = vld [vmem:[%s3] sm:$0x1]
      %v1048 = vlaneseq
      %v1049 = vshrl.u32 %v1048, 7
      %v1050 = vsub.s32 0, %v1049
      %v1051 = vrot.slane %v1046, %v1050
      %v1053 = vadd.f32 %v1038, %v1051
      %v1054 = vadd.f32 %v1039, %v1051
      %v1055 = vadd.f32 %v1040, %v1051
      %v1056 = vadd.f32 %v1041, %v1051
      %v1057 = vadd.f32 %v1042, %v1051
      %v1058 = vadd.f32 %v1043, %v1051
      %v1059 = vadd.f32 %v1044, %v1051
      %v1060 = vadd.f32 %v1045, %v1051
      %v1061 = vmax.f32 %v1053, 0.0
      %v1062 = vmax.f32 %v1054, 0.0
      %v1063 = vmax.f32 %v1055, 0.0
      %v1064 = vmax.f32 %v1056, 0.0
      %v1065 = vmax.f32 %v1057, 0.0
      %v1066 = vmax.f32 %v1058, 0.0
      %v1067 = vmax.f32 %v1059, 0.0
      %v1068 = vmax.f32 %v1060, 0.0
      %v1069 = vpack.c.bf16 %v1062, %v1061
      %v1070 = vpack.c.bf16 %v1064, %v1063
      %v1071 = vpack.c.bf16 %v1066, %v1065
      %v1072 = vpack.c.bf16 %v1068, %v1067
      %v1077 = vunpack.c.l.b16 %v1069
      %v1078 = vunpack.c.h.b16 %v1069
      %v1079 = vunpack.c.l.b16 %v1070
      %v1080 = vunpack.c.h.b16 %v1070
      %v1081 = vunpack.c.l.b16 %v1071
      %v1082 = vunpack.c.h.b16 %v1071
      %v1083 = vunpack.c.l.b16 %v1072
      %v1084 = vunpack.c.h.b16 %v1072
      %v1085 = vpack.c.b16 %v1077, %v1077
      %v1086 = vpack.c.b16 %v1078, %v1078
      %v1087 = vpack.c.b16 %v1079, %v1079
      %v1088 = vpack.c.b16 %v1080, %v1080
      %v1089 = vpack.c.b16 %v1081, %v1081
      %v1090 = vpack.c.b16 %v1082, %v1082
      %v1091 = vpack.c.b16 %v1083, %v1083
      %v1092 = vpack.c.b16 %v1084, %v1084
      %1101 = vst [vmem:[%s219] sm:$0xf] %v1085
      %1102 = vst [vmem:[%s219 + $0x4] sm:$0xf] %v1086
      %1103 = vst [vmem:[%s219 + $0x8] sm:$0xf] %v1087
      %1104 = vst [vmem:[%s219 + $0xc] sm:$0xf] %v1088
      %1105 = vst [vmem:[%s219 + $0x10] sm:$0xf] %v1089
      %1106 = vst [vmem:[%s219 + $0x14] sm:$0xf] %v1090
      %1107 = vst [vmem:[%s219 + $0x18] sm:$0xf] %v1091
      %1108 = vst [vmem:[%s219 + $0x1c] sm:$0xf] %v1092
      %s1109 = smul.u32 8, %s20
      %p1110 = scmp.lt.s32.totalorder %s19, 1
      %s1111 = scalar_select %p1110, %s19, 1
      %p1112 = scmp.lt.s32.totalorder %s1109, 7
      %s1113 = scalar_select %p1112, %s1109, 7
      %s1114 = smul.addr %s1111, 8
      %s1115 = sadd.s32 %s1113, %s1114
      %s1116 = smul.addr %s1115, 4
      %s1117 = scalar_lea.vmem %s4, %s1116
      // Predicated region
      $region37: #{proj_resnet_forward.11} parent=35 // pred_check
        %p1118 = pneg %p136
      $region38: #{proj_resnet_forward.11} parent=35 // pred_check_branch
        %1120 = sbr.rel (%p1118) target = $region40
      $region39: #{proj_resnet_forward.11} parent=35 // pred_region
        %s1121 = smul.u32 8, %s20
      $region40: #{proj_resnet_forward.11} parent=35 // pred_fallthru
        _
    $region36: #{proj_resnet_forward.11} parent=5 // pred_fallthru
      _
    %p1122 = scmp.le.s32.totalorder 2, %s10
    // Predicated region
    $region41: #{proj_resnet_forward.11} parent=5 // pred_check
      %p1123 = pneg %p1122
    $region42: #{proj_resnet_forward.11} parent=5 // pred_check_branch
      %1125 = sbr.rel (%p1123) target = $region44
    $region43: #{proj_resnet_forward.11} parent=5 // pred_region
      %s1126 = ssub.s32 %s10, 2
      // Predicated region
      $region45: #{proj_resnet_forward.11} parent=43 // pred_check
        %p1127 = pneg %p142
      $region46: #{proj_resnet_forward.11} parent=43 // pred_check_branch
        %1129 = sbr.rel (%p1127) target = $region48
      $region47: #{proj_resnet_forward.11} parent=43 // pred_region
        %s1130 = smul.u32 8, %s22
        %p1131 = scmp.lt.s32.totalorder %s21, 1
        %s1132 = scalar_select %p1131, %s21, 1
        %p1133 = scmp.lt.s32.totalorder %s1130, 7
        %s1134 = scalar_select %p1133, %s1130, 7
        %s1135 = smul.addr %s1132, 8
        %s1136 = sadd.s32 %s1134, %s1135
        %s1137 = smul.addr %s1136, 4
        %s1138 = scalar_lea.vmem %s4, %s1137
      $region48: #{proj_resnet_forward.11} parent=43 // pred_fallthru
        _
    $region44: #{proj_resnet_forward.11} parent=5 // pred_fallthru
      _
  $region6: #{proj_resnet_forward.11} parent=0 // loop_footer
    %s14 = sadd.s32 1, %s10
  $region7: #{proj_resnet_forward.11} parent=0 // loop_footer_branch
    %9 = sbr.rel target = $region3
  $region8: #{proj_resnet_forward.11} parent=0 // loop_exit
    _

// kernel: proj_resnet_forward.10
$region0: #{proj_resnet_forward.10}
  #allocation0 [shape = 'u32[]', space=smem, size = 0x4, offset = 0x4, fixed_abs, tag = 'smem constant byte address 0x4 - core index']
  #allocation1 [shape = 'u32[144,128]{1,0:T(1,128)}', space=vmem, size = 0x12000, scoped, tag = 'internal scratch']
  %s0 = inlined_call_operand.vmem [shape: bf16[1,2,68,128], index: 0, kind: input, shape index: {}]
  %s1 = inlined_call_operand.vmem [shape: bf16[5,128,128], index: 1, kind: input, shape index: {}]
  %s2 = inlined_call_operand.vmem [shape: f32[1,128], index: 2, kind: input, shape index: {}]
  %s3 = inlined_call_operand.vmem [shape: f32[1,128], index: 3, kind: input, shape index: {}]
  %s4 = inlined_call_operand.vmem [shape: bf16[2,64,128], index: 4, kind: output, shape index: {}]
  %s5 = sld [smem:[#allocation0]]
  $region49: #{proj_resnet_forward.10} parent=0
    _
  %s7 = ssub.s32 1, %s5
  %s8 = scalar_select 0, %s7, %s5
  loop: start=0, step=1, limit=4
  $region2: #{proj_resnet_forward.10} parent=0 // loop_pre_header
    _
  $region3: #{proj_resnet_forward.10} parent=0 // loop_header
    %s10 = sphi 0, %s14
    %p11 = scmp.ge.s32.totalorder %s10, 4
    %s17 = sphi 0, %s29
    %s18 = sphi 0, %s25
    %s19 = sphi 0, %s17
    %s20 = sphi 0, %s18
    %s21 = sphi 0, %s19
    %s22 = sphi 0, %s20
    %s32 = sphi 0, %s34
    %s35 = sphi 0, %s32
    %s36 = sphi 0, %s35
    %s52 = sphi 0, %s36
    %s56 = sphi 0, %s56
    %s58 = sphi 0, %s56
    %s59 = sphi 0, %s58
    %s73 = sphi 0, %s59
    %s77 = sphi 0, %s77
    %s79 = sphi 0, %s77
    %s80 = sphi 0, %s79
    %s94 = sphi 0, %s80
    %s98 = sphi 0, %s98
    %s100 = sphi 0, %s98
    %s101 = sphi 0, %s100
    %s115 = sphi 0, %s101
    %s123 = sphi 0, %s125
    %s126 = sphi 0, %s123
    %s127 = sphi 0, %s126
    %s143 = sphi 0, %s127
  $region4: #{proj_resnet_forward.10} parent=0 // loop_header_branch
    %13 = sbr.rel (%p11) target = $region8
  $region5: #{proj_resnet_forward.10} parent=0 // loop_body
    %s15 = ssub.s32 %s10, 1
    %s16 = ssub.s32 %s10, 2
    %s23 = sadd.s32 1, %s18
    %p24 = scmp.ge.s32.totalorder %s23, 1
    %s25 = scalar_select %p24, 0, %s23
    %s26 = sadd.s32 1, %s17
    %s27 = scalar_select %p24, %s26, %s17
    %p28 = scmp.ge.s32.totalorder %s27, 2
    %s29 = scalar_select %p28, 0, %s27
    %s30 = ssub.s32 %s17, %s29
    %p31 = scmp.eq.s32.totalorder %s30, 0
    %s33 = sadd.s32 %s32, 1
    %s34 = scalar_select %p31, %s32, %s33
    %p37 = pneg %p31
    %p38 = scmp.eq.s32.totalorder %s10, 1
    %p39 = por %p37, %p38
    %p40 = scmp.ne.s32.totalorder %s32, %s35
    %p41 = scmp.eq.s32.totalorder %s10, 0
    %p42 = por %p40, %p41
    %p43 = scmp.ne.s32.totalorder %s32, %s35
    %p44 = scmp.eq.s32.totalorder %s15, 1
    %p45 = por %p43, %p44
    %p46 = scmp.ne.s32.totalorder %s35, %s36
    %p47 = scmp.eq.s32.totalorder %s15, 0
    %p48 = por %p46, %p47
    %p49 = scmp.ne.s32.totalorder %s35, %s36
    %p50 = scmp.eq.s32.totalorder %s16, 1
    %p51 = por %p49, %p50
    %p53 = scmp.ne.s32.totalorder %s36, %s52
    %p54 = scmp.eq.s32.totalorder %s16, 0
    %p55 = por %p53, %p54
    %s57 = sadd.s32 %s56, 1
    %p60 = scmp.eq.s32.totalorder %s10, 1
    %p61 = scmp.ne.s32.totalorder %s56, %s58
    %p62 = scmp.eq.s32.totalorder %s10, 0
    %p63 = por %p61, %p62
    %p64 = scmp.ne.s32.totalorder %s56, %s58
    %p65 = scmp.eq.s32.totalorder %s15, 1
    %p66 = por %p64, %p65
    %p67 = scmp.ne.s32.totalorder %s58, %s59
    %p68 = scmp.eq.s32.totalorder %s15, 0
    %p69 = por %p67, %p68
    %p70 = scmp.ne.s32.totalorder %s58, %s59
    %p71 = scmp.eq.s32.totalorder %s16, 1
    %p72 = por %p70, %p71
    %p74 = scmp.ne.s32.totalorder %s59, %s73
    %p75 = scmp.eq.s32.totalorder %s16, 0
    %p76 = por %p74, %p75
    %s78 = sadd.s32 %s77, 1
    %p81 = scmp.eq.s32.totalorder %s10, 1
    %p82 = scmp.ne.s32.totalorder %s77, %s79
    %p83 = scmp.eq.s32.totalorder %s10, 0
    %p84 = por %p82, %p83
    %p85 = scmp.ne.s32.totalorder %s77, %s79
    %p86 = scmp.eq.s32.totalorder %s15, 1
    %p87 = por %p85, %p86
    %p88 = scmp.ne.s32.totalorder %s79, %s80
    %p89 = scmp.eq.s32.totalorder %s15, 0
    %p90 = por %p88, %p89
    %p91 = scmp.ne.s32.totalorder %s79, %s80
    %p92 = scmp.eq.s32.totalorder %s16, 1
    %p93 = por %p91, %p92
    %p95 = scmp.ne.s32.totalorder %s80, %s94
    %p96 = scmp.eq.s32.totalorder %s16, 0
    %p97 = por %p95, %p96
    %s99 = sadd.s32 %s98, 1
    %p102 = scmp.eq.s32.totalorder %s10, 1
    %p103 = scmp.ne.s32.totalorder %s98, %s100
    %p104 = scmp.eq.s32.totalorder %s10, 0
    %p105 = por %p103, %p104
    %p106 = scmp.ne.s32.totalorder %s98, %s100
    %p107 = scmp.eq.s32.totalorder %s15, 1
    %p108 = por %p106, %p107
    %p109 = scmp.ne.s32.totalorder %s100, %s101
    %p110 = scmp.eq.s32.totalorder %s15, 0
    %p111 = por %p109, %p110
    %p112 = scmp.ne.s32.totalorder %s100, %s101
    %p113 = scmp.eq.s32.totalorder %s16, 1
    %p114 = por %p112, %p113
    %p116 = scmp.ne.s32.totalorder %s101, %s115
    %p117 = scmp.eq.s32.totalorder %s16, 0
    %p118 = por %p116, %p117
    %s119 = ssub.s32 %s17, %s29
    %s120 = ssub.s32 %s18, %s25
    %s121 = sor.u32 %s119, %s120
    %p122 = scmp.eq.s32.totalorder %s121, 0
    %s124 = sadd.s32 %s123, 1
    %s125 = scalar_select %p122, %s123, %s124
    %p128 = pneg %p122
    %p129 = scmp.eq.s32.totalorder %s10, 1
    %p130 = por %p128, %p129
    %p131 = scmp.ne.s32.totalorder %s123, %s126
    %p132 = scmp.eq.s32.totalorder %s10, 0
    %p133 = por %p131, %p132
    %p134 = scmp.ne.s32.totalorder %s123, %s126
    %p135 = scmp.eq.s32.totalorder %s15, 1
    %p136 = por %p134, %p135
    %p137 = scmp.ne.s32.totalorder %s126, %s127
    %p138 = scmp.eq.s32.totalorder %s15, 0
    %p139 = por %p137, %p138
    %p140 = scmp.ne.s32.totalorder %s126, %s127
    %p141 = scmp.eq.s32.totalorder %s16, 1
    %p142 = por %p140, %p141
    %p144 = scmp.ne.s32.totalorder %s127, %s143
    %p145 = scmp.eq.s32.totalorder %s16, 0
    %p146 = por %p144, %p145
    %p147 = scmp.le.s32.totalorder 1, %s10
    %p148 = scmp.lt.s32.totalorder %s10, 3
    %p149 = pnand %p147, %p148
    %p150 = pneg %p149
    // Predicated region
    $region9: #{proj_resnet_forward.10} parent=5 // pred_check
      _
    $region10: #{proj_resnet_forward.10} parent=5 // pred_check_branch
      %152 = sbr.rel (%p149) target = $region12
    $region11: #{proj_resnet_forward.10} parent=5 // pred_region
      %s153 = ssub.s32 %s10, 1
      // Predicated region
      $region13: #{proj_resnet_forward.10} parent=11 // pred_check
        %p154 = pneg %p69
      $region14: #{proj_resnet_forward.10} parent=11 // pred_check_branch
        %156 = sbr.rel (%p154) target = $region16
      $region15: #{proj_resnet_forward.10} parent=11 // pred_region
        _
      $region16: #{proj_resnet_forward.10} parent=11 // pred_fallthru
        _
      // Predicated region
      $region17: #{proj_resnet_forward.10} parent=11 // pred_check
        %p157 = pneg %p90
      $region18: #{proj_resnet_forward.10} parent=11 // pred_check_branch
        %159 = sbr.rel (%p157) target = $region20
      $region19: #{proj_resnet_forward.10} parent=11 // pred_region
        _
      $region20: #{proj_resnet_forward.10} parent=11 // pred_fallthru
        _
      // Predicated region
      $region21: #{proj_resnet_forward.10} parent=11 // pred_check
        %p160 = pneg %p111
      $region22: #{proj_resnet_forward.10} parent=11 // pred_check_branch
        %162 = sbr.rel (%p160) target = $region24
      $region23: #{proj_resnet_forward.10} parent=11 // pred_region
        _
      $region24: #{proj_resnet_forward.10} parent=11 // pred_fallthru
        _
    $region12: #{proj_resnet_forward.10} parent=5 // pred_fallthru
      _
    %p163 = scmp.lt.s32.totalorder %s10, 2
    // Predicated region
    $region25: #{proj_resnet_forward.10} parent=5 // pred_check
      %p164 = pneg %p163
    $region26: #{proj_resnet_forward.10} parent=5 // pred_check_branch
      %166 = sbr.rel (%p164) target = $region28
    $region27: #{proj_resnet_forward.10} parent=5 // pred_region
      // Predicated region
      $region29: #{proj_resnet_forward.10} parent=27 // pred_check
        %p167 = pneg %p42
      $region30: #{proj_resnet_forward.10} parent=27 // pred_check_branch
        %169 = sbr.rel (%p167) target = $region32
      $region31: #{proj_resnet_forward.10} parent=27 // pred_region
        %p170 = scmp.lt.s32.totalorder %s17, 1
        %s171 = scalar_select %p170, %s17, 1
        %s172 = smul.addr %s171, 9
        %s173 = smul.addr %s172, 4
        %s174 = scalar_lea.vmem %s0, %s173
      $region32: #{proj_resnet_forward.10} parent=27 // pred_fallthru
        _
    $region28: #{proj_resnet_forward.10} parent=5 // pred_fallthru
      _
    %p175 = scmp.le.s32.totalorder 1, %s10
    %p176 = scmp.lt.s32.totalorder %s10, 3
    %p177 = pnand %p175, %p176
    %p178 = pneg %p177
    // Predicated region
    $region33: #{proj_resnet_forward.10} parent=5 // pred_check
      _
    $region34: #{proj_resnet_forward.10} parent=5 // pred_check_branch
      %180 = sbr.rel (%p177) target = $region36
    $region35: #{proj_resnet_forward.10} parent=5 // pred_region
      %s181 = ssub.s32 %s10, 1
      %p182 = scmp.lt.s32.totalorder %s19, 1
      %s183 = scalar_select %p182, %s19, 1
      %s184 = smul.addr %s183, 9
      %s185 = smul.addr %s184, 4
      %s186 = scalar_lea.vmem %s0, %s185
      %p187 = pneg %p48
      %p188 = pneg %p45
      %p189 = pneg %p69
      %p190 = pneg %p66
      %p191 = pneg %p90
      %p192 = pneg %p87
      %p193 = pneg %p111
      %p194 = pneg %p108
      %p195 = pneg %p139
      %p196 = pneg %p136
      %s197 = smul.u32 8, %s20
      %p198 = scmp.lt.s32.totalorder %s19, 1
      %s199 = scalar_select %p198, %s19, 1
      %p200 = scmp.lt.s32.totalorder %s197, 7
      %s201 = scalar_select %p200, %s197, 7
      %s202 = smul.addr %s199, 8
      %s203 = sadd.s32 %s201, %s202
      %s204 = smul.addr %s203, 4
      %s205 = scalar_lea.vmem %s4, %s204
      %p206 = scmp.lt.s32.totalorder %s19, 1
      %s207 = scalar_select %p206, %s19, 1
      %s208 = smul.addr %s207, 9
      %s209 = smul.addr %s208, 4
      %s210 = scalar_lea.vmem %s0, %s209
      %s211 = smul.u32 8, %s20
      %p212 = scmp.lt.s32.totalorder %s19, 1
      %s213 = scalar_select %p212, %s19, 1
      %p214 = scmp.lt.s32.totalorder %s211, 7
      %s215 = scalar_select %p214, %s211, 7
      %s216 = smul.addr %s213, 8
      %s217 = sadd.s32 %s215, %s216
      %s218 = smul.addr %s217, 4
      %s219 = scalar_lea.vmem %s4, %s218
      %s220 = smul.u32 8, %s20
      %s222 = smul.u32 %s20, 64
      %s223 = sshra.s32 %s222, 3
      %s224 = sand.u32 %s222, 7
      %s225 = smul.addr %s223, 4
      %s226 = scalar_lea.vmem %s210, %s225
      %v227 = vld [vmem:[%s226] sm:$0xf]
      %v228 = vld [vmem:[%s226 + $0x4] sm:$0xf]
      %v229 = vld [vmem:[%s226 + $0x8] sm:$0xf]
      %v230 = vld [vmem:[%s226 + $0xc] sm:$0xf]
      %v231 = vld [vmem:[%s226 + $0x10] sm:$0xf]
      %v232 = vld [vmem:[%s226 + $0x14] sm:$0xf]
      %v233 = vld [vmem:[%s226 + $0x18] sm:$0xf]
      %v234 = vld [vmem:[%s226 + $0x1c] sm:$0xf]
      %v235 = vld [vmem:[%s226 + $0x20] sm:$0x3]
      %v236 = vld [vmem:[%s1] sm:$0xf]
      %v237 = vld [vmem:[%s1 + $0x4] sm:$0xf]
      %v238 = vld [vmem:[%s1 + $0x8] sm:$0xf]
      %v239 = vld [vmem:[%s1 + $0xc] sm:$0xf]
      %v240 = vld [vmem:[%s1 + $0x10] sm:$0xf]
      %v241 = vld [vmem:[%s1 + $0x14] sm:$0xf]
      %v242 = vld [vmem:[%s1 + $0x18] sm:$0xf]
      %v243 = vld [vmem:[%s1 + $0x1c] sm:$0xf]
      %v244 = vld [vmem:[%s1 + $0x20] sm:$0xf]
      %v245 = vld [vmem:[%s1 + $0x24] sm:$0xf]
      %v246 = vld [vmem:[%s1 + $0x28] sm:$0xf]
      %v247 = vld [vmem:[%s1 + $0x2c] sm:$0xf]
      %v248 = vld [vmem:[%s1 + $0x30] sm:$0xf]
      %v249 = vld [vmem:[%s1 + $0x34] sm:$0xf]
      %v250 = vld [vmem:[%s1 + $0x38] sm:$0xf]
      %v251 = vld [vmem:[%s1 + $0x3c] sm:$0xf]
      %s252 = scalar_lea.vmem %s1, 64
      %v253 = vld [vmem:[%s252] sm:$0xf]
      %v254 = vld [vmem:[%s252 + $0x4] sm:$0xf]
      %v255 = vld [vmem:[%s252 + $0x8] sm:$0xf]
      %v256 = vld [vmem:[%s252 + $0xc] sm:$0xf]
      %v257 = vld [vmem:[%s252 + $0x10] sm:$0xf]
      %v258 = vld [vmem:[%s252 + $0x14] sm:$0xf]
      %v259 = vld [vmem:[%s252 + $0x18] sm:$0xf]
      %v260 = vld [vmem:[%s252 + $0x1c] sm:$0xf]
      %v261 = vld [vmem:[%s252 + $0x20] sm:$0xf]
      %v262 = vld [vmem:[%s252 + $0x24] sm:$0xf]
      %v263 = vld [vmem:[%s252 + $0x28] sm:$0xf]
      %v264 = vld [vmem:[%s252 + $0x2c] sm:$0xf]
      %v265 = vld [vmem:[%s252 + $0x30] sm:$0xf]
      %v266 = vld [vmem:[%s252 + $0x34] sm:$0xf]
      %v267 = vld [vmem:[%s252 + $0x38] sm:$0xf]
      %v268 = vld [vmem:[%s252 + $0x3c] sm:$0xf]
      %v278 = vunpack.c.l.b16 %v227
      %v279 = vunpack.c.l.b16 %v228
      %v280 = vunpack.c.l.b16 %v229
      %v281 = vunpack.c.l.b16 %v230
      %v282 = vunpack.c.l.b16 %v231
      %v283 = vunpack.c.l.b16 %v232
      %v284 = vunpack.c.l.b16 %v233
      %v285 = vunpack.c.l.b16 %v234
      %v286 = vunpack.c.l.b16 %v235
      %v287 = vpack.c.b16 %v279, %v278
      %v288 = vpack.c.b16 %v281, %v280
      %v289 = vpack.c.b16 %v283, %v282
      %v290 = vpack.c.b16 %v285, %v284
      %v291 = vpack.c.b16 %v286, %v286
      %vm292 = vsmask.f32 7424
      %v294 = vshrl.u32 %v287, 16
      %v296 = vshll.u32 %v287, 16
      %v298 = vrot.slane %v296, 1
      %v299 = vor.u32 %v294, %v298
      %v301 = vshll.u32 %v288, 16
      %v303 = vrot.slane %v301, 1
      %v304 = vsel %vm292, %v299, %v303
      %v305 = vshrl.u32 %v288, 16
      %v307 = vor.u32 %v305, %v303
      %v309 = vshll.u32 %v289, 16
      %v311 = vrot.slane %v309, 1
      %v312 = vsel %vm292, %v307, %v311
      %v313 = vshrl.u32 %v289, 16
      %v315 = vor.u32 %v313, %v311
      %v317 = vshll.u32 %v290, 16
      %v319 = vrot.slane %v317, 1
      %v320 = vsel %vm292, %v315, %v319
      %v321 = vshrl.u32 %v290, 16
      %v323 = vor.u32 %v321, %v319
      %v325 = vshll.u32 %v291, 16
      %v327 = vrot.slane %v325, 1
      %v328 = vsel %vm292, %v323, %v327
      %v349 = vunpack.c.l.b16 %v253
      %v350 = vunpack.c.l.b16 %v254
      %v351 = vunpack.c.l.b16 %v255
      %v352 = vunpack.c.l.b16 %v256
      %v353 = vunpack.c.l.b16 %v257
      %v354 = vunpack.c.l.b16 %v258
      %v355 = vunpack.c.l.b16 %v259
      %v356 = vunpack.c.l.b16 %v260
      %v357 = vunpack.c.l.b16 %v261
      %v358 = vunpack.c.l.b16 %v262
      %v359 = vunpack.c.l.b16 %v263
      %v360 = vunpack.c.l.b16 %v264
      %v361 = vunpack.c.l.b16 %v265
      %v362 = vunpack.c.l.b16 %v266
      %v363 = vunpack.c.l.b16 %v267
      %v364 = vunpack.c.l.b16 %v268
      %v365 = vpack.c.b16 %v350, %v349
      %v366 = vpack.c.b16 %v352, %v351
      %v367 = vpack.c.b16 %v354, %v353
      %v368 = vpack.c.b16 %v356, %v355
      %v369 = vpack.c.b16 %v358, %v357
      %v370 = vpack.c.b16 %v360, %v359
      %v371 = vpack.c.b16 %v362, %v361
      %v372 = vpack.c.b16 %v364, %v363
      %381 = vmatprep.subr.bf16.mxu0 0
      %382 = vmatpush1.bf16.msra.mxu0 %v365
      %383 = vmatprep.subr.bf16.mxu0 0
      %384 = vmatpush1.bf16.msra.mxu0 %v366
      %385 = vmatprep.subr.bf16.mxu0 0
      %386 = vmatpush1.bf16.msra.mxu0 %v367
      %387 = vmatprep.subr.bf16.mxu0 0
      %388 = vmatpush1.bf16.msra.mxu0 %v368
      %389 = vmatprep.subr.bf16.mxu0 0
      %390 = vmatpush1.bf16.msra.mxu0 %v369
      %391 = vmatprep.subr.bf16.mxu0 0
      %392 = vmatpush1.bf16.msra.mxu0 %v370
      %393 = vmatprep.subr.bf16.mxu0 0
      %394 = vmatpush1.bf16.msra.mxu0 %v371
      %395 = vmatprep.subr.bf16.mxu0 0
      %396 = vmatpush1.bf16.msra.mxu0 %v372
      %397 = vmatprep.subr.bf16.mxu0 0
      %398 = vmatpush1.bf16.msra.mxu0 0
      %399 = vmatprep.subr.bf16.mxu0 0
      %400 = vmatpush1.bf16.msra.mxu0 0
      %401 = vmatprep.subr.bf16.mxu0 0
      %402 = vmatpush1.bf16.msra.mxu0 0
      %403 = vmatprep.subr.bf16.mxu0 0
      %404 = vmatpush1.bf16.msra.mxu0 0
      %405 = vmatprep.subr.bf16.mxu0 0
      %406 = vmatpush1.bf16.msra.mxu0 0
      %407 = vmatprep.subr.bf16.mxu0 0
      %408 = vmatpush1.bf16.msra.mxu0 0
      %409 = vmatprep.subr.bf16.mxu0 0
      %410 = vmatpush1.bf16.msra.mxu0 0
      %411 = vmatprep.subr.bf16.mxu0 0
      %412 = vmatpush1.bf16.msra.mxu0 0
      %413 = vmatprep.mubr.bf16.mxu0 0
      %414 = vmatmul.mubr.bf16.gmra.mrb[0].mxu0 %v304
      %v415 = vpop.f32.mrb[0].mxu0
      %v416 = vadd.f32 0.0, %v415
      %v417 = vpop.f32.mrb[0].mxu0
      %v418 = vpop.f32.mrb[0].mxu0
      %v419 = vadd.f32 0.0, %v418
      %v420 = vpop.f32.mrb[0].mxu0
      %421 = vmatprep.mubr.bf16.mxu0 0
      %422 = vmatmul.mubr.bf16.gmra.mrb[0].mxu0 %v312
      %v423 = vpop.f32.mrb[0].mxu0
      %v424 = vadd.f32 0.0, %v423
      %v425 = vpop.f32.mrb[0].mxu0
      %v426 = vpop.f32.mrb[0].mxu0
      %v427 = vadd.f32 0.0, %v426
      %v428 = vpop.f32.mrb[0].mxu0
      %429 = vmatprep.mubr.bf16.mxu0 0
      %430 = vmatmul.mubr.bf16.gmra.mrb[0].mxu0 %v320
      %v431 = vpop.f32.mrb[0].mxu0
      %v432 = vadd.f32 0.0, %v431
      %v433 = vpop.f32.mrb[0].mxu0
      %v434 = vpop.f32.mrb[0].mxu0
      %v435 = vadd.f32 0.0, %v434
      %v436 = vpop.f32.mrb[0].mxu0
      %437 = vmatprep.mubr.bf16.mxu0 0
      %438 = vmatmul.mubr.bf16.gmra.mrb[0].mxu0 %v328
      %v439 = vpop.f32.mrb[0].mxu0
      %v440 = vadd.f32 0.0, %v439
      %v441 = vpop.f32.mrb[0].mxu0
      %v442 = vpop.f32.mrb[0].mxu0
      %v443 = vadd.f32 0.0, %v442
      %v444 = vpop.f32.mrb[0].mxu0
      %445 = vdwg.mxu0
      %v466 = vunpack.c.l.b16 %v236
      %v467 = vunpack.c.l.b16 %v237
      %v468 = vunpack.c.l.b16 %v238
      %v469 = vunpack.c.l.b16 %v239
      %v470 = vunpack.c.l.b16 %v240
      %v471 = vunpack.c.l.b16 %v241
      %v472 = vunpack.c.l.b16 %v242
      %v473 = vunpack.c.l.b16 %v243
      %v474 = vunpack.c.l.b16 %v244
      %v475 = vunpack.c.l.b16 %v245
      %v476 = vunpack.c.l.b16 %v246
      %v477 = vunpack.c.l.b16 %v247
      %v478 = vunpack.c.l.b16 %v248
      %v479 = vunpack.c.l.b16 %v249
      %v480 = vunpack.c.l.b16 %v250
      %v481 = vunpack.c.l.b16 %v251
      %v482 = vpack.c.b16 %v467, %v466
      %v483 = vpack.c.b16 %v469, %v468
      %v484 = vpack.c.b16 %v471, %v470
      %v485 = vpack.c.b16 %v473, %v472
      %v486 = vpack.c.b16 %v475, %v474
      %v487 = vpack.c.b16 %v477, %v476
      %v488 = vpack.c.b16 %v479, %v478
      %v489 = vpack.c.b16 %v481, %v480
      %498 = vmatprep.subr.bf16.mxu0 0
      %499 = vmatpush1.bf16.msra.mxu0 %v482
      %500 = vmatprep.subr.bf16.mxu0 0
      %501 = vmatpush1.bf16.msra.mxu0 %v483
      %502 = vmatprep.subr.bf16.mxu0 0
      %503 = vmatpush1.bf16.msra.mxu0 %v484
      %504 = vmatprep.subr.bf16.mxu0 0
      %505 = vmatpush1.bf16.msra.mxu0 %v485
      %506 = vmatprep.subr.bf16.mxu0 0
      %507 = vmatpush1.bf16.msra.mxu0 %v486
      %508 = vmatprep.subr.bf16.mxu0 0
      %509 = vmatpush1.bf16.msra.mxu0 %v487
      %510 = vmatprep.subr.bf16.mxu0 0
      %511 = vmatpush1.bf16.msra.mxu0 %v488
      %512 = vmatprep.subr.bf16.mxu0 0
      %513 = vmatpush1.bf16.msra.mxu0 %v489
      %514 = vmatprep.subr.bf16.mxu0 0
      %515 = vmatpush1.bf16.msra.mxu0 0
      %516 = vmatprep.subr.bf16.mxu0 0
      %517 = vmatpush1.bf16.msra.mxu0 0
      %518 = vmatprep.subr.bf16.mxu0 0
      %519 = vmatpush1.bf16.msra.mxu0 0
      %520 = vmatprep.subr.bf16.mxu0 0
      %521 = vmatpush1.bf16.msra.mxu0 0
      %522 = vmatprep.subr.bf16.mxu0 0
      %523 = vmatpush1.bf16.msra.mxu0 0
      %524 = vmatprep.subr.bf16.mxu0 0
      %525 = vmatpush1.bf16.msra.mxu0 0
      %526 = vmatprep.subr.bf16.mxu0 0
      %527 = vmatpush1.bf16.msra.mxu0 0
      %528 = vmatprep.subr.bf16.mxu0 0
      %529 = vmatpush1.bf16.msra.mxu0 0
      %530 = vmatprep.mubr.bf16.mxu0 0
      %531 = vmatmul.mubr.bf16.gmra.mrb[0].mxu0 %v287
      %v532 = vpop.f32.mrb[0].mxu0
      %v533 = vadd.f32 %v416, %v532
      %v534 = vpop.f32.mrb[0].mxu0
      %v535 = vpop.f32.mrb[0].mxu0
      %v536 = vadd.f32 %v419, %v535
      %v537 = vpop.f32.mrb[0].mxu0
      %538 = vmatprep.mubr.bf16.mxu0 0
      %539 = vmatmul.mubr.bf16.gmra.mrb[0].mxu0 %v288
      %v540 = vpop.f32.mrb[0].mxu0
      %v541 = vadd.f32 %v424, %v540
      %v542 = vpop.f32.mrb[0].mxu0
      %v543 = vpop.f32.mrb[0].mxu0
      %v544 = vadd.f32 %v427, %v543
      %v545 = vpop.f32.mrb[0].mxu0
      %546 = vmatprep.mubr.bf16.mxu0 0
      %547 = vmatmul.mubr.bf16.gmra.mrb[0].mxu0 %v289
      %v548 = vpop.f32.mrb[0].mxu0
      %v549 = vadd.f32 %v432, %v548
      %v550 = vpop.f32.mrb[0].mxu0
      %v551 = vpop.f32.mrb[0].mxu0
      %v552 = vadd.f32 %v435, %v551
      %v553 = vpop.f32.mrb[0].mxu0
      %554 = vmatprep.mubr.bf16.mxu0 0
      %555 = vmatmul.mubr.bf16.gmra.mrb[0].mxu0 %v290
      %v556 = vpop.f32.mrb[0].mxu0
      %v557 = vadd.f32 %v440, %v556
      %v558 = vpop.f32.mrb[0].mxu0
      %v559 = vpop.f32.mrb[0].mxu0
      %v560 = vadd.f32 %v443, %v559
      %v561 = vpop.f32.mrb[0].mxu0
      %562 = vdwg.mxu0
      %s563 = scalar_lea.vmem %s1, 128
      %v564 = vld [vmem:[%s563] sm:$0xf]
      %v565 = vld [vmem:[%s563 + $0x4] sm:$0xf]
      %v566 = vld [vmem:[%s563 + $0x8] sm:$0xf]
      %v567 = vld [vmem:[%s563 + $0xc] sm:$0xf]
      %v568 = vld [vmem:[%s563 + $0x10] sm:$0xf]
      %v569 = vld [vmem:[%s563 + $0x14] sm:$0xf]
      %v570 = vld [vmem:[%s563 + $0x18] sm:$0xf]
      %v571 = vld [vmem:[%s563 + $0x1c] sm:$0xf]
      %v572 = vld [vmem:[%s563 + $0x20] sm:$0xf]
      %v573 = vld [vmem:[%s563 + $0x24] sm:$0xf]
      %v574 = vld [vmem:[%s563 + $0x28] sm:$0xf]
      %v575 = vld [vmem:[%s563 + $0x2c] sm:$0xf]
      %v576 = vld [vmem:[%s563 + $0x30] sm:$0xf]
      %v577 = vld [vmem:[%s563 + $0x34] sm:$0xf]
      %v578 = vld [vmem:[%s563 + $0x38] sm:$0xf]
      %v579 = vld [vmem:[%s563 + $0x3c] sm:$0xf]
      %vm580 = vcmask 1046528
      %v581 = vrot.slane %v287, 1
      %v582 = vrot.slane %v288, 1
      %v583 = vsel %vm580, %v581, %v582
      %v584 = vrot.slane %v289, 1
      %v585 = vsel %vm580, %v582, %v584
      %v586 = vrot.slane %v290, 1
      %v587 = vsel %vm580, %v584, %v586
      %v588 = vrot.slane %v291, 1
      %v589 = vsel %vm580, %v586, %v588
      %v610 = vunpack.c.l.b16 %v564
      %v611 = vunpack.c.l.b16 %v565
      %v612 = vunpack.c.l.b16 %v566
      %v613 = vunpack.c.l.b16 %v567
      %v614 = vunpack.c.l.b16 %v568
      %v615 = vunpack.c.l.b16 %v569
      %v616 = vunpack.c.l.b16 %v570
      %v617 = vunpack.c.l.b16 %v571
      %v618 = vunpack.c.l.b16 %v572
      %v619 = vunpack.c.l.b16 %v573
      %v620 = vunpack.c.l.b16 %v574
      %v621 = vunpack.c.l.b16 %v575
      %v622 = vunpack.c.l.b16 %v576
      %v623 = vunpack.c.l.b16 %v577
      %v624 = vunpack.c.l.b16 %v578
      %v625 = vunpack.c.l.b16 %v579
      %v626 = vpack.c.b16 %v611, %v610
      %v627 = vpack.c.b16 %v613, %v612
      %v628 = vpack.c.b16 %v615, %v614
      %v629 = vpack.c.b16 %v617, %v616
      %v630 = vpack.c.b16 %v619, %v618
      %v631 = vpack.c.b16 %v621, %v620
      %v632 = vpack.c.b16 %v623, %v622
      %v633 = vpack.c.b16 %v625, %v624
      %642 = vmatprep.subr.bf16.mxu0 0
      %643 = vmatpush1.bf16.msra.mxu0 %v626
      %644 = vmatprep.subr.bf16.mxu0 0
      %645 = vmatpush1.bf16.msra.mxu0 %v627
      %646 = vmatprep.subr.bf16.mxu0 0
      %647 = vmatpush1.bf16.msra.mxu0 %v628
      %648 = vmatprep.subr.bf16.mxu0 0
      %649 = vmatpush1.bf16.msra.mxu0 %v629
      %650 = vmatprep.subr.bf16.mxu0 0
      %651 = vmatpush1.bf16.msra.mxu0 %v630
      %652 = vmatprep.subr.bf16.mxu0 0
      %653 = vmatpush1.bf16.msra.mxu0 %v631
      %654 = vmatprep.subr.bf16.mxu0 0
      %655 = vmatpush1.bf16.msra.mxu0 %v632
      %656 = vmatprep.subr.bf16.mxu0 0
      %657 = vmatpush1.bf16.msra.mxu0 %v633
      %658 = vmatprep.subr.bf16.mxu0 0
      %659 = vmatpush1.bf16.msra.mxu0 0
      %660 = vmatprep.subr.bf16.mxu0 0
      %661 = vmatpush1.bf16.msra.mxu0 0
      %662 = vmatprep.subr.bf16.mxu0 0
      %663 = vmatpush1.bf16.msra.mxu0 0
      %664 = vmatprep.subr.bf16.mxu0 0
      %665 = vmatpush1.bf16.msra.mxu0 0
      %666 = vmatprep.subr.bf16.mxu0 0
      %667 = vmatpush1.bf16.msra.mxu0 0
      %668 = vmatprep.subr.bf16.mxu0 0
      %669 = vmatpush1.bf16.msra.mxu0 0
      %670 = vmatprep.subr.bf16.mxu0 0
      %671 = vmatpush1.bf16.msra.mxu0 0
      %672 = vmatprep.subr.bf16.mxu0 0
      %673 = vmatpush1.bf16.msra.mxu0 0
      %674 = vmatprep.mubr.bf16.mxu0 0
      %675 = vmatmul.mubr.bf16.gmra.mrb[0].mxu0 %v583
      %v676 = vpop.f32.mrb[0].mxu0
      %v677 = vadd.f32 0.0, %v676
      %v678 = vpop.f32.mrb[0].mxu0
      %v679 = vpop.f32.mrb[0].mxu0
      %v680 = vadd.f32 0.0, %v679
      %v681 = vpop.f32.mrb[0].mxu0
      %682 = vmatprep.mubr.bf16.mxu0 0
      %683 = vmatmul.mubr.bf16.gmra.mrb[0].mxu0 %v585
      %v684 = vpop.f32.mrb[0].mxu0
      %v685 = vadd.f32 0.0, %v684
      %v686 = vpop.f32.mrb[0].mxu0
      %v687 = vpop.f32.mrb[0].mxu0
      %v688 = vadd.f32 0.0, %v687
      %v689 = vpop.f32.mrb[0].mxu0
      %690 = vmatprep.mubr.bf16.mxu0 0
      %691 = vmatmul.mubr.bf16.gmra.mrb[0].mxu0 %v587
      %v692 = vpop.f32.mrb[0].mxu0
      %v693 = vadd.f32 0.0, %v692
      %v694 = vpop.f32.mrb[0].mxu0
      %v695 = vpop.f32.mrb[0].mxu0
      %v696 = vadd.f32 0.0, %v695
      %v697 = vpop.f32.mrb[0].mxu0
      %698 = vmatprep.mubr.bf16.mxu0 0
      %699 = vmatmul.mubr.bf16.gmra.mrb[0].mxu0 %v589
      %v700 = vpop.f32.mrb[0].mxu0
      %v701 = vadd.f32 0.0, %v700
      %v702 = vpop.f32.mrb[0].mxu0
      %v703 = vpop.f32.mrb[0].mxu0
      %v704 = vadd.f32 0.0, %v703
      %v705 = vpop.f32.mrb[0].mxu0
      %706 = vdwg.mxu0
      %v707 = vadd.f32 %v533, %v677
      %v708 = vadd.f32 %v536, %v680
      %v709 = vadd.f32 %v541, %v685
      %v710 = vadd.f32 %v544, %v688
      %v711 = vadd.f32 %v549, %v693
      %v712 = vadd.f32 %v552, %v696
      %v713 = vadd.f32 %v557, %v701
      %v714 = vadd.f32 %v560, %v704
      %s715 = scalar_lea.vmem %s1, 192
      %v716 = vld [vmem:[%s715] sm:$0xf]
      %v717 = vld [vmem:[%s715 + $0x4] sm:$0xf]
      %v718 = vld [vmem:[%s715 + $0x8] sm:$0xf]
      %v719 = vld [vmem:[%s715 + $0xc] sm:$0xf]
      %v720 = vld [vmem:[%s715 + $0x10] sm:$0xf]
      %v721 = vld [vmem:[%s715 + $0x14] sm:$0xf]
      %v722 = vld [vmem:[%s715 + $0x18] sm:$0xf]
      %v723 = vld [vmem:[%s715 + $0x1c] sm:$0xf]
      %v724 = vld [vmem:[%s715 + $0x20] sm:$0xf]
      %v725 = vld [vmem:[%s715 + $0x24] sm:$0xf]
      %v726 = vld [vmem:[%s715 + $0x28] sm:$0xf]
      %v727 = vld [vmem:[%s715 + $0x2c] sm:$0xf]
      %v728 = vld [vmem:[%s715 + $0x30] sm:$0xf]
      %v729 = vld [vmem:[%s715 + $0x34] sm:$0xf]
      %v730 = vld [vmem:[%s715 + $0x38] sm:$0xf]
      %v731 = vld [vmem:[%s715 + $0x3c] sm:$0xf]
      %vm732 = vsmask.f32 6400
      %v733 = vrot.slane %v294, 1
      %v734 = vrot.slane %v296, 2
      %v735 = vor.u32 %v733, %v734
      %v736 = vrot.slane %v305, 1
      %v737 = vrot.slane %v301, 2
      %v738 = vor.u32 %v736, %v737
      %v739 = vsel %vm732, %v735, %v738
      %v740 = vrot.slane %v313, 1
      %v741 = vrot.slane %v309, 2
      %v742 = vor.u32 %v740, %v741
      %v743 = vsel %vm732, %v738, %v742
      %v744 = vrot.slane %v321, 1
      %v745 = vrot.slane %v317, 2
      %v746 = vor.u32 %v744, %v745
      %v747 = vsel %vm732, %v742, %v746
      %v748 = vshrl.u32 %v291, 16
      %v750 = vrot.slane %v748, 1
      %v751 = vrot.slane %v325, 2
      %v752 = vor.u32 %v750, %v751
      %v753 = vsel %vm732, %v746, %v752
      %v774 = vunpack.c.l.b16 %v716
      %v775 = vunpack.c.l.b16 %v717
      %v776 = vunpack.c.l.b16 %v718
      %v777 = vunpack.c.l.b16 %v719
      %v778 = vunpack.c.l.b16 %v720
      %v779 = vunpack.c.l.b16 %v721
      %v780 = vunpack.c.l.b16 %v722
      %v781 = vunpack.c.l.b16 %v723
      %v782 = vunpack.c.l.b16 %v724
      %v783 = vunpack.c.l.b16 %v725
      %v784 = vunpack.c.l.b16 %v726
      %v785 = vunpack.c.l.b16 %v727
      %v786 = vunpack.c.l.b16 %v728
      %v787 = vunpack.c.l.b16 %v729
      %v788 = vunpack.c.l.b16 %v730
      %v789 = vunpack.c.l.b16 %v731
      %v790 = vpack.c.b16 %v775, %v774
      %v791 = vpack.c.b16 %v777, %v776
      %v792 = vpack.c.b16 %v779, %v778
      %v793 = vpack.c.b16 %v781, %v780
      %v794 = vpack.c.b16 %v783, %v782
      %v795 = vpack.c.b16 %v785, %v784
      %v796 = vpack.c.b16 %v787, %v786
      %v797 = vpack.c.b16 %v789, %v788
      %806 = vmatprep.subr.bf16.mxu0 0
      %807 = vmatpush1.bf16.msra.mxu0 %v790
      %808 = vmatprep.subr.bf16.mxu0 0
      %809 = vmatpush1.bf16.msra.mxu0 %v791
      %810 = vmatprep.subr.bf16.mxu0 0
      %811 = vmatpush1.bf16.msra.mxu0 %v792
      %812 = vmatprep.subr.bf16.mxu0 0
      %813 = vmatpush1.bf16.msra.mxu0 %v793
      %814 = vmatprep.subr.bf16.mxu0 0
      %815 = vmatpush1.bf16.msra.mxu0 %v794
      %816 = vmatprep.subr.bf16.mxu0 0
      %817 = vmatpush1.bf16.msra.mxu0 %v795
      %818 = vmatprep.subr.bf16.mxu0 0
      %819 = vmatpush1.bf16.msra.mxu0 %v796
      %820 = vmatprep.subr.bf16.mxu0 0
      %821 = vmatpush1.bf16.msra.mxu0 %v797
      %822 = vmatprep.subr.bf16.mxu0 0
      %823 = vmatpush1.bf16.msra.mxu0 0
      %824 = vmatprep.subr.bf16.mxu0 0
      %825 = vmatpush1.bf16.msra.mxu0 0
      %826 = vmatprep.subr.bf16.mxu0 0
      %827 = vmatpush1.bf16.msra.mxu0 0
      %828 = vmatprep.subr.bf16.mxu0 0
      %829 = vmatpush1.bf16.msra.mxu0 0
      %830 = vmatprep.subr.bf16.mxu0 0
      %831 = vmatpush1.bf16.msra.mxu0 0
      %832 = vmatprep.subr.bf16.mxu0 0
      %833 = vmatpush1.bf16.msra.mxu0 0
      %834 = vmatprep.subr.bf16.mxu0 0
      %835 = vmatpush1.bf16.msra.mxu0 0
      %836 = vmatprep.subr.bf16.mxu0 0
      %837 = vmatpush1.bf16.msra.mxu0 0
      %838 = vmatprep.mubr.bf16.mxu0 0
      %839 = vmatmul.mubr.bf16.gmra.mrb[0].mxu0 %v739
      %v840 = vpop.f32.mrb[0].mxu0
      %v841 = vadd.f32 0.0, %v840
      %v842 = vpop.f32.mrb[0].mxu0
      %v843 = vpop.f32.mrb[0].mxu0
      %v844 = vadd.f32 0.0, %v843
      %v845 = vpop.f32.mrb[0].mxu0
      %846 = vmatprep.mubr.bf16.mxu0 0
      %847 = vmatmul.mubr.bf16.gmra.mrb[0].mxu0 %v743
      %v848 = vpop.f32.mrb[0].mxu0
      %v849 = vadd.f32 0.0, %v848
      %v850 = vpop.f32.mrb[0].mxu0
      %v851 = vpop.f32.mrb[0].mxu0
      %v852 = vadd.f32 0.0, %v851
      %v853 = vpop.f32.mrb[0].mxu0
      %854 = vmatprep.mubr.bf16.mxu0 0
      %855 = vmatmul.mubr.bf16.gmra.mrb[0].mxu0 %v747
      %v856 = vpop.f32.mrb[0].mxu0
      %v857 = vadd.f32 0.0, %v856
      %v858 = vpop.f32.mrb[0].mxu0
      %v859 = vpop.f32.mrb[0].mxu0
      %v860 = vadd.f32 0.0, %v859
      %v861 = vpop.f32.mrb[0].mxu0
      %862 = vmatprep.mubr.bf16.mxu0 0
      %863 = vmatmul.mubr.bf16.gmra.mrb[0].mxu0 %v753
      %v864 = vpop.f32.mrb[0].mxu0
      %v865 = vadd.f32 0.0, %v864
      %v866 = vpop.f32.mrb[0].mxu0
      %v867 = vpop.f32.mrb[0].mxu0
      %v868 = vadd.f32 0.0, %v867
      %v869 = vpop.f32.mrb[0].mxu0
      %870 = vdwg.mxu0
      %v871 = vadd.f32 %v707, %v841
      %v872 = vadd.f32 %v708, %v844
      %v873 = vadd.f32 %v709, %v849
      %v874 = vadd.f32 %v710, %v852
      %v875 = vadd.f32 %v711, %v857
      %v876 = vadd.f32 %v712, %v860
      %v877 = vadd.f32 %v713, %v865
      %v878 = vadd.f32 %v714, %v868
      %s879 = scalar_lea.vmem %s1, 256
      %v880 = vld [vmem:[%s879] sm:$0xf]
      %v881 = vld [vmem:[%s879 + $0x4] sm:$0xf]
      %v882 = vld [vmem:[%s879 + $0x8] sm:$0xf]
      %v883 = vld [vmem:[%s879 + $0xc] sm:$0xf]
      %v884 = vld [vmem:[%s879 + $0x10] sm:$0xf]
      %v885 = vld [vmem:[%s879 + $0x14] sm:$0xf]
      %v886 = vld [vmem:[%s879 + $0x18] sm:$0xf]
      %v887 = vld [vmem:[%s879 + $0x1c] sm:$0xf]
      %v888 = vld [vmem:[%s879 + $0x20] sm:$0xf]
      %v889 = vld [vmem:[%s879 + $0x24] sm:$0xf]
      %v890 = vld [vmem:[%s879 + $0x28] sm:$0xf]
      %v891 = vld [vmem:[%s879 + $0x2c] sm:$0xf]
      %v892 = vld [vmem:[%s879 + $0x30] sm:$0xf]
      %v893 = vld [vmem:[%s879 + $0x34] sm:$0xf]
      %v894 = vld [vmem:[%s879 + $0x38] sm:$0xf]
      %v895 = vld [vmem:[%s879 + $0x3c] sm:$0xf]
      %vm896 = vcmask 1045504
      %v897 = vrot.slane %v287, 2
      %v898 = vrot.slane %v288, 2
      %v899 = vsel %vm896, %v897, %v898
      %v900 = vrot.slane %v289, 2
      %v901 = vsel %vm896, %v898, %v900
      %v902 = vrot.slane %v290, 2
      %v903 = vsel %vm896, %v900, %v902
      %v904 = vrot.slane %v291, 2
      %v905 = vsel %vm896, %v902, %v904
      %v926 = vunpack.c.l.b16 %v880
      %v927 = vunpack.c.l.b16 %v881
      %v928 = vunpack.c.l.b16 %v882
      %v929 = vunpack.c.l.b16 %v883
      %v930 = vunpack.c.l.b16 %v884
      %v931 = vunpack.c.l.b16 %v885
      %v932 = vunpack.c.l.b16 %v886
      %v933 = vunpack.c.l.b16 %v887
      %v934 = vunpack.c.l.b16 %v888
      %v935 = vunpack.c.l.b16 %v889
      %v936 = vunpack.c.l.b16 %v890
      %v937 = vunpack.c.l.b16 %v891
      %v938 = vunpack.c.l.b16 %v892
      %v939 = vunpack.c.l.b16 %v893
      %v940 = vunpack.c.l.b16 %v894
      %v941 = vunpack.c.l.b16 %v895
      %v942 = vpack.c.b16 %v927, %v926
      %v943 = vpack.c.b16 %v929, %v928
      %v944 = vpack.c.b16 %v931, %v930
      %v945 = vpack.c.b16 %v933, %v932
      %v946 = vpack.c.b16 %v935, %v934
      %v947 = vpack.c.b16 %v937, %v936
      %v948 = vpack.c.b16 %v939, %v938
      %v949 = vpack.c.b16 %v941, %v940
      %958 = vmatprep.subr.bf16.mxu0 0
      %959 = vmatpush1.bf16.msra.mxu0 %v942
      %960 = vmatprep.subr.bf16.mxu0 0
      %961 = vmatpush1.bf16.msra.mxu0 %v943
      %962 = vmatprep.subr.bf16.mxu0 0
      %963 = vmatpush1.bf16.msra.mxu0 %v944
      %964 = vmatprep.subr.bf16.mxu0 0
      %965 = vmatpush1.bf16.msra.mxu0 %v945
      %966 = vmatprep.subr.bf16.mxu0 0
      %967 = vmatpush1.bf16.msra.mxu0 %v946
      %968 = vmatprep.subr.bf16.mxu0 0
      %969 = vmatpush1.bf16.msra.mxu0 %v947
      %970 = vmatprep.subr.bf16.mxu0 0
      %971 = vmatpush1.bf16.msra.mxu0 %v948
      %972 = vmatprep.subr.bf16.mxu0 0
      %973 = vmatpush1.bf16.msra.mxu0 %v949
      %974 = vmatprep.subr.bf16.mxu0 0
      %975 = vmatpush1.bf16.msra.mxu0 0
      %976 = vmatprep.subr.bf16.mxu0 0
      %977 = vmatpush1.bf16.msra.mxu0 0
      %978 = vmatprep.subr.bf16.mxu0 0
      %979 = vmatpush1.bf16.msra.mxu0 0
      %980 = vmatprep.subr.bf16.mxu0 0
      %981 = vmatpush1.bf16.msra.mxu0 0
      %982 = vmatprep.subr.bf16.mxu0 0
      %983 = vmatpush1.bf16.msra.mxu0 0
      %984 = vmatprep.subr.bf16.mxu0 0
      %985 = vmatpush1.bf16.msra.mxu0 0
      %986 = vmatprep.subr.bf16.mxu0 0
      %987 = vmatpush1.bf16.msra.mxu0 0
      %988 = vmatprep.subr.bf16.mxu0 0
      %989 = vmatpush1.bf16.msra.mxu0 0
      %990 = vmatprep.mubr.bf16.mxu0 0
      %991 = vmatmul.mubr.bf16.gmra.mrb[0].mxu0 %v899
      %v992 = vpop.f32.mrb[0].mxu0
      %v993 = vadd.f32 0.0, %v992
      %v994 = vpop.f32.mrb[0].mxu0
      %v995 = vpop.f32.mrb[0].mxu0
      %v996 = vadd.f32 0.0, %v995
      %v997 = vpop.f32.mrb[0].mxu0
      %998 = vmatprep.mubr.bf16.mxu0 0
      %999 = vmatmul.mubr.bf16.gmra.mrb[0].mxu0 %v901
      %v1000 = vpop.f32.mrb[0].mxu0
      %v1001 = vadd.f32 0.0, %v1000
      %v1002 = vpop.f32.mrb[0].mxu0
      %v1003 = vpop.f32.mrb[0].mxu0
      %v1004 = vadd.f32 0.0, %v1003
      %v1005 = vpop.f32.mrb[0].mxu0
      %1006 = vmatprep.mubr.bf16.mxu0 0
      %1007 = vmatmul.mubr.bf16.gmra.mrb[0].mxu0 %v903
      %v1008 = vpop.f32.mrb[0].mxu0
      %v1009 = vadd.f32 0.0, %v1008
      %v1010 = vpop.f32.mrb[0].mxu0
      %v1011 = vpop.f32.mrb[0].mxu0
      %v1012 = vadd.f32 0.0, %v1011
      %v1013 = vpop.f32.mrb[0].mxu0
      %1014 = vmatprep.mubr.bf16.mxu0 0
      %1015 = vmatmul.mubr.bf16.gmra.mrb[0].mxu0 %v905
      %v1016 = vpop.f32.mrb[0].mxu0
      %v1017 = vadd.f32 0.0, %v1016
      %v1018 = vpop.f32.mrb[0].mxu0
      %v1019 = vpop.f32.mrb[0].mxu0
      %v1020 = vadd.f32 0.0, %v1019
      %v1021 = vpop.f32.mrb[0].mxu0
      %1022 = vdwg.mxu0
      %v1023 = vadd.f32 %v871, %v993
      %v1024 = vadd.f32 %v872, %v996
      %v1025 = vadd.f32 %v873, %v1001
      %v1026 = vadd.f32 %v874, %v1004
      %v1027 = vadd.f32 %v875, %v1009
      %v1028 = vadd.f32 %v876, %v1012
      %v1029 = vadd.f32 %v877, %v1017
      %v1030 = vadd.f32 %v878, %v1020
      %v1031 = vld [vmem:[%s2] sm:$0x1]
      %v1033 = vlaneseq
      %v1034 = vshrl.u32 %v1033, 7
      %v1035 = vsub.s32 0, %v1034
      %v1036 = vrot.slane %v1031, %v1035
      %v1038 = vmul.f32 %v1023, %v1036
      %v1039 = vmul.f32 %v1024, %v1036
      %v1040 = vmul.f32 %v1025, %v1036
      %v1041 = vmul.f32 %v1026, %v1036
      %v1042 = vmul.f32 %v1027, %v1036
      %v1043 = vmul.f32 %v1028, %v1036
      %v1044 = vmul.f32 %v1029, %v1036
      %v1045 = vmul.f32 %v1030, %v1036
      %v1046 = vld [vmem:[%s3] sm:$0x1]
      %v1048 = vlaneseq
      %v1049 = vshrl.u32 %v1048, 7
      %v1050 = vsub.s32 0, %v1049
      %v1051 = vrot.slane %v1046, %v1050
      %v1053 = vadd.f32 %v1038, %v1051
      %v1054 = vadd.f32 %v1039, %v1051
      %v1055 = vadd.f32 %v1040, %v1051
      %v1056 = vadd.f32 %v1041, %v1051
      %v1057 = vadd.f32 %v1042, %v1051
      %v1058 = vadd.f32 %v1043, %v1051
      %v1059 = vadd.f32 %v1044, %v1051
      %v1060 = vadd.f32 %v1045, %v1051
      %v1061 = vpack.c.bf16 %v1054, %v1053
      %v1062 = vpack.c.bf16 %v1056, %v1055
      %v1063 = vpack.c.bf16 %v1058, %v1057
      %v1064 = vpack.c.bf16 %v1060, %v1059
      %v1069 = vunpack.c.l.b16 %v1061
      %v1070 = vunpack.c.h.b16 %v1061
      %v1071 = vunpack.c.l.b16 %v1062
      %v1072 = vunpack.c.h.b16 %v1062
      %v1073 = vunpack.c.l.b16 %v1063
      %v1074 = vunpack.c.h.b16 %v1063
      %v1075 = vunpack.c.l.b16 %v1064
      %v1076 = vunpack.c.h.b16 %v1064
      %v1077 = vpack.c.b16 %v1069, %v1069
      %v1078 = vpack.c.b16 %v1070, %v1070
      %v1079 = vpack.c.b16 %v1071, %v1071
      %v1080 = vpack.c.b16 %v1072, %v1072
      %v1081 = vpack.c.b16 %v1073, %v1073
      %v1082 = vpack.c.b16 %v1074, %v1074
      %v1083 = vpack.c.b16 %v1075, %v1075
      %v1084 = vpack.c.b16 %v1076, %v1076
      %1093 = vst [vmem:[%s219] sm:$0xf] %v1077
      %1094 = vst [vmem:[%s219 + $0x4] sm:$0xf] %v1078
      %1095 = vst [vmem:[%s219 + $0x8] sm:$0xf] %v1079
      %1096 = vst [vmem:[%s219 + $0xc] sm:$0xf] %v1080
      %1097 = vst [vmem:[%s219 + $0x10] sm:$0xf] %v1081
      %1098 = vst [vmem:[%s219 + $0x14] sm:$0xf] %v1082
      %1099 = vst [vmem:[%s219 + $0x18] sm:$0xf] %v1083
      %1100 = vst [vmem:[%s219 + $0x1c] sm:$0xf] %v1084
      %s1101 = smul.u32 8, %s20
      %p1102 = scmp.lt.s32.totalorder %s19, 1
      %s1103 = scalar_select %p1102, %s19, 1
      %p1104 = scmp.lt.s32.totalorder %s1101, 7
      %s1105 = scalar_select %p1104, %s1101, 7
      %s1106 = smul.addr %s1103, 8
      %s1107 = sadd.s32 %s1105, %s1106
      %s1108 = smul.addr %s1107, 4
      %s1109 = scalar_lea.vmem %s4, %s1108
      // Predicated region
      $region37: #{proj_resnet_forward.10} parent=35 // pred_check
        %p1110 = pneg %p136
      $region38: #{proj_resnet_forward.10} parent=35 // pred_check_branch
        %1112 = sbr.rel (%p1110) target = $region40
      $region39: #{proj_resnet_forward.10} parent=35 // pred_region
        %s1113 = smul.u32 8, %s20
      $region40: #{proj_resnet_forward.10} parent=35 // pred_fallthru
        _
    $region36: #{proj_resnet_forward.10} parent=5 // pred_fallthru
      _
    %p1114 = scmp.le.s32.totalorder 2, %s10
    // Predicated region
    $region41: #{proj_resnet_forward.10} parent=5 // pred_check
      %p1115 = pneg %p1114
    $region42: #{proj_resnet_forward.10} parent=5 // pred_check_branch
      %1117 = sbr.rel (%p1115) target = $region44
    $region43: #{proj_resnet_forward.10} parent=5 // pred_region
      %s1118 = ssub.s32 %s10, 2
      // Predicated region
      $region45: #{proj_resnet_forward.10} parent=43 // pred_check
        %p1119 = pneg %p142
      $region46: #{proj_resnet_forward.10} parent=43 // pred_check_branch
        %1121 = sbr.rel (%p1119) target = $region48
      $region47: #{proj_resnet_forward.10} parent=43 // pred_region
        %s1122 = smul.u32 8, %s22
        %p1123 = scmp.lt.s32.totalorder %s21, 1
        %s1124 = scalar_select %p1123, %s21, 1
        %p1125 = scmp.lt.s32.totalorder %s1122, 7
        %s1126 = scalar_select %p1125, %s1122, 7
        %s1127 = smul.addr %s1124, 8
        %s1128 = sadd.s32 %s1126, %s1127
        %s1129 = smul.addr %s1128, 4
        %s1130 = scalar_lea.vmem %s4, %s1129
      $region48: #{proj_resnet_forward.10} parent=43 // pred_fallthru
        _
    $region44: #{proj_resnet_forward.10} parent=5 // pred_fallthru
      _
  $region6: #{proj_resnet_forward.10} parent=0 // loop_footer
    %s14 = sadd.s32 1, %s10
  $region7: #{proj_resnet_forward.10} parent=0 // loop_footer_branch
    %9 = sbr.rel target = $region3
  $region8: #{proj_resnet_forward.10} parent=0 // loop_exit
    _

// kernel: proj_resnet_forward.13
$region0: #{proj_resnet_forward.13}
  #allocation0 [shape = 'u32[]', space=smem, size = 0x4, offset = 0x4, fixed_abs, tag = 'smem constant byte address 0x4 - core index']
  #allocation1 [shape = 'u32[144,128]{1,0:T(1,128)}', space=vmem, size = 0x12000, scoped, tag = 'internal scratch']
  %s0 = inlined_call_operand.vmem [shape: bf16[2,2,17,128], index: 0, kind: input, shape index: {}]
  %s1 = inlined_call_operand.vmem [shape: bf16[3,128,128], index: 1, kind: input, shape index: {}]
  %s2 = inlined_call_operand.vmem [shape: f32[1,128], index: 2, kind: input, shape index: {}]
  %s3 = inlined_call_operand.vmem [shape: f32[1,128], index: 3, kind: input, shape index: {}]
  %s4 = inlined_call_operand.vmem [shape: bf16[2,16,128], index: 4, kind: output, shape index: {}]
  %s5 = sld [smem:[#allocation0]]
  $region90: #{proj_resnet_forward.13} parent=0
    _
  %s7 = ssub.s32 1, %s5
  %s8 = scalar_select 0, %s7, %s5
  $region1: #{proj_resnet_forward.13} parent=0
    #allocation2 [shape = 'u8[24576]{0}', space=vmem, size = 0x6000, scoped, tag = 'input window, operand 0']
    loop: start=0, step=1, limit=4
    $region2: #{proj_resnet_forward.13} parent=1 // loop_pre_header
      _
    $region3: #{proj_resnet_forward.13} parent=1 // loop_header
      %s10 = sphi 0, %s14
      %p11 = scmp.ge.s32.totalorder %s10, 4
      %s17 = sphi 0, %s29
      %s18 = sphi 0, %s25
      %s19 = sphi 0, %s17
      %s20 = sphi 0, %s18
      %s21 = sphi 0, %s19
      %s22 = sphi 0, %s20
      %s32 = sphi 0, %s34
      %s35 = sphi 0, %s32
      %s36 = sphi 0, %s35
      %s52 = sphi 0, %s36
      %s56 = sphi 0, %s56
      %s58 = sphi 0, %s56
      %s59 = sphi 0, %s58
      %s73 = sphi 0, %s59
      %s77 = sphi 0, %s77
      %s79 = sphi 0, %s77
      %s80 = sphi 0, %s79
      %s94 = sphi 0, %s80
      %s98 = sphi 0, %s98
      %s100 = sphi 0, %s98
      %s101 = sphi 0, %s100
      %s115 = sphi 0, %s101
      %s123 = sphi 0, %s125
      %s126 = sphi 0, %s123
      %s127 = sphi 0, %s126
      %s143 = sphi 0, %s127
    $region4: #{proj_resnet_forward.13} parent=1 // loop_header_branch
      %13 = sbr.rel (%p11) target = $region8
    $region5: #{proj_resnet_forward.13} parent=1 // loop_body
      %s15 = ssub.s32 %s10, 1
      %s16 = ssub.s32 %s10, 2
      %s23 = sadd.s32 1, %s18
      %p24 = scmp.ge.s32.totalorder %s23, 1
      %s25 = scalar_select %p24, 0, %s23
      %s26 = sadd.s32 1, %s17
      %s27 = scalar_select %p24, %s26, %s17
      %p28 = scmp.ge.s32.totalorder %s27, 2
      %s29 = scalar_select %p28, 0, %s27
      %s30 = ssub.s32 %s17, %s29
      %p31 = scmp.eq.s32.totalorder %s30, 0
      %s33 = sadd.s32 %s32, 1
      %s34 = scalar_select %p31, %s32, %s33
      %p37 = pneg %p31
      %p38 = scmp.eq.s32.totalorder %s10, 1
      %p39 = por %p37, %p38
      %p40 = scmp.ne.s32.totalorder %s32, %s35
      %p41 = scmp.eq.s32.totalorder %s10, 0
      %p42 = por %p40, %p41
      %p43 = scmp.ne.s32.totalorder %s32, %s35
      %p44 = scmp.eq.s32.totalorder %s15, 1
      %p45 = por %p43, %p44
      %p46 = scmp.ne.s32.totalorder %s35, %s36
      %p47 = scmp.eq.s32.totalorder %s15, 0
      %p48 = por %p46, %p47
      %p49 = scmp.ne.s32.totalorder %s35, %s36
      %p50 = scmp.eq.s32.totalorder %s16, 1
      %p51 = por %p49, %p50
      %p53 = scmp.ne.s32.totalorder %s36, %s52
      %p54 = scmp.eq.s32.totalorder %s16, 0
      %p55 = por %p53, %p54
      %s57 = sadd.s32 %s56, 1
      %p60 = scmp.eq.s32.totalorder %s10, 1
      %p61 = scmp.ne.s32.totalorder %s56, %s58
      %p62 = scmp.eq.s32.totalorder %s10, 0
      %p63 = por %p61, %p62
      %p64 = scmp.ne.s32.totalorder %s56, %s58
      %p65 = scmp.eq.s32.totalorder %s15, 1
      %p66 = por %p64, %p65
      %p67 = scmp.ne.s32.totalorder %s58, %s59
      %p68 = scmp.eq.s32.totalorder %s15, 0
      %p69 = por %p67, %p68
      %p70 = scmp.ne.s32.totalorder %s58, %s59
      %p71 = scmp.eq.s32.totalorder %s16, 1
      %p72 = por %p70, %p71
      %p74 = scmp.ne.s32.totalorder %s59, %s73
      %p75 = scmp.eq.s32.totalorder %s16, 0
      %p76 = por %p74, %p75
      %s78 = sadd.s32 %s77, 1
      %p81 = scmp.eq.s32.totalorder %s10, 1
      %p82 = scmp.ne.s32.totalorder %s77, %s79
      %p83 = scmp.eq.s32.totalorder %s10, 0
      %p84 = por %p82, %p83
      %p85 = scmp.ne.s32.totalorder %s77, %s79
      %p86 = scmp.eq.s32.totalorder %s15, 1
      %p87 = por %p85, %p86
      %p88 = scmp.ne.s32.totalorder %s79, %s80
      %p89 = scmp.eq.s32.totalorder %s15, 0
      %p90 = por %p88, %p89
      %p91 = scmp.ne.s32.totalorder %s79, %s80
      %p92 = scmp.eq.s32.totalorder %s16, 1
      %p93 = por %p91, %p92
      %p95 = scmp.ne.s32.totalorder %s80, %s94
      %p96 = scmp.eq.s32.totalorder %s16, 0
      %p97 = por %p95, %p96
      %s99 = sadd.s32 %s98, 1
      %p102 = scmp.eq.s32.totalorder %s10, 1
      %p103 = scmp.ne.s32.totalorder %s98, %s100
      %p104 = scmp.eq.s32.totalorder %s10, 0
      %p105 = por %p103, %p104
      %p106 = scmp.ne.s32.totalorder %s98, %s100
      %p107 = scmp.eq.s32.totalorder %s15, 1
      %p108 = por %p106, %p107
      %p109 = scmp.ne.s32.totalorder %s100, %s101
      %p110 = scmp.eq.s32.totalorder %s15, 0
      %p111 = por %p109, %p110
      %p112 = scmp.ne.s32.totalorder %s100, %s101
      %p113 = scmp.eq.s32.totalorder %s16, 1
      %p114 = por %p112, %p113
      %p116 = scmp.ne.s32.totalorder %s101, %s115
      %p117 = scmp.eq.s32.totalorder %s16, 0
      %p118 = por %p116, %p117
      %s119 = ssub.s32 %s17, %s29
      %s120 = ssub.s32 %s18, %s25
      %s121 = sor.u32 %s119, %s120
      %p122 = scmp.eq.s32.totalorder %s121, 0
      %s124 = sadd.s32 %s123, 1
      %s125 = scalar_select %p122, %s123, %s124
      %p128 = pneg %p122
      %p129 = scmp.eq.s32.totalorder %s10, 1
      %p130 = por %p128, %p129
      %p131 = scmp.ne.s32.totalorder %s123, %s126
      %p132 = scmp.eq.s32.totalorder %s10, 0
      %p133 = por %p131, %p132
      %p134 = scmp.ne.s32.totalorder %s123, %s126
      %p135 = scmp.eq.s32.totalorder %s15, 1
      %p136 = por %p134, %p135
      %p137 = scmp.ne.s32.totalorder %s126, %s127
      %p138 = scmp.eq.s32.totalorder %s15, 0
      %p139 = por %p137, %p138
      %p140 = scmp.ne.s32.totalorder %s126, %s127
      %p141 = scmp.eq.s32.totalorder %s16, 1
      %p142 = por %p140, %p141
      %p144 = scmp.ne.s32.totalorder %s127, %s143
      %p145 = scmp.eq.s32.totalorder %s16, 0
      %p146 = por %p144, %p145
      %p147 = scmp.le.s32.totalorder 1, %s10
      %p148 = scmp.lt.s32.totalorder %s10, 3
      %p149 = pnand %p147, %p148
      %p150 = pneg %p149
      // Predicated region
      $region9: #{proj_resnet_forward.13} parent=5 // pred_check
        _
      $region10: #{proj_resnet_forward.13} parent=5 // pred_check_branch
        %152 = sbr.rel (%p149) target = $region12
      $region11: #{proj_resnet_forward.13} parent=5 // pred_region
        %s153 = ssub.s32 %s10, 1
        // Predicated region
        $region13: #{proj_resnet_forward.13} parent=11 // pred_check
          %p154 = pneg %p69
        $region14: #{proj_resnet_forward.13} parent=11 // pred_check_branch
          %156 = sbr.rel (%p154) target = $region16
        $region15: #{proj_resnet_forward.13} parent=11 // pred_region
          _
        $region16: #{proj_resnet_forward.13} parent=11 // pred_fallthru
          _
        // Predicated region
        $region17: #{proj_resnet_forward.13} parent=11 // pred_check
          %p157 = pneg %p90
        $region18: #{proj_resnet_forward.13} parent=11 // pred_check_branch
          %159 = sbr.rel (%p157) target = $region20
        $region19: #{proj_resnet_forward.13} parent=11 // pred_region
          _
        $region20: #{proj_resnet_forward.13} parent=11 // pred_fallthru
          _
        // Predicated region
        $region21: #{proj_resnet_forward.13} parent=11 // pred_check
          %p160 = pneg %p111
        $region22: #{proj_resnet_forward.13} parent=11 // pred_check_branch
          %162 = sbr.rel (%p160) target = $region24
        $region23: #{proj_resnet_forward.13} parent=11 // pred_region
          _
        $region24: #{proj_resnet_forward.13} parent=11 // pred_fallthru
          _
      $region12: #{proj_resnet_forward.13} parent=5 // pred_fallthru
        _
      %p163 = scmp.lt.s32.totalorder %s10, 2
      // Predicated region
      $region25: #{proj_resnet_forward.13} parent=5 // pred_check
        %p164 = pneg %p163
      $region26: #{proj_resnet_forward.13} parent=5 // pred_check_branch
        %166 = sbr.rel (%p164) target = $region28
      $region27: #{proj_resnet_forward.13} parent=5 // pred_region
        // Predicated region
        $region29: #{proj_resnet_forward.13} parent=27 // pred_check
          %p167 = pneg %p42
        $region30: #{proj_resnet_forward.13} parent=27 // pred_check_branch
          %169 = sbr.rel (%p167) target = $region32
        $region31: #{proj_resnet_forward.13} parent=27 // pred_region
          %s170 = sand.u32 %s32, 1
          %s171 = sand.u32 %s32, 1
          %s172 = smul.addr %s171, 24
          %s173 = scalar_lea.vmem [#allocation2], %s172
          %s174 = smul.addr %s17, 3
          %s175 = smul.addr %s174, 4
          %s176 = scalar_lea.vmem %s0, %s175
          // Predicated region
          $region33: #{proj_resnet_forward.13} parent=31 // pred_check
            _
          $region34: #{proj_resnet_forward.13} parent=31 // pred_check_branch
            %178 = sbr.rel (0) target = $region36
          $region35: #{proj_resnet_forward.13} parent=31 // pred_region
            // Predicated region
            $region37: #{proj_resnet_forward.13} parent=35 // pred_check
              _
            $region38: #{proj_resnet_forward.13} parent=35 // pred_check_branch
              %180 = sbr.rel target = $region40
            $region39: #{proj_resnet_forward.13} parent=35 // pred_region
              // Predicated region
              $region52: #{proj_resnet_forward.13} parent=39 // pred_check
                _
              $region53: #{proj_resnet_forward.13} parent=39 // pred_check_branch
                %205 = sbr.rel (0) target = $region55
              $region54: #{proj_resnet_forward.13} parent=39 // pred_region
                loop: start=0, step=1, limit=1
                $region56: #{proj_resnet_forward.13} parent=54 // loop_pre_header
                  _
                $region57: #{proj_resnet_forward.13} parent=54 // loop_header
                  %s207 = sphi 0, %s211
                  %p208 = scmp.ge.s32.totalorder %s207, 1
                  %s212 = sphi %s176, %s176
                  %s213 = sphi %s173, %s173
                $region58: #{proj_resnet_forward.13} parent=54 // loop_header_branch
                  %210 = sbr.rel (%p208) target = $region62
                $region59: #{proj_resnet_forward.13} parent=54 // loop_body
                  _
                $region60: #{proj_resnet_forward.13} parent=54 // loop_footer
                  %s211 = sadd.s32 1, %s207
                $region61: #{proj_resnet_forward.13} parent=54 // loop_footer_branch
                  %206 = sbr.rel target = $region57
                $region62: #{proj_resnet_forward.13} parent=54 // loop_exit
                  _
                loop: start=0, step=1, limit=1
                $region63: #{proj_resnet_forward.13} parent=54 // loop_pre_header
                  _
                $region64: #{proj_resnet_forward.13} parent=54 // loop_header
                  %s216 = sphi 0, %s220
                  %p217 = scmp.ge.s32.totalorder %s216, 1
                  %s221 = sphi %s176, %s176
                  %s222 = sphi %s173, %s173
                $region65: #{proj_resnet_forward.13} parent=54 // loop_header_branch
                  %219 = sbr.rel (%p217) target = $region69
                $region66: #{proj_resnet_forward.13} parent=54 // loop_body
                  %v223 = vld [vmem:[%s221] sm:$0xf]
                  %224 = vst [vmem:[%s222] sm:$0xf] %v223
                  %v225 = vld [vmem:[%s221 + $0x4] sm:$0xf]
                  %226 = vst [vmem:[%s222 + $0x4] sm:$0xf] %v225
                  %v227 = vld [vmem:[%s221 + $0x8] sm:$0xf]
                  %228 = vst [vmem:[%s222 + $0x8] sm:$0xf] %v227
                  %v229 = vld [vmem:[%s221 + $0x18] sm:$0xf]
                  %230 = vst [vmem:[%s222 + $0xc] sm:$0xf] %v229
                  %v231 = vld [vmem:[%s221 + $0x1c] sm:$0xf]
                  %232 = vst [vmem:[%s222 + $0x10] sm:$0xf] %v231
                  %v233 = vld [vmem:[%s221 + $0x20] sm:$0xf]
                  %234 = vst [vmem:[%s222 + $0x14] sm:$0xf] %v233
                $region67: #{proj_resnet_forward.13} parent=54 // loop_footer
                  %s220 = sadd.s32 1, %s216
                $region68: #{proj_resnet_forward.13} parent=54 // loop_footer_branch
                  %215 = sbr.rel target = $region64
                $region69: #{proj_resnet_forward.13} parent=54 // loop_exit
                  _
              $region55: #{proj_resnet_forward.13} parent=39 // pred_fallthru
                _
            $region40: #{proj_resnet_forward.13} parent=35 // pred_fallthru
              _
            // Predicated region
            $region41: #{proj_resnet_forward.13} parent=35 // pred_check
              _
            $region42: #{proj_resnet_forward.13} parent=35 // pred_check_branch
              %182 = sbr.rel (0) target = $region44
            $region43: #{proj_resnet_forward.13} parent=35 // pred_region
              loop: start=0, step=1, limit=1
              $region45: #{proj_resnet_forward.13} parent=43 // loop_pre_header
                _
              $region46: #{proj_resnet_forward.13} parent=43 // loop_header
                %s185 = sphi 0, %s189
                %p186 = scmp.ge.s32.totalorder %s185, 1
                %s190 = sphi %s176, %s176
                %s191 = sphi %s173, %s173
              $region47: #{proj_resnet_forward.13} parent=43 // loop_header_branch
                %188 = sbr.rel (%p186) target = $region51
              $region48: #{proj_resnet_forward.13} parent=43 // loop_body
                %v192 = vld [vmem:[%s190] sm:$0xf]
                %193 = vst [vmem:[%s191] sm:$0xf] %v192
                %v194 = vld [vmem:[%s190 + $0x4] sm:$0xf]
                %195 = vst [vmem:[%s191 + $0x4] sm:$0xf] %v194
                %v196 = vld [vmem:[%s190 + $0x8] sm:$0xf]
                %197 = vst [vmem:[%s191 + $0x8] sm:$0xf] %v196
                %v198 = vld [vmem:[%s190 + $0x18] sm:$0xf]
                %199 = vst [vmem:[%s191 + $0xc] sm:$0xf] %v198
                %v200 = vld [vmem:[%s190 + $0x1c] sm:$0xf]
                %201 = vst [vmem:[%s191 + $0x10] sm:$0xf] %v200
                %v202 = vld [vmem:[%s190 + $0x20] sm:$0xf]
                %203 = vst [vmem:[%s191 + $0x14] sm:$0xf] %v202
              $region49: #{proj_resnet_forward.13} parent=43 // loop_footer
                %s189 = sadd.s32 1, %s185
              $region50: #{proj_resnet_forward.13} parent=43 // loop_footer_branch
                %184 = sbr.rel target = $region46
              $region51: #{proj_resnet_forward.13} parent=43 // loop_exit
                _
            $region44: #{proj_resnet_forward.13} parent=35 // pred_fallthru
              _
          $region36: #{proj_resnet_forward.13} parent=31 // pred_fallthru
            _
          %235 = vnop
        $region32: #{proj_resnet_forward.13} parent=27 // pred_fallthru
          _
      $region28: #{proj_resnet_forward.13} parent=5 // pred_fallthru
        _
      %p236 = scmp.le.s32.totalorder 1, %s10
      %p237 = scmp.lt.s32.totalorder %s10, 3
      %p238 = pnand %p236, %p237
      %p239 = pneg %p238
      // Predicated region
      $region70: #{proj_resnet_forward.13} parent=5 // pred_check
        _
      $region71: #{proj_resnet_forward.13} parent=5 // pred_check_branch
        %241 = sbr.rel (%p238) target = $region73
      $region72: #{proj_resnet_forward.13} parent=5 // pred_region
        %s242 = ssub.s32 %s10, 1
        %s243 = sand.u32 %s35, 1
        %s244 = sand.u32 %s35, 1
        %s245 = smul.addr %s244, 24
        %s246 = scalar_lea.vmem [#allocation2], %s245
        // Predicated region
        $region74: #{proj_resnet_forward.13} parent=72 // pred_check
          %p247 = pneg %p48
        $region75: #{proj_resnet_forward.13} parent=72 // pred_check_branch
          %249 = sbr.rel (%p247) target = $region77
        $region76: #{proj_resnet_forward.13} parent=72 // pred_region
          _
        $region77: #{proj_resnet_forward.13} parent=72 // pred_fallthru
          _
        %s250 = sand.u32 %s35, 1
        %s251 = sand.u32 %s35, 1
        %s252 = smul.addr %s251, 24
        %s253 = scalar_lea.vmem [#allocation2], %s252
        %p254 = pneg %p48
        %p255 = pneg %p45
        %p256 = pneg %p69
        %p257 = pneg %p66
        %p258 = pneg %p90
        %p259 = pneg %p87
        %p260 = pneg %p111
        %p261 = pneg %p108
        %p262 = pneg %p139
        %p263 = pneg %p136
        %s264 = smul.u32 2, %s20
        %p265 = scmp.lt.s32.totalorder %s19, 1
        %s266 = scalar_select %p265, %s19, 1
        %p267 = scmp.lt.s32.totalorder %s264, 1
        %s268 = scalar_select %p267, %s264, 1
        %s269 = smul.addr %s266, 2
        %s270 = sadd.s32 %s268, %s269
        %s271 = smul.addr %s270, 4
        %s272 = scalar_lea.vmem %s4, %s271
        %s273 = smul.u32 2, %s20
        %p274 = scmp.lt.s32.totalorder %s19, 1
        %s275 = scalar_select %p274, %s19, 1
        %p276 = scmp.lt.s32.totalorder %s273, 1
        %s277 = scalar_select %p276, %s273, 1
        %s278 = smul.addr %s275, 2
        %s279 = sadd.s32 %s277, %s278
        %s280 = smul.addr %s279, 4
        %s281 = scalar_lea.vmem %s4, %s280
        %s282 = smul.u32 2, %s20
        %s284 = smul.u32 %s20, 16
        %s285 = sshra.s32 %s284, 3
        %s286 = sand.u32 %s284, 7
        %s287 = smul.addr %s285, 4
        %s288 = scalar_lea.vmem %s246, %s287 [#allocation2]
        %v289 = vld [vmem:[%s288] sm:$0xf]
        %v290 = vld [vmem:[%s288 + $0x4] sm:$0xf]
        %v291 = vld [vmem:[%s288 + $0x8] sm:$0x1]
        %v292 = vld [vmem:[%s1] sm:$0xf]
        %v293 = vld [vmem:[%s1 + $0x4] sm:$0xf]
        %v294 = vld [vmem:[%s1 + $0x8] sm:$0xf]
        %v295 = vld [vmem:[%s1 + $0xc] sm:$0xf]
        %v296 = vld [vmem:[%s1 + $0x10] sm:$0xf]
        %v297 = vld [vmem:[%s1 + $0x14] sm:$0xf]
        %v298 = vld [vmem:[%s1 + $0x18] sm:$0xf]
        %v299 = vld [vmem:[%s1 + $0x1c] sm:$0xf]
        %v300 = vld [vmem:[%s1 + $0x20] sm:$0xf]
        %v301 = vld [vmem:[%s1 + $0x24] sm:$0xf]
        %v302 = vld [vmem:[%s1 + $0x28] sm:$0xf]
        %v303 = vld [vmem:[%s1 + $0x2c] sm:$0xf]
        %v304 = vld [vmem:[%s1 + $0x30] sm:$0xf]
        %v305 = vld [vmem:[%s1 + $0x34] sm:$0xf]
        %v306 = vld [vmem:[%s1 + $0x38] sm:$0xf]
        %v307 = vld [vmem:[%s1 + $0x3c] sm:$0xf]
        %s308 = scalar_lea.vmem %s1, 128
        %v309 = vld [vmem:[%s308] sm:$0xf]
        %v310 = vld [vmem:[%s308 + $0x4] sm:$0xf]
        %v311 = vld [vmem:[%s308 + $0x8] sm:$0xf]
        %v312 = vld [vmem:[%s308 + $0xc] sm:$0xf]
        %v313 = vld [vmem:[%s308 + $0x10] sm:$0xf]
        %v314 = vld [vmem:[%s308 + $0x14] sm:$0xf]
        %v315 = vld [vmem:[%s308 + $0x18] sm:$0xf]
        %v316 = vld [vmem:[%s308 + $0x1c] sm:$0xf]
        %v317 = vld [vmem:[%s308 + $0x20] sm:$0xf]
        %v318 = vld [vmem:[%s308 + $0x24] sm:$0xf]
        %v319 = vld [vmem:[%s308 + $0x28] sm:$0xf]
        %v320 = vld [vmem:[%s308 + $0x2c] sm:$0xf]
        %v321 = vld [vmem:[%s308 + $0x30] sm:$0xf]
        %v322 = vld [vmem:[%s308 + $0x34] sm:$0xf]
        %v323 = vld [vmem:[%s308 + $0x38] sm:$0xf]
        %v324 = vld [vmem:[%s308 + $0x3c] sm:$0xf]
        %v328 = vunpack.c.l.b16 %v289
        %v329 = vunpack.c.l.b16 %v290
        %v330 = vunpack.c.l.b16 %v291
        %v331 = vpack.c.b16 %v329, %v328
        %v332 = vpack.c.b16 %v330, %v330
        %vm333 = vsmask.f32 7424
        %v335 = vshrl.u32 %v331, 16
        %v337 = vshll.u32 %v331, 16
        %v339 = vrot.slane %v337, 1
        %v340 = vor.u32 %v335, %v339
        %v342 = vshll.u32 %v332, 16
        %v344 = vrot.slane %v342, 1
        %v345 = vsel %vm333, %v340, %v344
        %v363 = vunpack.c.l.b16 %v309
        %v364 = vunpack.c.l.b16 %v310
        %v365 = vunpack.c.l.b16 %v311
        %v366 = vunpack.c.l.b16 %v312
        %v367 = vunpack.c.l.b16 %v313
        %v368 = vunpack.c.l.b16 %v314
        %v369 = vunpack.c.l.b16 %v315
        %v370 = vunpack.c.l.b16 %v316
        %v371 = vunpack.c.l.b16 %v317
        %v372 = vunpack.c.l.b16 %v318
        %v373 = vunpack.c.l.b16 %v319
        %v374 = vunpack.c.l.b16 %v320
        %v375 = vunpack.c.l.b16 %v321
        %v376 = vunpack.c.l.b16 %v322
        %v377 = vunpack.c.l.b16 %v323
        %v378 = vunpack.c.l.b16 %v324
        %v379 = vpack.c.b16 %v364, %v363
        %v380 = vpack.c.b16 %v366, %v365
        %v381 = vpack.c.b16 %v368, %v367
        %v382 = vpack.c.b16 %v370, %v369
        %v383 = vpack.c.b16 %v372, %v371
        %v384 = vpack.c.b16 %v374, %v373
        %v385 = vpack.c.b16 %v376, %v375
        %v386 = vpack.c.b16 %v378, %v377
        %395 = vmatprep.subr.bf16.mxu0 0
        %396 = vmatpush1.bf16.msra.mxu0 %v379
        %397 = vmatprep.subr.bf16.mxu0 0
        %398 = vmatpush1.bf16.msra.mxu0 %v380
        %399 = vmatprep.subr.bf16.mxu0 0
        %400 = vmatpush1.bf16.msra.mxu0 %v381
        %401 = vmatprep.subr.bf16.mxu0 0
        %402 = vmatpush1.bf16.msra.mxu0 %v382
        %403 = vmatprep.subr.bf16.mxu0 0
        %404 = vmatpush1.bf16.msra.mxu0 %v383
        %405 = vmatprep.subr.bf16.mxu0 0
        %406 = vmatpush1.bf16.msra.mxu0 %v384
        %407 = vmatprep.subr.bf16.mxu0 0
        %408 = vmatpush1.bf16.msra.mxu0 %v385
        %409 = vmatprep.subr.bf16.mxu0 0
        %410 = vmatpush1.bf16.msra.mxu0 %v386
        %411 = vmatprep.subr.bf16.mxu0 0
        %412 = vmatpush1.bf16.msra.mxu0 0
        %413 = vmatprep.subr.bf16.mxu0 0
        %414 = vmatpush1.bf16.msra.mxu0 0
        %415 = vmatprep.subr.bf16.mxu0 0
        %416 = vmatpush1.bf16.msra.mxu0 0
        %417 = vmatprep.subr.bf16.mxu0 0
        %418 = vmatpush1.bf16.msra.mxu0 0
        %419 = vmatprep.subr.bf16.mxu0 0
        %420 = vmatpush1.bf16.msra.mxu0 0
        %421 = vmatprep.subr.bf16.mxu0 0
        %422 = vmatpush1.bf16.msra.mxu0 0
        %423 = vmatprep.subr.bf16.mxu0 0
        %424 = vmatpush1.bf16.msra.mxu0 0
        %425 = vmatprep.subr.bf16.mxu0 0
        %426 = vmatpush1.bf16.msra.mxu0 0
        %427 = vmatprep.mubr.bf16.mxu0 0
        %428 = vmatmul.mubr.bf16.gmra.mrb[0].mxu0 %v345
        %v429 = vpop.f32.mrb[0].mxu0
        %v430 = vadd.f32 0.0, %v429
        %v431 = vpop.f32.mrb[0].mxu0
        %v432 = vpop.f32.mrb[0].mxu0
        %v433 = vadd.f32 0.0, %v432
        %v434 = vpop.f32.mrb[0].mxu0
        %435 = vdwg.mxu0
        %v453 = vunpack.c.l.b16 %v292
        %v454 = vunpack.c.l.b16 %v293
        %v455 = vunpack.c.l.b16 %v294
        %v456 = vunpack.c.l.b16 %v295
        %v457 = vunpack.c.l.b16 %v296
        %v458 = vunpack.c.l.b16 %v297
        %v459 = vunpack.c.l.b16 %v298
        %v460 = vunpack.c.l.b16 %v299
        %v461 = vunpack.c.l.b16 %v300
        %v462 = vunpack.c.l.b16 %v301
        %v463 = vunpack.c.l.b16 %v302
        %v464 = vunpack.c.l.b16 %v303
        %v465 = vunpack.c.l.b16 %v304
        %v466 = vunpack.c.l.b16 %v305
        %v467 = vunpack.c.l.b16 %v306
        %v468 = vunpack.c.l.b16 %v307
        %v469 = vpack.c.b16 %v454, %v453
        %v470 = vpack.c.b16 %v456, %v455
        %v471 = vpack.c.b16 %v458, %v457
        %v472 = vpack.c.b16 %v460, %v459
        %v473 = vpack.c.b16 %v462, %v461
        %v474 = vpack.c.b16 %v464, %v463
        %v475 = vpack.c.b16 %v466, %v465
        %v476 = vpack.c.b16 %v468, %v467
        %485 = vmatprep.subr.bf16.mxu0 0
        %486 = vmatpush1.bf16.msra.mxu0 %v469
        %487 = vmatprep.subr.bf16.mxu0 0
        %488 = vmatpush1.bf16.msra.mxu0 %v470
        %489 = vmatprep.subr.bf16.mxu0 0
        %490 = vmatpush1.bf16.msra.mxu0 %v471
        %491 = vmatprep.subr.bf16.mxu0 0
        %492 = vmatpush1.bf16.msra.mxu0 %v472
        %493 = vmatprep.subr.bf16.mxu0 0
        %494 = vmatpush1.bf16.msra.mxu0 %v473
        %495 = vmatprep.subr.bf16.mxu0 0
        %496 = vmatpush1.bf16.msra.mxu0 %v474
        %497 = vmatprep.subr.bf16.mxu0 0
        %498 = vmatpush1.bf16.msra.mxu0 %v475
        %499 = vmatprep.subr.bf16.mxu0 0
        %500 = vmatpush1.bf16.msra.mxu0 %v476
        %501 = vmatprep.subr.bf16.mxu0 0
        %502 = vmatpush1.bf16.msra.mxu0 0
        %503 = vmatprep.subr.bf16.mxu0 0
        %504 = vmatpush1.bf16.msra.mxu0 0
        %505 = vmatprep.subr.bf16.mxu0 0
        %506 = vmatpush1.bf16.msra.mxu0 0
        %507 = vmatprep.subr.bf16.mxu0 0
        %508 = vmatpush1.bf16.msra.mxu0 0
        %509 = vmatprep.subr.bf16.mxu0 0
        %510 = vmatpush1.bf16.msra.mxu0 0
        %511 = vmatprep.subr.bf16.mxu0 0
        %512 = vmatpush1.bf16.msra.mxu0 0
        %513 = vmatprep.subr.bf16.mxu0 0
        %514 = vmatpush1.bf16.msra.mxu0 0
        %515 = vmatprep.subr.bf16.mxu0 0
        %516 = vmatpush1.bf16.msra.mxu0 0
        %517 = vmatprep.mubr.bf16.mxu0 0
        %518 = vmatmul.mubr.bf16.gmra.mrb[0].mxu0 %v331
        %v519 = vpop.f32.mrb[0].mxu0
        %v520 = vadd.f32 %v430, %v519
        %v521 = vpop.f32.mrb[0].mxu0
        %v522 = vpop.f32.mrb[0].mxu0
        %v523 = vadd.f32 %v433, %v522
        %v524 = vpop.f32.mrb[0].mxu0
        %525 = vdwg.mxu0
        %s526 = sadd.s32 %s285, 3
        %s527 = smul.addr %s526, 4
        %s528 = scalar_lea.vmem %s246, %s527 [#allocation2]
        %v529 = vld [vmem:[%s528] sm:$0xf]
        %v530 = vld [vmem:[%s528 + $0x4] sm:$0xf]
        %s531 = scalar_lea.vmem %s1, 64
        %v532 = vld [vmem:[%s531] sm:$0xf]
        %v533 = vld [vmem:[%s531 + $0x4] sm:$0xf]
        %v534 = vld [vmem:[%s531 + $0x8] sm:$0xf]
        %v535 = vld [vmem:[%s531 + $0xc] sm:$0xf]
        %v536 = vld [vmem:[%s531 + $0x10] sm:$0xf]
        %v537 = vld [vmem:[%s531 + $0x14] sm:$0xf]
        %v538 = vld [vmem:[%s531 + $0x18] sm:$0xf]
        %v539 = vld [vmem:[%s531 + $0x1c] sm:$0xf]
        %v540 = vld [vmem:[%s531 + $0x20] sm:$0xf]
        %v541 = vld [vmem:[%s531 + $0x24] sm:$0xf]
        %v542 = vld [vmem:[%s531 + $0x28] sm:$0xf]
        %v543 = vld [vmem:[%s531 + $0x2c] sm:$0xf]
        %v544 = vld [vmem:[%s531 + $0x30] sm:$0xf]
        %v545 = vld [vmem:[%s531 + $0x34] sm:$0xf]
        %v546 = vld [vmem:[%s531 + $0x38] sm:$0xf]
        %v547 = vld [vmem:[%s531 + $0x3c] sm:$0xf]
        %v550 = vunpack.c.l.b16 %v529
        %v551 = vunpack.c.l.b16 %v530
        %v552 = vpack.c.b16 %v551, %v550
        %v570 = vunpack.c.l.b16 %v532
        %v571 = vunpack.c.l.b16 %v533
        %v572 = vunpack.c.l.b16 %v534
        %v573 = vunpack.c.l.b16 %v535
        %v574 = vunpack.c.l.b16 %v536
        %v575 = vunpack.c.l.b16 %v537
        %v576 = vunpack.c.l.b16 %v538
        %v577 = vunpack.c.l.b16 %v539
        %v578 = vunpack.c.l.b16 %v540
        %v579 = vunpack.c.l.b16 %v541
        %v580 = vunpack.c.l.b16 %v542
        %v581 = vunpack.c.l.b16 %v543
        %v582 = vunpack.c.l.b16 %v544
        %v583 = vunpack.c.l.b16 %v545
        %v584 = vunpack.c.l.b16 %v546
        %v585 = vunpack.c.l.b16 %v547
        %v586 = vpack.c.b16 %v571, %v570
        %v587 = vpack.c.b16 %v573, %v572
        %v588 = vpack.c.b16 %v575, %v574
        %v589 = vpack.c.b16 %v577, %v576
        %v590 = vpack.c.b16 %v579, %v578
        %v591 = vpack.c.b16 %v581, %v580
        %v592 = vpack.c.b16 %v583, %v582
        %v593 = vpack.c.b16 %v585, %v584
        %602 = vmatprep.subr.bf16.mxu0 0
        %603 = vmatpush1.bf16.msra.mxu0 %v586
        %604 = vmatprep.subr.bf16.mxu0 0
        %605 = vmatpush1.bf16.msra.mxu0 %v587
        %606 = vmatprep.subr.bf16.mxu0 0
        %607 = vmatpush1.bf16.msra.mxu0 %v588
        %608 = vmatprep.subr.bf16.mxu0 0
        %609 = vmatpush1.bf16.msra.mxu0 %v589
        %610 = vmatprep.subr.bf16.mxu0 0
        %611 = vmatpush1.bf16.msra.mxu0 %v590
        %612 = vmatprep.subr.bf16.mxu0 0
        %613 = vmatpush1.bf16.msra.mxu0 %v591
        %614 = vmatprep.subr.bf16.mxu0 0
        %615 = vmatpush1.bf16.msra.mxu0 %v592
        %616 = vmatprep.subr.bf16.mxu0 0
        %617 = vmatpush1.bf16.msra.mxu0 %v593
        %618 = vmatprep.subr.bf16.mxu0 0
        %619 = vmatpush1.bf16.msra.mxu0 0
        %620 = vmatprep.subr.bf16.mxu0 0
        %621 = vmatpush1.bf16.msra.mxu0 0
        %622 = vmatprep.subr.bf16.mxu0 0
        %623 = vmatpush1.bf16.msra.mxu0 0
        %624 = vmatprep.subr.bf16.mxu0 0
        %625 = vmatpush1.bf16.msra.mxu0 0
        %626 = vmatprep.subr.bf16.mxu0 0
        %627 = vmatpush1.bf16.msra.mxu0 0
        %628 = vmatprep.subr.bf16.mxu0 0
        %629 = vmatpush1.bf16.msra.mxu0 0
        %630 = vmatprep.subr.bf16.mxu0 0
        %631 = vmatpush1.bf16.msra.mxu0 0
        %632 = vmatprep.subr.bf16.mxu0 0
        %633 = vmatpush1.bf16.msra.mxu0 0
        %634 = vmatprep.mubr.bf16.mxu0 0
        %635 = vmatmul.mubr.bf16.gmra.mrb[0].mxu0 %v552
        %v636 = vpop.f32.mrb[0].mxu0
        %v637 = vadd.f32 0.0, %v636
        %v638 = vpop.f32.mrb[0].mxu0
        %v639 = vpop.f32.mrb[0].mxu0
        %v640 = vadd.f32 0.0, %v639
        %v641 = vpop.f32.mrb[0].mxu0
        %642 = vdwg.mxu0
        %v643 = vadd.f32 %v520, %v637
        %v644 = vadd.f32 %v523, %v640
        %v645 = vld [vmem:[%s2] sm:$0x1]
        %v647 = vlaneseq
        %v648 = vshrl.u32 %v647, 7
        %v649 = vsub.s32 0, %v648
        %v650 = vrot.slane %v645, %v649
        %v652 = vmul.f32 %v643, %v650
        %v653 = vmul.f32 %v644, %v650
        %v654 = vld [vmem:[%s3] sm:$0x1]
        %v656 = vlaneseq
        %v657 = vshrl.u32 %v656, 7
        %v658 = vsub.s32 0, %v657
        %v659 = vrot.slane %v654, %v658
        %v661 = vadd.f32 %v652, %v659
        %v662 = vadd.f32 %v653, %v659
        %v663 = vmax.f32 %v661, 0.0
        %v664 = vmax.f32 %v662, 0.0
        %v665 = vpack.c.bf16 %v664, %v663
        %v667 = vunpack.c.l.b16 %v665
        %v668 = vunpack.c.h.b16 %v665
        %v669 = vpack.c.b16 %v667, %v667
        %v670 = vpack.c.b16 %v668, %v668
        %673 = vst [vmem:[%s281] sm:$0xf] %v669
        %674 = vst [vmem:[%s281 + $0x4] sm:$0xf] %v670
        %s675 = smul.u32 2, %s20
        %p676 = scmp.lt.s32.totalorder %s19, 1
        %s677 = scalar_select %p676, %s19, 1
        %p678 = scmp.lt.s32.totalorder %s675, 1
        %s679 = scalar_select %p678, %s675, 1
        %s680 = smul.addr %s677, 2
        %s681 = sadd.s32 %s679, %s680
        %s682 = smul.addr %s681, 4
        %s683 = scalar_lea.vmem %s4, %s682
        // Predicated region
        $region78: #{proj_resnet_forward.13} parent=72 // pred_check
          %p684 = pneg %p136
        $region79: #{proj_resnet_forward.13} parent=72 // pred_check_branch
          %686 = sbr.rel (%p684) target = $region81
        $region80: #{proj_resnet_forward.13} parent=72 // pred_region
          %s687 = smul.u32 2, %s20
        $region81: #{proj_resnet_forward.13} parent=72 // pred_fallthru
          _
      $region73: #{proj_resnet_forward.13} parent=5 // pred_fallthru
        _
      %p688 = scmp.le.s32.totalorder 2, %s10
      // Predicated region
      $region82: #{proj_resnet_forward.13} parent=5 // pred_check
        %p689 = pneg %p688
      $region83: #{proj_resnet_forward.13} parent=5 // pred_check_branch
        %691 = sbr.rel (%p689) target = $region85
      $region84: #{proj_resnet_forward.13} parent=5 // pred_region
        %s692 = ssub.s32 %s10, 2
        // Predicated region
        $region86: #{proj_resnet_forward.13} parent=84 // pred_check
          %p693 = pneg %p142
        $region87: #{proj_resnet_forward.13} parent=84 // pred_check_branch
          %695 = sbr.rel (%p693) target = $region89
        $region88: #{proj_resnet_forward.13} parent=84 // pred_region
          %s696 = smul.u32 2, %s22
          %p697 = scmp.lt.s32.totalorder %s21, 1
          %s698 = scalar_select %p697, %s21, 1
          %p699 = scmp.lt.s32.totalorder %s696, 1
          %s700 = scalar_select %p699, %s696, 1
          %s701 = smul.addr %s698, 2
          %s702 = sadd.s32 %s700, %s701
          %s703 = smul.addr %s702, 4
          %s704 = scalar_lea.vmem %s4, %s703
        $region89: #{proj_resnet_forward.13} parent=84 // pred_fallthru
          _
      $region85: #{proj_resnet_forward.13} parent=5 // pred_fallthru
        _
    $region6: #{proj_resnet_forward.13} parent=1 // loop_footer
      %s14 = sadd.s32 1, %s10
    $region7: #{proj_resnet_forward.13} parent=1 // loop_footer_branch
      %9 = sbr.rel target = $region3
    $region8: #{proj_resnet_forward.13} parent=1 // loop_exit
      _

// kernel: proj_resnet_forward.14
$region0: #{proj_resnet_forward.14}
  #allocation0 [shape = 'u32[]', space=smem, size = 0x4, offset = 0x4, fixed_abs, tag = 'smem constant byte address 0x4 - core index']
  #allocation1 [shape = 'u32[144,128]{1,0:T(1,128)}', space=vmem, size = 0x12000, scoped, tag = 'internal scratch']
  %s0 = inlined_call_operand.vmem [shape: bf16[1,2,18,128], index: 0, kind: input, shape index: {}]
  %s1 = inlined_call_operand.vmem [shape: bf16[2,2,17,128], index: 1, kind: input, shape index: {}]
  %s2 = inlined_call_operand.vmem [shape: bf16[3,128,128], index: 2, kind: input, shape index: {}]
  %s3 = inlined_call_operand.vmem [shape: bf16[128,128], index: 3, kind: input, shape index: {}]
  %s4 = inlined_call_operand.vmem [shape: f32[1,128], index: 4, kind: input, shape index: {}]
  %s5 = inlined_call_operand.vmem [shape: f32[1,128], index: 5, kind: input, shape index: {}]
  %s6 = inlined_call_operand.vmem [shape: f32[1,128], index: 6, kind: input, shape index: {}]
  %s7 = inlined_call_operand.vmem [shape: bf16[2,16,128], index: 7, kind: output, shape index: {}]
  %s8 = sld [smem:[#allocation0]]
  $region61: #{proj_resnet_forward.14} parent=0
    _
  %s10 = ssub.s32 1, %s8
  %s11 = scalar_select 0, %s10, %s8
  loop: start=0, step=1, limit=4
  $region2: #{proj_resnet_forward.14} parent=0 // loop_pre_header
    _
  $region3: #{proj_resnet_forward.14} parent=0 // loop_header
    %s13 = sphi 0, %s17
    %p14 = scmp.ge.s32.totalorder %s13, 4
    %s20 = sphi 0, %s32
    %s21 = sphi 0, %s28
    %s22 = sphi 0, %s20
    %s23 = sphi 0, %s21
    %s24 = sphi 0, %s22
    %s25 = sphi 0, %s23
    %s35 = sphi 0, %s37
    %s38 = sphi 0, %s35
    %s39 = sphi 0, %s38
    %s55 = sphi 0, %s39
    %s61 = sphi 0, %s63
    %s64 = sphi 0, %s61
    %s65 = sphi 0, %s64
    %s81 = sphi 0, %s65
    %s85 = sphi 0, %s85
    %s87 = sphi 0, %s85
    %s88 = sphi 0, %s87
    %s102 = sphi 0, %s88
    %s106 = sphi 0, %s106
    %s108 = sphi 0, %s106
    %s109 = sphi 0, %s108
    %s123 = sphi 0, %s109
    %s127 = sphi 0, %s127
    %s129 = sphi 0, %s127
    %s130 = sphi 0, %s129
    %s144 = sphi 0, %s130
    %s148 = sphi 0, %s148
    %s150 = sphi 0, %s148
    %s151 = sphi 0, %s150
    %s165 = sphi 0, %s151
    %s169 = sphi 0, %s169
    %s171 = sphi 0, %s169
    %s172 = sphi 0, %s171
    %s186 = sphi 0, %s172
    %s194 = sphi 0, %s196
    %s197 = sphi 0, %s194
    %s198 = sphi 0, %s197
    %s214 = sphi 0, %s198
  $region4: #{proj_resnet_forward.14} parent=0 // loop_header_branch
    %16 = sbr.rel (%p14) target = $region8
  $region5: #{proj_resnet_forward.14} parent=0 // loop_body
    %s18 = ssub.s32 %s13, 1
    %s19 = ssub.s32 %s13, 2
    %s26 = sadd.s32 1, %s21
    %p27 = scmp.ge.s32.totalorder %s26, 1
    %s28 = scalar_select %p27, 0, %s26
    %s29 = sadd.s32 1, %s20
    %s30 = scalar_select %p27, %s29, %s20
    %p31 = scmp.ge.s32.totalorder %s30, 2
    %s32 = scalar_select %p31, 0, %s30
    %s33 = ssub.s32 %s20, %s32
    %p34 = scmp.eq.s32.totalorder %s33, 0
    %s36 = sadd.s32 %s35, 1
    %s37 = scalar_select %p34, %s35, %s36
    %p40 = pneg %p34
    %p41 = scmp.eq.s32.totalorder %s13, 1
    %p42 = por %p40, %p41
    %p43 = scmp.ne.s32.totalorder %s35, %s38
    %p44 = scmp.eq.s32.totalorder %s13, 0
    %p45 = por %p43, %p44
    %p46 = scmp.ne.s32.totalorder %s35, %s38
    %p47 = scmp.eq.s32.totalorder %s18, 1
    %p48 = por %p46, %p47
    %p49 = scmp.ne.s32.totalorder %s38, %s39
    %p50 = scmp.eq.s32.totalorder %s18, 0
    %p51 = por %p49, %p50
    %p52 = scmp.ne.s32.totalorder %s38, %s39
    %p53 = scmp.eq.s32.totalorder %s19, 1
    %p54 = por %p52, %p53
    %p56 = scmp.ne.s32.totalorder %s39, %s55
    %p57 = scmp.eq.s32.totalorder %s19, 0
    %p58 = por %p56, %p57
    %s59 = ssub.s32 %s20, %s32
    %p60 = scmp.eq.s32.totalorder %s59, 0
    %s62 = sadd.s32 %s61, 1
    %s63 = scalar_select %p60, %s61, %s62
    %p66 = pneg %p60
    %p67 = scmp.eq.s32.totalorder %s13, 1
    %p68 = por %p66, %p67
    %p69 = scmp.ne.s32.totalorder %s61, %s64
    %p70 = scmp.eq.s32.totalorder %s13, 0
    %p71 = por %p69, %p70
    %p72 = scmp.ne.s32.totalorder %s61, %s64
    %p73 = scmp.eq.s32.totalorder %s18, 1
    %p74 = por %p72, %p73
    %p75 = scmp.ne.s32.totalorder %s64, %s65
    %p76 = scmp.eq.s32.totalorder %s18, 0
    %p77 = por %p75, %p76
    %p78 = scmp.ne.s32.totalorder %s64, %s65
    %p79 = scmp.eq.s32.totalorder %s19, 1
    %p80 = por %p78, %p79
    %p82 = scmp.ne.s32.totalorder %s65, %s81
    %p83 = scmp.eq.s32.totalorder %s19, 0
    %p84 = por %p82, %p83
    %s86 = sadd.s32 %s85, 1
    %p89 = scmp.eq.s32.totalorder %s13, 1
    %p90 = scmp.ne.s32.totalorder %s85, %s87
    %p91 = scmp.eq.s32.totalorder %s13, 0
    %p92 = por %p90, %p91
    %p93 = scmp.ne.s32.totalorder %s85, %s87
    %p94 = scmp.eq.s32.totalorder %s18, 1
    %p95 = por %p93, %p94
    %p96 = scmp.ne.s32.totalorder %s87, %s88
    %p97 = scmp.eq.s32.totalorder %s18, 0
    %p98 = por %p96, %p97
    %p99 = scmp.ne.s32.totalorder %s87, %s88
    %p100 = scmp.eq.s32.totalorder %s19, 1
    %p101 = por %p99, %p100
    %p103 = scmp.ne.s32.totalorder %s88, %s102
    %p104 = scmp.eq.s32.totalorder %s19, 0
    %p105 = por %p103, %p104
    %s107 = sadd.s32 %s106, 1
    %p110 = scmp.eq.s32.totalorder %s13, 1
    %p111 = scmp.ne.s32.totalorder %s106, %s108
    %p112 = scmp.eq.s32.totalorder %s13, 0
    %p113 = por %p111, %p112
    %p114 = scmp.ne.s32.totalorder %s106, %s108
    %p115 = scmp.eq.s32.totalorder %s18, 1
    %p116 = por %p114, %p115
    %p117 = scmp.ne.s32.totalorder %s108, %s109
    %p118 = scmp.eq.s32.totalorder %s18, 0
    %p119 = por %p117, %p118
    %p120 = scmp.ne.s32.totalorder %s108, %s109
    %p121 = scmp.eq.s32.totalorder %s19, 1
    %p122 = por %p120, %p121
    %p124 = scmp.ne.s32.totalorder %s109, %s123
    %p125 = scmp.eq.s32.totalorder %s19, 0
    %p126 = por %p124, %p125
    %s128 = sadd.s32 %s127, 1
    %p131 = scmp.eq.s32.totalorder %s13, 1
    %p132 = scmp.ne.s32.totalorder %s127, %s129
    %p133 = scmp.eq.s32.totalorder %s13, 0
    %p134 = por %p132, %p133
    %p135 = scmp.ne.s32.totalorder %s127, %s129
    %p136 = scmp.eq.s32.totalorder %s18, 1
    %p137 = por %p135, %p136
    %p138 = scmp.ne.s32.totalorder %s129, %s130
    %p139 = scmp.eq.s32.totalorder %s18, 0
    %p140 = por %p138, %p139
    %p141 = scmp.ne.s32.totalorder %s129, %s130
    %p142 = scmp.eq.s32.totalorder %s19, 1
    %p143 = por %p141, %p142
    %p145 = scmp.ne.s32.totalorder %s130, %s144
    %p146 = scmp.eq.s32.totalorder %s19, 0
    %p147 = por %p145, %p146
    %s149 = sadd.s32 %s148, 1
    %p152 = scmp.eq.s32.totalorder %s13, 1
    %p153 = scmp.ne.s32.totalorder %s148, %s150
    %p154 = scmp.eq.s32.totalorder %s13, 0
    %p155 = por %p153, %p154
    %p156 = scmp.ne.s32.totalorder %s148, %s150
    %p157 = scmp.eq.s32.totalorder %s18, 1
    %p158 = por %p156, %p157
    %p159 = scmp.ne.s32.totalorder %s150, %s151
    %p160 = scmp.eq.s32.totalorder %s18, 0
    %p161 = por %p159, %p160
    %p162 = scmp.ne.s32.totalorder %s150, %s151
    %p163 = scmp.eq.s32.totalorder %s19, 1
    %p164 = por %p162, %p163
    %p166 = scmp.ne.s32.totalorder %s151, %s165
    %p167 = scmp.eq.s32.totalorder %s19, 0
    %p168 = por %p166, %p167
    %s170 = sadd.s32 %s169, 1
    %p173 = scmp.eq.s32.totalorder %s13, 1
    %p174 = scmp.ne.s32.totalorder %s169, %s171
    %p175 = scmp.eq.s32.totalorder %s13, 0
    %p176 = por %p174, %p175
    %p177 = scmp.ne.s32.totalorder %s169, %s171
    %p178 = scmp.eq.s32.totalorder %s18, 1
    %p179 = por %p177, %p178
    %p180 = scmp.ne.s32.totalorder %s171, %s172
    %p181 = scmp.eq.s32.totalorder %s18, 0
    %p182 = por %p180, %p181
    %p183 = scmp.ne.s32.totalorder %s171, %s172
    %p184 = scmp.eq.s32.totalorder %s19, 1
    %p185 = por %p183, %p184
    %p187 = scmp.ne.s32.totalorder %s172, %s186
    %p188 = scmp.eq.s32.totalorder %s19, 0
    %p189 = por %p187, %p188
    %s190 = ssub.s32 %s20, %s32
    %s191 = ssub.s32 %s21, %s28
    %s192 = sor.u32 %s190, %s191
    %p193 = scmp.eq.s32.totalorder %s192, 0
    %s195 = sadd.s32 %s194, 1
    %s196 = scalar_select %p193, %s194, %s195
    %p199 = pneg %p193
    %p200 = scmp.eq.s32.totalorder %s13, 1
    %p201 = por %p199, %p200
    %p202 = scmp.ne.s32.totalorder %s194, %s197
    %p203 = scmp.eq.s32.totalorder %s13, 0
    %p204 = por %p202, %p203
    %p205 = scmp.ne.s32.totalorder %s194, %s197
    %p206 = scmp.eq.s32.totalorder %s18, 1
    %p207 = por %p205, %p206
    %p208 = scmp.ne.s32.totalorder %s197, %s198
    %p209 = scmp.eq.s32.totalorder %s18, 0
    %p210 = por %p208, %p209
    %p211 = scmp.ne.s32.totalorder %s197, %s198
    %p212 = scmp.eq.s32.totalorder %s19, 1
    %p213 = por %p211, %p212
    %p215 = scmp.ne.s32.totalorder %s198, %s214
    %p216 = scmp.eq.s32.totalorder %s19, 0
    %p217 = por %p215, %p216
    %p218 = scmp.le.s32.totalorder 1, %s13
    %p219 = scmp.lt.s32.totalorder %s13, 3
    %p220 = pnand %p218, %p219
    %p221 = pneg %p220
    // Predicated region
    $region9: #{proj_resnet_forward.14} parent=5 // pred_check
      _
    $region10: #{proj_resnet_forward.14} parent=5 // pred_check_branch
      %223 = sbr.rel (%p220) target = $region12
    $region11: #{proj_resnet_forward.14} parent=5 // pred_region
      %s224 = ssub.s32 %s13, 1
      // Predicated region
      $region13: #{proj_resnet_forward.14} parent=11 // pred_check
        %p225 = pneg %p98
      $region14: #{proj_resnet_forward.14} parent=11 // pred_check_branch
        %227 = sbr.rel (%p225) target = $region16
      $region15: #{proj_resnet_forward.14} parent=11 // pred_region
        _
      $region16: #{proj_resnet_forward.14} parent=11 // pred_fallthru
        _
      // Predicated region
      $region17: #{proj_resnet_forward.14} parent=11 // pred_check
        %p228 = pneg %p119
      $region18: #{proj_resnet_forward.14} parent=11 // pred_check_branch
        %230 = sbr.rel (%p228) target = $region20
      $region19: #{proj_resnet_forward.14} parent=11 // pred_region
        _
      $region20: #{proj_resnet_forward.14} parent=11 // pred_fallthru
        _
      // Predicated region
      $region21: #{proj_resnet_forward.14} parent=11 // pred_check
        %p231 = pneg %p140
      $region22: #{proj_resnet_forward.14} parent=11 // pred_check_branch
        %233 = sbr.rel (%p231) target = $region24
      $region23: #{proj_resnet_forward.14} parent=11 // pred_region
        _
      $region24: #{proj_resnet_forward.14} parent=11 // pred_fallthru
        _
      // Predicated region
      $region25: #{proj_resnet_forward.14} parent=11 // pred_check
        %p234 = pneg %p161
      $region26: #{proj_resnet_forward.14} parent=11 // pred_check_branch
        %236 = sbr.rel (%p234) target = $region28
      $region27: #{proj_resnet_forward.14} parent=11 // pred_region
        _
      $region28: #{proj_resnet_forward.14} parent=11 // pred_fallthru
        _
      // Predicated region
      $region29: #{proj_resnet_forward.14} parent=11 // pred_check
        %p237 = pneg %p182
      $region30: #{proj_resnet_forward.14} parent=11 // pred_check_branch
        %239 = sbr.rel (%p237) target = $region32
      $region31: #{proj_resnet_forward.14} parent=11 // pred_region
        _
      $region32: #{proj_resnet_forward.14} parent=11 // pred_fallthru
        _
    $region12: #{proj_resnet_forward.14} parent=5 // pred_fallthru
      _
    %p240 = scmp.lt.s32.totalorder %s13, 2
    // Predicated region
    $region33: #{proj_resnet_forward.14} parent=5 // pred_check
      %p241 = pneg %p240
    $region34: #{proj_resnet_forward.14} parent=5 // pred_check_branch
      %243 = sbr.rel (%p241) target = $region36
    $region35: #{proj_resnet_forward.14} parent=5 // pred_region
      // Predicated region
      $region37: #{proj_resnet_forward.14} parent=35 // pred_check
        %p244 = pneg %p45
      $region38: #{proj_resnet_forward.14} parent=35 // pred_check_branch
        %246 = sbr.rel (%p244) target = $region40
      $region39: #{proj_resnet_forward.14} parent=35 // pred_region
        %p247 = scmp.lt.s32.totalorder %s20, 1
        %s248 = scalar_select %p247, %s20, 1
        %s249 = smul.addr %s248, 3
        %s250 = smul.addr %s249, 4
        %s251 = scalar_lea.vmem %s0, %s250
      $region40: #{proj_resnet_forward.14} parent=35 // pred_fallthru
        _
      // Predicated region
      $region41: #{proj_resnet_forward.14} parent=35 // pred_check
        %p252 = pneg %p71
      $region42: #{proj_resnet_forward.14} parent=35 // pred_check_branch
        %254 = sbr.rel (%p252) target = $region44
      $region43: #{proj_resnet_forward.14} parent=35 // pred_region
        %p255 = scmp.lt.s32.totalorder %s20, 1
        %s256 = scalar_select %p255, %s20, 1
        %s257 = smul.addr %s256, 3
        %s258 = sadd.s32 %s257, 6
        %s259 = smul.addr %s258, 4
        %s260 = scalar_lea.vmem %s1, %s259
      $region44: #{proj_resnet_forward.14} parent=35 // pred_fallthru
        _
    $region36: #{proj_resnet_forward.14} parent=5 // pred_fallthru
      _
    %p261 = scmp.le.s32.totalorder 1, %s13
    %p262 = scmp.lt.s32.totalorder %s13, 3
    %p263 = pnand %p261, %p262
    %p264 = pneg %p263
    // Predicated region
    $region45: #{proj_resnet_forward.14} parent=5 // pred_check
      _
    $region46: #{proj_resnet_forward.14} parent=5 // pred_check_branch
      %266 = sbr.rel (%p263) target = $region48
    $region47: #{proj_resnet_forward.14} parent=5 // pred_region
      %s267 = ssub.s32 %s13, 1
      %p268 = scmp.lt.s32.totalorder %s22, 1
      %s269 = scalar_select %p268, %s22, 1
      %s270 = smul.addr %s269, 3
      %s271 = smul.addr %s270, 4
      %s272 = scalar_lea.vmem %s0, %s271
      %p273 = pneg %p51
      %p274 = pneg %p48
      %p275 = scmp.lt.s32.totalorder %s22, 1
      %s276 = scalar_select %p275, %s22, 1
      %s277 = smul.addr %s276, 3
      %s278 = sadd.s32 %s277, 6
      %s279 = smul.addr %s278, 4
      %s280 = scalar_lea.vmem %s1, %s279
      %p281 = pneg %p77
      %p282 = pneg %p74
      %p283 = pneg %p98
      %p284 = pneg %p95
      %p285 = pneg %p119
      %p286 = pneg %p116
      %p287 = pneg %p140
      %p288 = pneg %p137
      %p289 = pneg %p161
      %p290 = pneg %p158
      %p291 = pneg %p182
      %p292 = pneg %p179
      %p293 = pneg %p210
      %p294 = pneg %p207
      %s295 = smul.u32 2, %s23
      %p296 = scmp.lt.s32.totalorder %s22, 1
      %s297 = scalar_select %p296, %s22, 1
      %p298 = scmp.lt.s32.totalorder %s295, 1
      %s299 = scalar_select %p298, %s295, 1
      %s300 = smul.addr %s297, 2
      %s301 = sadd.s32 %s299, %s300
      %s302 = smul.addr %s301, 4
      %s303 = scalar_lea.vmem %s7, %s302
      %p304 = scmp.lt.s32.totalorder %s22, 1
      %s305 = scalar_select %p304, %s22, 1
      %s306 = smul.addr %s305, 3
      %s307 = smul.addr %s306, 4
      %s308 = scalar_lea.vmem %s0, %s307
      %p309 = scmp.lt.s32.totalorder %s22, 1
      %s310 = scalar_select %p309, %s22, 1
      %s311 = smul.addr %s310, 3
      %s312 = sadd.s32 %s311, 6
      %s313 = smul.addr %s312, 4
      %s314 = scalar_lea.vmem %s1, %s313
      %s315 = smul.u32 2, %s23
      %p316 = scmp.lt.s32.totalorder %s22, 1
      %s317 = scalar_select %p316, %s22, 1
      %p318 = scmp.lt.s32.totalorder %s315, 1
      %s319 = scalar_select %p318, %s315, 1
      %s320 = smul.addr %s317, 2
      %s321 = sadd.s32 %s319, %s320
      %s322 = smul.addr %s321, 4
      %s323 = scalar_lea.vmem %s7, %s322
      %s324 = smul.u32 2, %s23
      %s326 = smul.u32 %s23, 16
      %s327 = sshra.s32 %s326, 3
      %s328 = sand.u32 %s326, 7
      %s329 = smul.addr %s327, 4
      %s330 = scalar_lea.vmem %s308, %s329
      %v331 = vld [vmem:[%s330] sm:$0xf]
      %v332 = vld [vmem:[%s330 + $0x4] sm:$0xf]
      %v333 = vld [vmem:[%s330 + $0x8] sm:$0x1]
      %v334 = vld [vmem:[%s2] sm:$0xf]
      %v335 = vld [vmem:[%s2 + $0x4] sm:$0xf]
      %v336 = vld [vmem:[%s2 + $0x8] sm:$0xf]
      %v337 = vld [vmem:[%s2 + $0xc] sm:$0xf]
      %v338 = vld [vmem:[%s2 + $0x10] sm:$0xf]
      %v339 = vld [vmem:[%s2 + $0x14] sm:$0xf]
      %v340 = vld [vmem:[%s2 + $0x18] sm:$0xf]
      %v341 = vld [vmem:[%s2 + $0x1c] sm:$0xf]
      %v342 = vld [vmem:[%s2 + $0x20] sm:$0xf]
      %v343 = vld [vmem:[%s2 + $0x24] sm:$0xf]
      %v344 = vld [vmem:[%s2 + $0x28] sm:$0xf]
      %v345 = vld [vmem:[%s2 + $0x2c] sm:$0xf]
      %v346 = vld [vmem:[%s2 + $0x30] sm:$0xf]
      %v347 = vld [vmem:[%s2 + $0x34] sm:$0xf]
      %v348 = vld [vmem:[%s2 + $0x38] sm:$0xf]
      %v349 = vld [vmem:[%s2 + $0x3c] sm:$0xf]
      %s350 = scalar_lea.vmem %s2, 64
      %v351 = vld [vmem:[%s350] sm:$0xf]
      %v352 = vld [vmem:[%s350 + $0x4] sm:$0xf]
      %v353 = vld [vmem:[%s350 + $0x8] sm:$0xf]
      %v354 = vld [vmem:[%s350 + $0xc] sm:$0xf]
      %v355 = vld [vmem:[%s350 + $0x10] sm:$0xf]
      %v356 = vld [vmem:[%s350 + $0x14] sm:$0xf]
      %v357 = vld [vmem:[%s350 + $0x18] sm:$0xf]
      %v358 = vld [vmem:[%s350 + $0x1c] sm:$0xf]
      %v359 = vld [vmem:[%s350 + $0x20] sm:$0xf]
      %v360 = vld [vmem:[%s350 + $0x24] sm:$0xf]
      %v361 = vld [vmem:[%s350 + $0x28] sm:$0xf]
      %v362 = vld [vmem:[%s350 + $0x2c] sm:$0xf]
      %v363 = vld [vmem:[%s350 + $0x30] sm:$0xf]
      %v364 = vld [vmem:[%s350 + $0x34] sm:$0xf]
      %v365 = vld [vmem:[%s350 + $0x38] sm:$0xf]
      %v366 = vld [vmem:[%s350 + $0x3c] sm:$0xf]
      %v370 = vunpack.c.l.b16 %v331
      %v371 = vunpack.c.l.b16 %v332
      %v372 = vunpack.c.l.b16 %v333
      %v373 = vpack.c.b16 %v371, %v370
      %v374 = vpack.c.b16 %v372, %v372
      %vm375 = vsmask.f32 7424
      %v377 = vshrl.u32 %v373, 16
      %v379 = vshll.u32 %v373, 16
      %v381 = vrot.slane %v379, 1
      %v382 = vor.u32 %v377, %v381
      %v384 = vshll.u32 %v374, 16
      %v386 = vrot.slane %v384, 1
      %v387 = vsel %vm375, %v382, %v386
      %v405 = vunpack.c.l.b16 %v351
      %v406 = vunpack.c.l.b16 %v352
      %v407 = vunpack.c.l.b16 %v353
      %v408 = vunpack.c.l.b16 %v354
      %v409 = vunpack.c.l.b16 %v355
      %v410 = vunpack.c.l.b16 %v356
      %v411 = vunpack.c.l.b16 %v357
      %v412 = vunpack.c.l.b16 %v358
      %v413 = vunpack.c.l.b16 %v359
      %v414 = vunpack.c.l.b16 %v360
      %v415 = vunpack.c.l.b16 %v361
      %v416 = vunpack.c.l.b16 %v362
      %v417 = vunpack.c.l.b16 %v363
      %v418 = vunpack.c.l.b16 %v364
      %v419 = vunpack.c.l.b16 %v365
      %v420 = vunpack.c.l.b16 %v366
      %v421 = vpack.c.b16 %v406, %v405
      %v422 = vpack.c.b16 %v408, %v407
      %v423 = vpack.c.b16 %v410, %v409
      %v424 = vpack.c.b16 %v412, %v411
      %v425 = vpack.c.b16 %v414, %v413
      %v426 = vpack.c.b16 %v416, %v415
      %v427 = vpack.c.b16 %v418, %v417
      %v428 = vpack.c.b16 %v420, %v419
      %437 = vmatprep.subr.bf16.mxu0 0
      %438 = vmatpush1.bf16.msra.mxu0 %v421
      %439 = vmatprep.subr.bf16.mxu0 0
      %440 = vmatpush1.bf16.msra.mxu0 %v422
      %441 = vmatprep.subr.bf16.mxu0 0
      %442 = vmatpush1.bf16.msra.mxu0 %v423
      %443 = vmatprep.subr.bf16.mxu0 0
      %444 = vmatpush1.bf16.msra.mxu0 %v424
      %445 = vmatprep.subr.bf16.mxu0 0
      %446 = vmatpush1.bf16.msra.mxu0 %v425
      %447 = vmatprep.subr.bf16.mxu0 0
      %448 = vmatpush1.bf16.msra.mxu0 %v426
      %449 = vmatprep.subr.bf16.mxu0 0
      %450 = vmatpush1.bf16.msra.mxu0 %v427
      %451 = vmatprep.subr.bf16.mxu0 0
      %452 = vmatpush1.bf16.msra.mxu0 %v428
      %453 = vmatprep.subr.bf16.mxu0 0
      %454 = vmatpush1.bf16.msra.mxu0 0
      %455 = vmatprep.subr.bf16.mxu0 0
      %456 = vmatpush1.bf16.msra.mxu0 0
      %457 = vmatprep.subr.bf16.mxu0 0
      %458 = vmatpush1.bf16.msra.mxu0 0
      %459 = vmatprep.subr.bf16.mxu0 0
      %460 = vmatpush1.bf16.msra.mxu0 0
      %461 = vmatprep.subr.bf16.mxu0 0
      %462 = vmatpush1.bf16.msra.mxu0 0
      %463 = vmatprep.subr.bf16.mxu0 0
      %464 = vmatpush1.bf16.msra.mxu0 0
      %465 = vmatprep.subr.bf16.mxu0 0
      %466 = vmatpush1.bf16.msra.mxu0 0
      %467 = vmatprep.subr.bf16.mxu0 0
      %468 = vmatpush1.bf16.msra.mxu0 0
      %469 = vmatprep.mubr.bf16.mxu0 0
      %470 = vmatmul.mubr.bf16.gmra.mrb[0].mxu0 %v387
      %v471 = vpop.f32.mrb[0].mxu0
      %v472 = vadd.f32 0.0, %v471
      %v473 = vpop.f32.mrb[0].mxu0
      %v474 = vpop.f32.mrb[0].mxu0
      %v475 = vadd.f32 0.0, %v474
      %v476 = vpop.f32.mrb[0].mxu0
      %477 = vdwg.mxu0
      %v495 = vunpack.c.l.b16 %v334
      %v496 = vunpack.c.l.b16 %v335
      %v497 = vunpack.c.l.b16 %v336
      %v498 = vunpack.c.l.b16 %v337
      %v499 = vunpack.c.l.b16 %v338
      %v500 = vunpack.c.l.b16 %v339
      %v501 = vunpack.c.l.b16 %v340
      %v502 = vunpack.c.l.b16 %v341
      %v503 = vunpack.c.l.b16 %v342
      %v504 = vunpack.c.l.b16 %v343
      %v505 = vunpack.c.l.b16 %v344
      %v506 = vunpack.c.l.b16 %v345
      %v507 = vunpack.c.l.b16 %v346
      %v508 = vunpack.c.l.b16 %v347
      %v509 = vunpack.c.l.b16 %v348
      %v510 = vunpack.c.l.b16 %v349
      %v511 = vpack.c.b16 %v496, %v495
      %v512 = vpack.c.b16 %v498, %v497
      %v513 = vpack.c.b16 %v500, %v499
      %v514 = vpack.c.b16 %v502, %v501
      %v515 = vpack.c.b16 %v504, %v503
      %v516 = vpack.c.b16 %v506, %v505
      %v517 = vpack.c.b16 %v508, %v507
      %v518 = vpack.c.b16 %v510, %v509
      %527 = vmatprep.subr.bf16.mxu0 0
      %528 = vmatpush1.bf16.msra.mxu0 %v511
      %529 = vmatprep.subr.bf16.mxu0 0
      %530 = vmatpush1.bf16.msra.mxu0 %v512
      %531 = vmatprep.subr.bf16.mxu0 0
      %532 = vmatpush1.bf16.msra.mxu0 %v513
      %533 = vmatprep.subr.bf16.mxu0 0
      %534 = vmatpush1.bf16.msra.mxu0 %v514
      %535 = vmatprep.subr.bf16.mxu0 0
      %536 = vmatpush1.bf16.msra.mxu0 %v515
      %537 = vmatprep.subr.bf16.mxu0 0
      %538 = vmatpush1.bf16.msra.mxu0 %v516
      %539 = vmatprep.subr.bf16.mxu0 0
      %540 = vmatpush1.bf16.msra.mxu0 %v517
      %541 = vmatprep.subr.bf16.mxu0 0
      %542 = vmatpush1.bf16.msra.mxu0 %v518
      %543 = vmatprep.subr.bf16.mxu0 0
      %544 = vmatpush1.bf16.msra.mxu0 0
      %545 = vmatprep.subr.bf16.mxu0 0
      %546 = vmatpush1.bf16.msra.mxu0 0
      %547 = vmatprep.subr.bf16.mxu0 0
      %548 = vmatpush1.bf16.msra.mxu0 0
      %549 = vmatprep.subr.bf16.mxu0 0
      %550 = vmatpush1.bf16.msra.mxu0 0
      %551 = vmatprep.subr.bf16.mxu0 0
      %552 = vmatpush1.bf16.msra.mxu0 0
      %553 = vmatprep.subr.bf16.mxu0 0
      %554 = vmatpush1.bf16.msra.mxu0 0
      %555 = vmatprep.subr.bf16.mxu0 0
      %556 = vmatpush1.bf16.msra.mxu0 0
      %557 = vmatprep.subr.bf16.mxu0 0
      %558 = vmatpush1.bf16.msra.mxu0 0
      %559 = vmatprep.mubr.bf16.mxu0 0
      %560 = vmatmul.mubr.bf16.gmra.mrb[0].mxu0 %v373
      %v561 = vpop.f32.mrb[0].mxu0
      %v562 = vadd.f32 %v472, %v561
      %v563 = vpop.f32.mrb[0].mxu0
      %v564 = vpop.f32.mrb[0].mxu0
      %v565 = vadd.f32 %v475, %v564
      %v566 = vpop.f32.mrb[0].mxu0
      %567 = vdwg.mxu0
      %s568 = scalar_lea.vmem %s2, 128
      %v569 = vld [vmem:[%s568] sm:$0xf]
      %v570 = vld [vmem:[%s568 + $0x4] sm:$0xf]
      %v571 = vld [vmem:[%s568 + $0x8] sm:$0xf]
      %v572 = vld [vmem:[%s568 + $0xc] sm:$0xf]
      %v573 = vld [vmem:[%s568 + $0x10] sm:$0xf]
      %v574 = vld [vmem:[%s568 + $0x14] sm:$0xf]
      %v575 = vld [vmem:[%s568 + $0x18] sm:$0xf]
      %v576 = vld [vmem:[%s568 + $0x1c] sm:$0xf]
      %v577 = vld [vmem:[%s568 + $0x20] sm:$0xf]
      %v578 = vld [vmem:[%s568 + $0x24] sm:$0xf]
      %v579 = vld [vmem:[%s568 + $0x28] sm:$0xf]
      %v580 = vld [vmem:[%s568 + $0x2c] sm:$0xf]
      %v581 = vld [vmem:[%s568 + $0x30] sm:$0xf]
      %v582 = vld [vmem:[%s568 + $0x34] sm:$0xf]
      %v583 = vld [vmem:[%s568 + $0x38] sm:$0xf]
      %v584 = vld [vmem:[%s568 + $0x3c] sm:$0xf]
      %vm585 = vcmask 1046528
      %v586 = vrot.slane %v373, 1
      %v587 = vrot.slane %v374, 1
      %v588 = vsel %vm585, %v586, %v587
      %v606 = vunpack.c.l.b16 %v569
      %v607 = vunpack.c.l.b16 %v570
      %v608 = vunpack.c.l.b16 %v571
      %v609 = vunpack.c.l.b16 %v572
      %v610 = vunpack.c.l.b16 %v573
      %v611 = vunpack.c.l.b16 %v574
      %v612 = vunpack.c.l.b16 %v575
      %v613 = vunpack.c.l.b16 %v576
      %v614 = vunpack.c.l.b16 %v577
      %v615 = vunpack.c.l.b16 %v578
      %v616 = vunpack.c.l.b16 %v579
      %v617 = vunpack.c.l.b16 %v580
      %v618 = vunpack.c.l.b16 %v581
      %v619 = vunpack.c.l.b16 %v582
      %v620 = vunpack.c.l.b16 %v583
      %v621 = vunpack.c.l.b16 %v584
      %v622 = vpack.c.b16 %v607, %v606
      %v623 = vpack.c.b16 %v609, %v608
      %v624 = vpack.c.b16 %v611, %v610
      %v625 = vpack.c.b16 %v613, %v612
      %v626 = vpack.c.b16 %v615, %v614
      %v627 = vpack.c.b16 %v617, %v616
      %v628 = vpack.c.b16 %v619, %v618
      %v629 = vpack.c.b16 %v621, %v620
      %638 = vmatprep.subr.bf16.mxu0 0
      %639 = vmatpush1.bf16.msra.mxu0 %v622
      %640 = vmatprep.subr.bf16.mxu0 0
      %641 = vmatpush1.bf16.msra.mxu0 %v623
      %642 = vmatprep.subr.bf16.mxu0 0
      %643 = vmatpush1.bf16.msra.mxu0 %v624
      %644 = vmatprep.subr.bf16.mxu0 0
      %645 = vmatpush1.bf16.msra.mxu0 %v625
      %646 = vmatprep.subr.bf16.mxu0 0
      %647 = vmatpush1.bf16.msra.mxu0 %v626
      %648 = vmatprep.subr.bf16.mxu0 0
      %649 = vmatpush1.bf16.msra.mxu0 %v627
      %650 = vmatprep.subr.bf16.mxu0 0
      %651 = vmatpush1.bf16.msra.mxu0 %v628
      %652 = vmatprep.subr.bf16.mxu0 0
      %653 = vmatpush1.bf16.msra.mxu0 %v629
      %654 = vmatprep.subr.bf16.mxu0 0
      %655 = vmatpush1.bf16.msra.mxu0 0
      %656 = vmatprep.subr.bf16.mxu0 0
      %657 = vmatpush1.bf16.msra.mxu0 0
      %658 = vmatprep.subr.bf16.mxu0 0
      %659 = vmatpush1.bf16.msra.mxu0 0
      %660 = vmatprep.subr.bf16.mxu0 0
      %661 = vmatpush1.bf16.msra.mxu0 0
      %662 = vmatprep.subr.bf16.mxu0 0
      %663 = vmatpush1.bf16.msra.mxu0 0
      %664 = vmatprep.subr.bf16.mxu0 0
      %665 = vmatpush1.bf16.msra.mxu0 0
      %666 = vmatprep.subr.bf16.mxu0 0
      %667 = vmatpush1.bf16.msra.mxu0 0
      %668 = vmatprep.subr.bf16.mxu0 0
      %669 = vmatpush1.bf16.msra.mxu0 0
      %670 = vmatprep.mubr.bf16.mxu0 0
      %671 = vmatmul.mubr.bf16.gmra.mrb[0].mxu0 %v588
      %v672 = vpop.f32.mrb[0].mxu0
      %v673 = vadd.f32 0.0, %v672
      %v674 = vpop.f32.mrb[0].mxu0
      %v675 = vpop.f32.mrb[0].mxu0
      %v676 = vadd.f32 0.0, %v675
      %v677 = vpop.f32.mrb[0].mxu0
      %678 = vdwg.mxu0
      %v679 = vadd.f32 %v562, %v673
      %v680 = vadd.f32 %v565, %v676
      %s681 = smul.addr %s327, 4
      %s682 = scalar_lea.vmem %s314, %s681
      %v683 = vld [vmem:[%s682] sm:$0xf]
      %v684 = vld [vmem:[%s682 + $0x4] sm:$0xf]
      %v685 = vld [vmem:[%s3] sm:$0xf]
      %v686 = vld [vmem:[%s3 + $0x4] sm:$0xf]
      %v687 = vld [vmem:[%s3 + $0x8] sm:$0xf]
      %v688 = vld [vmem:[%s3 + $0xc] sm:$0xf]
      %v689 = vld [vmem:[%s3 + $0x10] sm:$0xf]
      %v690 = vld [vmem:[%s3 + $0x14] sm:$0xf]
      %v691 = vld [vmem:[%s3 + $0x18] sm:$0xf]
      %v692 = vld [vmem:[%s3 + $0x1c] sm:$0xf]
      %v693 = vld [vmem:[%s3 + $0x20] sm:$0xf]
      %v694 = vld [vmem:[%s3 + $0x24] sm:$0xf]
      %v695 = vld [vmem:[%s3 + $0x28] sm:$0xf]
      %v696 = vld [vmem:[%s3 + $0x2c] sm:$0xf]
      %v697 = vld [vmem:[%s3 + $0x30] sm:$0xf]
      %v698 = vld [vmem:[%s3 + $0x34] sm:$0xf]
      %v699 = vld [vmem:[%s3 + $0x38] sm:$0xf]
      %v700 = vld [vmem:[%s3 + $0x3c] sm:$0xf]
      %v703 = vunpack.c.l.b16 %v683
      %v704 = vunpack.c.l.b16 %v684
      %v705 = vpack.c.b16 %v704, %v703
      %v723 = vunpack.c.l.b16 %v685
      %v724 = vunpack.c.l.b16 %v686
      %v725 = vunpack.c.l.b16 %v687
      %v726 = vunpack.c.l.b16 %v688
      %v727 = vunpack.c.l.b16 %v689
      %v728 = vunpack.c.l.b16 %v690
      %v729 = vunpack.c.l.b16 %v691
      %v730 = vunpack.c.l.b16 %v692
      %v731 = vunpack.c.l.b16 %v693
      %v732 = vunpack.c.l.b16 %v694
      %v733 = vunpack.c.l.b16 %v695
      %v734 = vunpack.c.l.b16 %v696
      %v735 = vunpack.c.l.b16 %v697
      %v736 = vunpack.c.l.b16 %v698
      %v737 = vunpack.c.l.b16 %v699
      %v738 = vunpack.c.l.b16 %v700
      %v739 = vpack.c.b16 %v724, %v723
      %v740 = vpack.c.b16 %v726, %v725
      %v741 = vpack.c.b16 %v728, %v727
      %v742 = vpack.c.b16 %v730, %v729
      %v743 = vpack.c.b16 %v732, %v731
      %v744 = vpack.c.b16 %v734, %v733
      %v745 = vpack.c.b16 %v736, %v735
      %v746 = vpack.c.b16 %v738, %v737
      %755 = vmatprep.subr.bf16.mxu0 0
      %756 = vmatpush1.bf16.msra.mxu0 %v739
      %757 = vmatprep.subr.bf16.mxu0 0
      %758 = vmatpush1.bf16.msra.mxu0 %v740
      %759 = vmatprep.subr.bf16.mxu0 0
      %760 = vmatpush1.bf16.msra.mxu0 %v741
      %761 = vmatprep.subr.bf16.mxu0 0
      %762 = vmatpush1.bf16.msra.mxu0 %v742
      %763 = vmatprep.subr.bf16.mxu0 0
      %764 = vmatpush1.bf16.msra.mxu0 %v743
      %765 = vmatprep.subr.bf16.mxu0 0
      %766 = vmatpush1.bf16.msra.mxu0 %v744
      %767 = vmatprep.subr.bf16.mxu0 0
      %768 = vmatpush1.bf16.msra.mxu0 %v745
      %769 = vmatprep.subr.bf16.mxu0 0
      %770 = vmatpush1.bf16.msra.mxu0 %v746
      %771 = vmatprep.subr.bf16.mxu0 0
      %772 = vmatpush1.bf16.msra.mxu0 0
      %773 = vmatprep.subr.bf16.mxu0 0
      %774 = vmatpush1.bf16.msra.mxu0 0
      %775 = vmatprep.subr.bf16.mxu0 0
      %776 = vmatpush1.bf16.msra.mxu0 0
      %777 = vmatprep.subr.bf16.mxu0 0
      %778 = vmatpush1.bf16.msra.mxu0 0
      %779 = vmatprep.subr.bf16.mxu0 0
      %780 = vmatpush1.bf16.msra.mxu0 0
      %781 = vmatprep.subr.bf16.mxu0 0
      %782 = vmatpush1.bf16.msra.mxu0 0
      %783 = vmatprep.subr.bf16.mxu0 0
      %784 = vmatpush1.bf16.msra.mxu0 0
      %785 = vmatprep.subr.bf16.mxu0 0
      %786 = vmatpush1.bf16.msra.mxu0 0
      %787 = vmatprep.mubr.bf16.mxu0 0
      %788 = vmatmul.mubr.bf16.gmra.mrb[0].mxu0 %v705
      %v789 = vpop.f32.mrb[0].mxu0
      %v790 = vadd.f32 0.0, %v789
      %v791 = vpop.f32.mrb[0].mxu0
      %v792 = vpop.f32.mrb[0].mxu0
      %v793 = vadd.f32 0.0, %v792
      %v794 = vpop.f32.mrb[0].mxu0
      %795 = vdwg.mxu0
      %v796 = vld [vmem:[%s4] sm:$0x1]
      %v798 = vlaneseq
      %v799 = vshrl.u32 %v798, 7
      %v800 = vsub.s32 0, %v799
      %v801 = vrot.slane %v796, %v800
      %v803 = vmul.f32 %v679, %v801
      %v804 = vmul.f32 %v680, %v801
      %v805 = vld [vmem:[%s5] sm:$0x1]
      %v807 = vlaneseq
      %v808 = vshrl.u32 %v807, 7
      %v809 = vsub.s32 0, %v808
      %v810 = vrot.slane %v805, %v809
      %v812 = vmul.f32 %v790, %v810
      %v813 = vmul.f32 %v793, %v810
      %v814 = vadd.f32 %v803, %v812
      %v815 = vadd.f32 %v804, %v813
      %v816 = vld [vmem:[%s6] sm:$0x1]
      %v818 = vlaneseq
      %v819 = vshrl.u32 %v818, 7
      %v820 = vsub.s32 0, %v819
      %v821 = vrot.slane %v816, %v820
      %v823 = vadd.f32 %v814, %v821
      %v824 = vadd.f32 %v815, %v821
      %v825 = vmax.f32 %v823, 0.0
      %v826 = vmax.f32 %v824, 0.0
      %v827 = vpack.c.bf16 %v826, %v825
      %v829 = vunpack.c.l.b16 %v827
      %v830 = vunpack.c.h.b16 %v827
      %v831 = vpack.c.b16 %v829, %v829
      %v832 = vpack.c.b16 %v830, %v830
      %835 = vst [vmem:[%s323] sm:$0xf] %v831
      %836 = vst [vmem:[%s323 + $0x4] sm:$0xf] %v832
      %s837 = smul.u32 2, %s23
      %p838 = scmp.lt.s32.totalorder %s22, 1
      %s839 = scalar_select %p838, %s22, 1
      %p840 = scmp.lt.s32.totalorder %s837, 1
      %s841 = scalar_select %p840, %s837, 1
      %s842 = smul.addr %s839, 2
      %s843 = sadd.s32 %s841, %s842
      %s844 = smul.addr %s843, 4
      %s845 = scalar_lea.vmem %s7, %s844
      // Predicated region
      $region49: #{proj_resnet_forward.14} parent=47 // pred_check
        %p846 = pneg %p207
      $region50: #{proj_resnet_forward.14} parent=47 // pred_check_branch
        %848 = sbr.rel (%p846) target = $region52
      $region51: #{proj_resnet_forward.14} parent=47 // pred_region
        %s849 = smul.u32 2, %s23
      $region52: #{proj_resnet_forward.14} parent=47 // pred_fallthru
        _
    $region48: #{proj_resnet_forward.14} parent=5 // pred_fallthru
      _
    %p850 = scmp.le.s32.totalorder 2, %s13
    // Predicated region
    $region53: #{proj_resnet_forward.14} parent=5 // pred_check
      %p851 = pneg %p850
    $region54: #{proj_resnet_forward.14} parent=5 // pred_check_branch
      %853 = sbr.rel (%p851) target = $region56
    $region55: #{proj_resnet_forward.14} parent=5 // pred_region
      %s854 = ssub.s32 %s13, 2
      // Predicated region
      $region57: #{proj_resnet_forward.14} parent=55 // pred_check
        %p855 = pneg %p213
      $region58: #{proj_resnet_forward.14} parent=55 // pred_check_branch
        %857 = sbr.rel (%p855) target = $region60
      $region59: #{proj_resnet_forward.14} parent=55 // pred_region
        %s858 = smul.u32 2, %s25
        %p859 = scmp.lt.s32.totalorder %s24, 1
        %s860 = scalar_select %p859, %s24, 1
        %p861 = scmp.lt.s32.totalorder %s858, 1
        %s862 = scalar_select %p861, %s858, 1
        %s863 = smul.addr %s860, 2
        %s864 = sadd.s32 %s862, %s863
        %s865 = smul.addr %s864, 4
        %s866 = scalar_lea.vmem %s7, %s865
      $region60: #{proj_resnet_forward.14} parent=55 // pred_fallthru
        _
    $region56: #{proj_resnet_forward.14} parent=5 // pred_fallthru
      _
  $region6: #{proj_resnet_forward.14} parent=0 // loop_footer
    %s17 = sadd.s32 1, %s13
  $region7: #{proj_resnet_forward.14} parent=0 // loop_footer_branch
    %12 = sbr.rel target = $region3
  $region8: #{proj_resnet_forward.14} parent=0 // loop_exit
    _

// kernel: proj_resnet_forward.19
$region0: #{proj_resnet_forward.19}
  #allocation0 [shape = 'u32[]', space=smem, size = 0x4, offset = 0x4, fixed_abs, tag = 'smem constant byte address 0x4 - core index']
  #allocation1 [shape = 'u32[144,128]{1,0:T(1,128)}', space=vmem, size = 0x12000, scoped, tag = 'internal scratch']
  %s0 = inlined_call_operand.vmem [shape: bf16[2,4,128], index: 0, kind: input, shape index: {}]
  %s1 = inlined_call_operand.vmem [shape: f32[128,128], index: 1, kind: input, shape index: {}]
  %s2 = inlined_call_operand.vmem [shape: f32[1,128], index: 2, kind: input, shape index: {}]
  %s3 = inlined_call_operand.hbm [shape: f32[2,128], index: 3, kind: output, shape index: {0}]
  %s4 = inlined_call_operand.hbm [shape: f32[2,128], index: 4, kind: output, shape index: {1}]
  %5 = xla_tuple %s3, %s4
  %s6 = sld [smem:[#allocation0]]
  $region30: #{proj_resnet_forward.19} parent=0
    _
  %s8 = ssub.s32 1, %s6
  %s9 = scalar_select 0, %s8, %s6
  $region1: #{proj_resnet_forward.19} parent=0
    #allocation2 [shape = 'u8[1024]{0}', space=vmem, size = 0x400, scoped, tag = 'output window, operand 0, single buffered']
    #allocation3 [shape = 's32[1]{0}', space=sflag, size = 0x4, scoped, tag = 'scoped memory for proj_resnet_forward.19']
    #allocation4 [shape = 'u8[1024]{0}', space=vmem, size = 0x400, scoped, tag = 'output window, operand 1, single buffered']
    #allocation5 [shape = 's32[1]{0}', space=sflag, size = 0x4, scoped, tag = 'scoped memory for proj_resnet_forward.19']
    %10 = vsyncpa [#allocation3], 0
    %11 = vsyncpa [#allocation5], 0
    // Predicated region
    $region2: #{proj_resnet_forward.19} parent=1 // pred_check
      _
    $region3: #{proj_resnet_forward.19} parent=1 // pred_check_branch
      %13 = sbr.rel (0) target = $region5
    $region4: #{proj_resnet_forward.19} parent=1 // pred_region
      _
    $region5: #{proj_resnet_forward.19} parent=1 // pred_fallthru
      _
    // Predicated region
    $region6: #{proj_resnet_forward.19} parent=1 // pred_check
      _
    $region7: #{proj_resnet_forward.19} parent=1 // pred_check_branch
      %15 = sbr.rel (0) target = $region9
    $region8: #{proj_resnet_forward.19} parent=1 // pred_region
      _
    $region9: #{proj_resnet_forward.19} parent=1 // pred_fallthru
      _
    // Predicated region
    $region10: #{proj_resnet_forward.19} parent=1 // pred_check
      _
    $region11: #{proj_resnet_forward.19} parent=1 // pred_check_branch
      %17 = sbr.rel (0) target = $region13
    $region12: #{proj_resnet_forward.19} parent=1 // pred_region
      _
    $region13: #{proj_resnet_forward.19} parent=1 // pred_fallthru
      _
    %v18 = vld [vmem:[%s0] sm:$0x3]
    %v19 = vld [vmem:[%s0 + $0x2] sm:$0x3]
    %v20 = vunpack.c.l.bf16 %v18
    %v21 = vunpack.c.l.bf16 %v19
    %vm22 = vcmask 1043456
    %v23 = vsel %vm22, %v20, 0.0
    %v24 = vrot.slane %v23, 4
    %v25 = vadd.f32 %v23, %v24
    %v26 = vrot.slane %v25, 2
    %v27 = vadd.f32 %v25, %v26
    %v28 = vrot.slane %v27, 1
    %v29 = vadd.f32 %v27, %v28
    %v30 = vsel %vm22, %v21, 0.0
    %v31 = vrot.slane %v30, 4
    %v32 = vadd.f32 %v30, %v31
    %v33 = vrot.slane %v32, 2
    %v34 = vadd.f32 %v32, %v33
    %v35 = vrot.slane %v34, 1
    %v36 = vadd.f32 %v34, %v35
    %v37 = vrcp.pop 4.0
    %v38 = vmul.f32 %v29, %v37
    %v39 = vmul.f32 %v36, %v37
    %v40 = vld [vmem:[%s1] sm:$0xff]
    %v41 = vld [vmem:[%s1 + $0x8] sm:$0xff]
    %v42 = vld [vmem:[%s1 + $0x10] sm:$0xff]
    %v43 = vld [vmem:[%s1 + $0x18] sm:$0xff]
    %v44 = vld [vmem:[%s1 + $0x20] sm:$0xff]
    %v45 = vld [vmem:[%s1 + $0x28] sm:$0xff]
    %v46 = vld [vmem:[%s1 + $0x30] sm:$0xff]
    %v47 = vld [vmem:[%s1 + $0x38] sm:$0xff]
    %v48 = vld [vmem:[%s1 + $0x40] sm:$0xff]
    %v49 = vld [vmem:[%s1 + $0x48] sm:$0xff]
    %v50 = vld [vmem:[%s1 + $0x50] sm:$0xff]
    %v51 = vld [vmem:[%s1 + $0x58] sm:$0xff]
    %v52 = vld [vmem:[%s1 + $0x60] sm:$0xff]
    %v53 = vld [vmem:[%s1 + $0x68] sm:$0xff]
    %v54 = vld [vmem:[%s1 + $0x70] sm:$0xff]
    %v55 = vld [vmem:[%s1 + $0x78] sm:$0xff]
    %v56 = vld [vmem:[%s2] sm:$0x1]
    %v58 = vlaneseq
    %v59 = vshrl.u32 %v58, 7
    %v60 = vsub.s32 0, %v59
    %v61 = vrot.slane %v56, %v60
    %vm65 = vcmask 1041409
    %v66 = vsel %vm65, %v39, %v38
    %68 = vmatprep.subr.mxu0 0.0
    %69 = vmatpush1.msra.mxu0 %v40
    %70 = vmatprep.subr.mxu0 0.0
    %71 = vmatpush1.msra.mxu0 %v41
    %72 = vmatprep.subr.mxu0 0.0
    %73 = vmatpush1.msra.mxu0 %v42
    %74 = vmatprep.subr.mxu0 0.0
    %75 = vmatpush1.msra.mxu0 %v43
    %76 = vmatprep.subr.mxu0 0.0
    %77 = vmatpush1.msra.mxu0 %v44
    %78 = vmatprep.subr.mxu0 0.0
    %79 = vmatpush1.msra.mxu0 %v45
    %80 = vmatprep.subr.mxu0 0.0
    %81 = vmatpush1.msra.mxu0 %v46
    %82 = vmatprep.subr.mxu0 0.0
    %83 = vmatpush1.msra.mxu0 %v47
    %84 = vmatprep.subr.mxu0 0.0
    %85 = vmatpush1.msra.mxu0 %v48
    %86 = vmatprep.subr.mxu0 0.0
    %87 = vmatpush1.msra.mxu0 %v49
    %88 = vmatprep.subr.mxu0 0.0
    %89 = vmatpush1.msra.mxu0 %v50
    %90 = vmatprep.subr.mxu0 0.0
    %91 = vmatpush1.msra.mxu0 %v51
    %92 = vmatprep.subr.mxu0 0.0
    %93 = vmatpush1.msra.mxu0 %v52
    %94 = vmatprep.subr.mxu0 0.0
    %95 = vmatpush1.msra.mxu0 %v53
    %96 = vmatprep.subr.mxu0 0.0
    %97 = vmatpush1.msra.mxu0 %v54
    %98 = vmatprep.subr.mxu0 0.0
    %99 = vmatpush1.msra.mxu0 %v55
    %100 = vmatprep.subr.mxu0 0.0
    %101 = vmatpush1.msra.mxu0 0.0
    %102 = vmatprep.subr.mxu0 0.0
    %103 = vmatpush1.msra.mxu0 0.0
    %104 = vmatprep.subr.mxu0 0.0
    %105 = vmatpush1.msra.mxu0 0.0
    %106 = vmatprep.subr.mxu0 0.0
    %107 = vmatpush1.msra.mxu0 0.0
    %108 = vmatprep.subr.mxu0 0.0
    %109 = vmatpush1.msra.mxu0 0.0
    %110 = vmatprep.subr.mxu0 0.0
    %111 = vmatpush1.msra.mxu0 0.0
    %112 = vmatprep.subr.mxu0 0.0
    %113 = vmatpush1.msra.mxu0 0.0
    %114 = vmatprep.subr.mxu0 0.0
    %115 = vmatpush1.msra.mxu0 0.0
    %116 = vmatprep.subr.mxu0 0.0
    %117 = vmatpush1.msra.mxu0 0.0
    %118 = vmatprep.subr.mxu0 0.0
    %119 = vmatpush1.msra.mxu0 0.0
    %120 = vmatprep.subr.mxu0 0.0
    %121 = vmatpush1.msra.mxu0 0.0
    %122 = vmatprep.subr.mxu0 0.0
    %123 = vmatpush1.msra.mxu0 0.0
    %124 = vmatprep.subr.mxu0 0.0
    %125 = vmatpush1.msra.mxu0 0.0
    %126 = vmatprep.subr.mxu0 0.0
    %127 = vmatpush1.msra.mxu0 0.0
    %128 = vmatprep.subr.mxu0 0.0
    %129 = vmatpush1.msra.mxu0 0.0
    %130 = vmatprep.subr.mxu0 0.0
    %131 = vmatpush1.msra.mxu0 0.0
    %132 = vmatprep.mubr.f32.mxu0 0.0
    %133 = vmatmul.mubr.f32.gmra.mrb[0].mxu0 %v66
    %v134 = vpop.f32.mrb[0].mxu0
    %v135 = vadd.f32 %v61, %v134
    %v136 = vpop.f32.mrb[0].mxu0
    %137 = vdwg.mxu0
    %138 = vst [vmem:[#allocation2] sm:$0x3] %v135
    %139 = vst [vmem:[#allocation4] sm:$0x3] %v66
    // Predicated region
    $region14: #{proj_resnet_forward.19} parent=1 // pred_check
      _
    $region15: #{proj_resnet_forward.19} parent=1 // pred_check_branch
      %141 = sbr.rel (0) target = $region17
    $region16: #{proj_resnet_forward.19} parent=1 // pred_region
      %s143 = ssub.s32 32, 32
      %144 = vsyncadd [#allocation3], %s143
      %s146 = sshll.u32 [#allocation2], 4
      %s147 = int_to_ptr.vmem [resolvable:$true] %s146
      %149 = dma.vmem_to_hbm [thread:$0]  %s147, 32, %s3, [#allocation3]
    $region17: #{proj_resnet_forward.19} parent=1 // pred_fallthru
      _
    // Predicated region
    $region18: #{proj_resnet_forward.19} parent=1 // pred_check
      _
    $region19: #{proj_resnet_forward.19} parent=1 // pred_check_branch
      %151 = sbr.rel (0) target = $region21
    $region20: #{proj_resnet_forward.19} parent=1 // pred_region
      %s153 = ssub.s32 32, 32
      %154 = vsyncadd [#allocation5], %s153
      %s156 = sshll.u32 [#allocation4], 4
      %s157 = int_to_ptr.vmem [resolvable:$true] %s156
      %159 = dma.vmem_to_hbm [thread:$0]  %s157, 32, %s4, [#allocation5]
    $region21: #{proj_resnet_forward.19} parent=1 // pred_fallthru
      _
    // Predicated region
    $region22: #{proj_resnet_forward.19} parent=1 // pred_check
      _
    $region23: #{proj_resnet_forward.19} parent=1 // pred_check_branch
      %161 = sbr.rel (0) target = $region25
    $region24: #{proj_resnet_forward.19} parent=1 // pred_region
      %162 = dma.done [#allocation3], 32
    $region25: #{proj_resnet_forward.19} parent=1 // pred_fallthru
      _
    // Predicated region
    $region26: #{proj_resnet_forward.19} parent=1 // pred_check
      _
    $region27: #{proj_resnet_forward.19} parent=1 // pred_check_branch
      %164 = sbr.rel (0) target = $region29
    $region28: #{proj_resnet_forward.19} parent=1 // pred_region
      %165 = dma.done [#allocation5], 32
    $region29: #{proj_resnet_forward.19} parent=1 // pred_fallthru
      _
    %166 = vsyncpa [#allocation3], 1
    %167 = vsyncpa [#allocation5], 1

</llo_original>
